<compile_context>
chip_gen: v6e
topology: v6e:2x2x1
jax: 0.10.0
libtpu: 0.0.40
codegen_flags: <defaults>
</compile_context>

<pallas_src>
import functools
import math

import jax
import jax.numpy as jnp
from jax import lax
from jax.experimental import pallas as pl
from jax.experimental.pallas import tpu as pltpu


def _round_up(x, m):
    return -(-x // m) * m


def _pack_blocks(blocks):
    """Pack named 2D blocks into one (rows, width) f32 slab.

    Every block is zero-padded to a multiple of 8 rows and to the common lane
    width, so all in-kernel slices are sublane-group aligned, offset-0 lane
    slices.  Returns (slab, {name: (row_offset, rows, cols)}, width).
    """
    arrs = [(n, jnp.asarray(a, jnp.float32)) for n, a in blocks]
    width = _round_up(max(int(a.shape[1]) for _, a in arrs), 128)
    layout, pieces, r = {}, [], 0
    for name, a in arrs:
        rr, cc = int(a.shape[0]), int(a.shape[1])
        rpad = (-rr) % 8
        pieces.append(jnp.pad(a, ((0, rpad), (0, width - cc))))
        layout[name] = (r, rr, cc)
        r += rr + rpad
    return jnp.concatenate(pieces, axis=0), layout, width


def _attention_lstm_kernel(x_ref, w_ref, out_ref, h_slab, *, layout, seq_len,
                           bp, hidden, num_layers, num_fc):
    S, B, H = seq_len, bp, hidden

    def blk(name):
        r0, rr, cc = layout[name]
        return w_ref[r0:r0 + rr, 0:cc]          # static, aligned ref slice

    gate_ab = blk("gate_ab")                     # (2, 4H)
    col_a = gate_ab[0:1, :]                      # post-tanh scale per gate column
    col_b = gate_ab[1:2, :]                      # post-tanh offset per gate column

    # ---------------- LSTM stack (seq-major rows: index = t*8 + b) ----------
    seq = x_ref[...]                             # (S*B, Din)
    for l in range(num_layers):
        w_ih = blk(f"w_ih_{l}")                  # (Din, 4H), i/f/o cols pre-scaled by 0.5
        w_hh = blk(f"w_hh_{l}")                  # (H, 4H)
        b_g = blk(f"b_{l}")                      # (1, 4H)
        # Input projection for ALL timesteps in one MXU pass.
        gx = jnp.dot(seq, w_ih, preferred_element_type=jnp.float32) + b_g
        h = jnp.zeros((B, H), jnp.float32)
        c = jnp.zeros((B, H), jnp.float32)
        for t in range(S):                       # static unroll (S small)
            g = gx[t * B:(t + 1) * B, :] + jnp.dot(
                h, w_hh, preferred_element_type=jnp.float32)       # (B, 4H)
            # One tanh on the full 128-lane gate vreg: sigmoid(z)=0.5*tanh(z/2)+0.5
            # (the /2 is folded into the packed weights/bias).
            act = jnp.tanh(g) * col_a + col_b
            i_g = act[:, 0 * H:1 * H]
            f_g = act[:, 1 * H:2 * H]
            g_g = act[:, 2 * H:3 * H]
            o_g = act[:, 3 * H:4 * H]
            c = f_g * c + i_g * g_g
            h = o_g * jnp.tanh(c)
            h_slab[t * B:(t + 1) * B, :] = h     # aligned whole-group store
        seq = h_slab[...]                        # (S*B, H) input to next layer

    lstm_out = seq                               # (S*B, H)

    # -------- multi-head self-attention (only the last query is consumed) ---
    # kv-space layout: lanes 0:H = k, lanes H:2H = v (packed projection).
    last = lstm_out[(S - 1) * B:S * B, :]        # (B, H) aligned sublane group
    q = jnp.dot(last, blk("w_q"),
                preferred_element_type=jnp.float32) + blk("b_q")   # (B,2H), q (scaled) in lanes 0:H
    kv = jnp.dot(lstm_out, blk("w_kv"),
                 preferred_element_type=jnp.float32) + blk("b_kv")  # (S*B, 2H)

    q_t = jnp.concatenate([q] * S, axis=0)       # (S*B, 2H) aligned-group tile
    # Per-head q.k reduction as ONE matmul against the head-segment matrix.
    scores = jnp.dot(kv * q_t, blk("seg_k"),
                     preferred_element_type=jnp.float32)            # (S*B, nh)

    # log2-depth max over the S timestep groups (aligned whole-group ops).
    m, n = scores, S
    while n > 1:
        half = n // 2
        red = jnp.maximum(m[0:half * B, :], m[half * B:2 * half * B, :])
        if n % 2:
            red = jnp.concatenate([red, m[2 * half * B:n * B, :]], axis=0)
            n = half + 1
        else:
            n = half
        m = red                                  # (B, nh) at the end

    e = jnp.exp(scores - jnp.concatenate([m] * S, axis=0))          # (S*B, nh)
    sum_mat = blk("sum_mat")                     # (B, S*B) summation matrix
    d = jnp.dot(sum_mat, e, preferred_element_type=jnp.float32)     # (B, nh)
    r = pl.reciprocal(d, approx=True)
    r = r * (2.0 - d * r)                        # one Newton step

    seg_v = blk("seg_v")                         # (nh, 2H): head -> v lanes
    ev = jnp.dot(e, seg_v, preferred_element_type=jnp.float32) * kv  # (S*B, 2H)
    ctx = jnp.dot(sum_mat, ev, preferred_element_type=jnp.float32)   # (B, 2H)
    ctx = ctx * jnp.dot(r, seg_v, preferred_element_type=jnp.float32)

    # w_o is row-shifted (rows H:2H) in the wrapper -> no lane slice of ctx.
    attn = jnp.dot(ctx, blk("w_o"),
                   preferred_element_type=jnp.float32) + blk("b_o")  # (B, H)
    # dropout(p=0.1) is identity in eval mode.

    # ---------------- fc1..fc5 head (all output dims padded to 128 lanes) ---
    act = jnp.maximum(attn, 0.0)                 # relu(attn_out[:, -1, :])
    b_fc_r0, _, b_fc_cc = layout["b_fc"]
    for i in range(num_fc):
        bias = w_ref[b_fc_r0 + i:b_fc_r0 + i + 1, 0:b_fc_cc]
        act = jnp.dot(act, blk(f"w_fc_{i}"),
                      preferred_element_type=jnp.float32) + bias
        if i + 1 < num_fc:
            act = jnp.maximum(act, 0.0)

    out_ref[...] = act.astype(out_ref.dtype)     # unmasked (8,128) store


def attention_lstm_forward(x, params, *, num_heads):
    """Fused Attention_LSTM forward. x: (B, S, input_size) batch-first."""
    B, S, din = x.shape
    lstm = params["lstm"]                        # list of (w_ih, w_hh, b_ih, b_hh)
    w_in, b_in = params["in_proj_weight"], params["in_proj_bias"]
    w_out, b_out = params["out_proj_weight"], params["out_proj_bias"]
    fcs = params["fc"]                           # list of (w, b), fc1..fc5
    H = w_out.shape[0]
    assert H % num_heads == 0
    hd = H // num_heads
    nh = num_heads
    out_dim = fcs[-1][0].shape[0]
    num_fc = len(fcs)

    BP = 8                                       # one full sublane group per chunk
    n_chunks = -(-B // BP)
    b_pad = n_chunks * BP
    fc_pad = _round_up(max(128, max(int(w.shape[0]) for w, _ in fcs)), 128)

    # Gate-column constants: sigmoid(z) = 0.5*tanh(0.5*z)+0.5 for i/f/o, tanh for g.
    half = jnp.full((H,), 0.5, jnp.float32)
    one = jnp.ones((H,), jnp.float32)
    zero = jnp.zeros((H,), jnp.float32)
    col_pre = jnp.concatenate([half, half, one, half])      # folded into weights
    col_a = jnp.concatenate([half, half, one, half])
    col_b = jnp.concatenate([half, half, zero, half])

    blocks = []
    for l, (w_ih, w_hh, b_ih, b_hh) in enumerate(lstm):
        blocks.append((f"w_ih_{l}", w_ih.T * col_pre[None, :]))
        blocks.append((f"w_hh_{l}", w_hh.T * col_pre[None, :]))
        blocks.append((f"b_{l}", ((b_ih + b_hh) * col_pre).reshape(1, -1)))
    blocks.append(("gate_ab", jnp.stack([col_a, col_b], axis=0)))

    # Attention weights, packed in "kv space" (lanes 0:H = k, H:2H = v).
    scale = 1.0 / math.sqrt(hd)
    wq, wk, wv = w_in[0:H], w_in[H:2 * H], w_in[2 * H:3 * H]
    bq, bk, bv = b_in[0:H], b_in[H:2 * H], b_in[2 * H:3 * H]
    zHH = jnp.zeros((H, H), jnp.float32)
    blocks.append(("w_q", jnp.concatenate([wq.T * scale, zHH], axis=1)))       # (H, 2H)
    blocks.append(("b_q", jnp.concatenate([bq * scale, zero]).reshape(1, -1)))
    blocks.append(("w_kv", jnp.concatenate([wk.T, wv.T], axis=1)))             # (H, 2H)
    blocks.append(("b_kv", jnp.concatenate([bk, bv]).reshape(1, -1)))
    head_of_lane = jnp.arange(H) // hd
    seg = (head_of_lane[None, :] == jnp.arange(nh)[:, None]).astype(jnp.float32)  # (nh, H)
    blocks.append(("seg_k", jnp.concatenate([seg.T, jnp.zeros((H, nh))], axis=0)))  # (2H, nh)
    blocks.append(("seg_v", jnp.concatenate([jnp.zeros((nh, H)), seg], axis=1)))    # (nh, 2H)
    blocks.append(("sum_mat", jnp.tile(jnp.eye(BP, dtype=jnp.float32), (1, S))))    # (BP, S*BP)
    blocks.append(("w_o", jnp.concatenate([zHH, w_out.T], axis=0)))                 # (2H, H)
    blocks.append(("b_o", b_out.reshape(1, -1)))

    # fc1..fc5: output dims (and chained input dims) zero-padded to fc_pad lanes.
    fc_bias_rows = []
    for i, (w, b) in enumerate(fcs):
        fo, fi = int(w.shape[0]), int(w.shape[1])
        rows_target = H if i == 0 else fc_pad
        wt = jnp.pad(w.T.astype(jnp.float32),
                     ((0, rows_target - fi), (0, fc_pad - fo)))
        blocks.append((f"w_fc_{i}", wt))
        fc_bias_rows.append(jnp.pad(b.astype(jnp.float32), (0, fc_pad - fo)))
    blocks.append(("b_fc", jnp.stack(fc_bias_rows, axis=0)))

    w_slab, layout, _ = _pack_blocks(blocks)

    # x slab, rows ordered (chunk, t, b_in_chunk); padded batch rows are zero.
    x_f = jnp.asarray(x, jnp.float32)
    x_pad = jnp.pad(x_f, ((0, b_pad - B), (0, 0), (0, 0)))
    x_slab = (x_pad.reshape(n_chunks, BP, S, din)
              .transpose(0, 2, 1, 3)
              .reshape(n_chunks * S * BP, din))

    kernel = functools.partial(
        _attention_lstm_kernel, layout=layout, seq_len=S, bp=BP, hidden=H,
        num_layers=len(lstm), num_fc=num_fc)

    out = pl.pallas_call(
        kernel,
        grid=(n_chunks,),
        in_specs=[pl.BlockSpec((S * BP, din), lambda i: (i, 0)),
                  pl.BlockSpec(w_slab.shape, lambda i: (0, 0))],
        out_specs=pl.BlockSpec((BP, fc_pad), lambda i: (i, 0)),
        out_shape=jax.ShapeDtypeStruct((b_pad, fc_pad), jnp.float32),
        scratch_shapes=[pltpu.VMEM((S * BP, H), jnp.float32)],
        compiler_params=pltpu.CompilerParams(
            dimension_semantics=("parallel",)),
    )(x_slab, w_slab)

    return out[:B, :out_dim]


def _reference_forward(x, params, *, num_heads):
    """Pure-JAX reference of Attention_LSTM.forward (eval mode, f32 matmuls)."""
    hp = lax.Precision.HIGHEST
    mm = functools.partial(jnp.matmul, precision=hp)
    B, S, _ = x.shape

    seq = x
    for (w_ih, w_hh, b_ih, b_hh) in params["lstm"]:
        H = w_hh.shape[1]
        h = jnp.zeros((B, H), jnp.float32)
        c = jnp.zeros((B, H), jnp.float32)
        outs = []
        for t in range(S):
            g = mm(seq[:, t, :], w_ih.T) + b_ih + mm(h, w_hh.T) + b_hh
            i = jax.nn.sigmoid(g[:, 0 * H:1 * H])
            f = jax.nn.sigmoid(g[:, 1 * H:2 * H])
            gg = jnp.tanh(g[:, 2 * H:3 * H])
            o = jax.nn.sigmoid(g[:, 3 * H:4 * H])
            c = f * c + i * gg
            h = o * jnp.tanh(c)
            outs.append(h)
        seq = jnp.stack(outs, axis=1)                        # (B, S, H)

    w_in, b_in = params["in_proj_weight"], params["in_proj_bias"]
    w_out, b_out = params["out_proj_weight"], params["out_proj_bias"]
    H = w_out.shape[0]
    hd = H // num_heads
    qkv = jnp.einsum("bsh,eh->bse", seq, w_in, precision=hp) + b_in
    q, k, v = jnp.split(qkv, 3, axis=-1)
    q = q.reshape(B, S, num_heads, hd).transpose(0, 2, 1, 3) / math.sqrt(hd)
    k = k.reshape(B, S, num_heads, hd).transpose(0, 2, 1, 3)
    v = v.reshape(B, S, num_heads, hd).transpose(0, 2, 1, 3)
    p = jax.nn.softmax(jnp.einsum("bnqd,bnkd->bnqk", q, k, precision=hp), axis=-1)
    ctx = jnp.einsum("bnqk,bnkd->bnqd", p, v, precision=hp)
    ctx = ctx.transpose(0, 2, 1, 3).reshape(B, S, H)
    attn = jnp.einsum("bsh,oh->bso", ctx, w_out, precision=hp) + b_out

    out = jax.nn.relu(attn[:, -1, :])
    n_fc = len(params["fc"])
    for li, (w, b) in enumerate(params["fc"]):
        out = mm(out, w.T) + b
        if li + 1 < n_fc:
            out = jax.nn.relu(out)
    return out


if __name__ == "__main__":
    batch, seq_len = 2, 8
    input_size, hidden_size, num_layers = 16, 32, 2
    num_heads, output_size = 4, 4

    key = jax.random.PRNGKey(0)
    keys = iter(jax.random.split(key, 32))

    def u(shape, bound):
        return jax.random.uniform(next(keys), shape, jnp.float32, -bound, bound)

    kb = 1.0 / math.sqrt(hidden_size)
    lstm_params = []
    for layer in range(num_layers):
        din = input_size if layer == 0 else hidden_size
        lstm_params.append((u((4 * hidden_size, din), kb),
                            u((4 * hidden_size, hidden_size), kb),
                            u((4 * hidden_size,), kb),
                            u((4 * hidden_size,), kb)))

    fc_dims = [(hidden_size, 128), (128, 64), (64, 32), (32, 16), (16, output_size)]
    fc_params = []
    for (fin, fout) in fc_dims:
        fb = 1.0 / math.sqrt(fin)
        fc_params.append((u((fout, fin), fb), u((fout,), fb)))

    params = {
        "lstm": lstm_params,
        "in_proj_weight": u((3 * hidden_size, hidden_size), kb),
        "in_proj_bias": u((3 * hidden_size,), kb),
        "out_proj_weight": u((hidden_size, hidden_size), kb),
        "out_proj_bias": u((hidden_size,), kb),
        "fc": fc_params,
    }

    x = jax.random.normal(next(keys), (batch, seq_len, input_size), jnp.float32)

    out = attention_lstm_forward(x, params, num_heads=num_heads)
    out = jax.block_until_ready(out)
    assert out.shape == (batch, output_size)

    ref = _reference_forward(x, params, num_heads=num_heads)
    err = jnp.max(jnp.abs(out - ref))
    assert jnp.allclose(out, ref, atol=2e-4, rtol=2e-4), f"max abs err {err}"

    print("KERNEL_OK")
</pallas_src>

<mosaic_0001>
module attributes {stable_mosaic.version = 11 : i64} {
  func.func @_attention_lstm_kernel(%arg0: i32, %arg1: memref<64x16xf32, #tpu.memory_space<vmem>>, %arg2: memref<920x128xf32, #tpu.memory_space<vmem>>, %arg3: memref<8x128xf32, #tpu.memory_space<vmem>>, %arg4: memref<64x32xf32, #tpu.memory_space<vmem>>) attributes {dimension_semantics = [#tpu.dimension_semantics<parallel>], iteration_bounds = array<i64: 1>, scalar_prefetch = 0 : i64, scratch_operands = 1 : i64, tpu.core_type = #tpu.core_type<tc>, window_params = [{transform_indices = @transform_0, window_bounds = array<i64: 64, 16>}, {pipeline_mode = #tpu.pipeline_mode<synchronous>, transform_indices = @transform_1, window_bounds = array<i64: 920, 128>}, {transform_indices = @transform_2, window_bounds = array<i64: 8, 128>}]} {
    %c128 = arith.constant 128 : index
    %c0 = arith.constant 0 : index
    %0 = vector.load %arg2[%c128, %c0] : memref<920x128xf32, #tpu.memory_space<vmem>>, vector<2x128xf32>
    %1 = vector.extract_strided_slice %0 {offsets = [0, 0], sizes = [1, 128], strides = [1, 1]} : vector<2x128xf32> to vector<1x128xf32>
    %2 = vector.extract_strided_slice %0 {offsets = [1, 0], sizes = [1, 128], strides = [1, 1]} : vector<2x128xf32> to vector<1x128xf32>
    %c0_0 = arith.constant 0 : index
    %c0_1 = arith.constant 0 : index
    %3 = vector.load %arg1[%c0_0, %c0_1] : memref<64x16xf32, #tpu.memory_space<vmem>>, vector<64x16xf32>
    %c0_2 = arith.constant 0 : index
    %c0_3 = arith.constant 0 : index
    %4 = vector.load %arg2[%c0_2, %c0_3] : memref<920x128xf32, #tpu.memory_space<vmem>>, vector<16x128xf32>
    %c16 = arith.constant 16 : index
    %c0_4 = arith.constant 0 : index
    %5 = vector.load %arg2[%c16, %c0_4] : memref<920x128xf32, #tpu.memory_space<vmem>>, vector<32x128xf32>
    %c48 = arith.constant 48 : index
    %c0_5 = arith.constant 0 : index
    %6 = vector.load %arg2[%c48, %c0_5] : memref<920x128xf32, #tpu.memory_space<vmem>>, vector<1x128xf32>
    %cst = arith.constant dense<0.000000e+00> : vector<64x128xf32>
    %7 = tpu.matmul %3, %4, %cst {dimension_numbers = #tpu.dot_dimension_numbers<[1], [0], [0], [1], [0, 0, 1, 1], [], []>} : vector<64x16xf32>, vector<16x128xf32>, vector<64x128xf32> -> vector<64x128xf32>
    %8 = vector.broadcast %6 : vector<1x128xf32> to vector<64x128xf32>
    %9 = arith.addf %7, %8 : vector<64x128xf32>
    %cst_6 = arith.constant 0.000000e+00 : f32
    %10 = vector.broadcast %cst_6 : f32 to vector<8x32xf32>
    %cst_7 = arith.constant 0.000000e+00 : f32
    %11 = vector.broadcast %cst_7 : f32 to vector<8x32xf32>
    %12 = vector.extract_strided_slice %9 {offsets = [0, 0], sizes = [8, 128], strides = [1, 1]} : vector<64x128xf32> to vector<8x128xf32>
    %cst_8 = arith.constant dense<0.000000e+00> : vector<8x128xf32>
    %13 = tpu.matmul %10, %5, %cst_8 {dimension_numbers = #tpu.dot_dimension_numbers<[1], [0], [0], [1], [0, 0, 1, 1], [], []>} : vector<8x32xf32>, vector<32x128xf32>, vector<8x128xf32> -> vector<8x128xf32>
    %14 = arith.addf %12, %13 : vector<8x128xf32>
    %15 = math.tanh %14 : vector<8x128xf32>
    %16 = vector.broadcast %1 : vector<1x128xf32> to vector<8x128xf32>
    %17 = arith.mulf %15, %16 : vector<8x128xf32>
    %18 = vector.broadcast %2 : vector<1x128xf32> to vector<8x128xf32>
    %19 = arith.addf %17, %18 : vector<8x128xf32>
    %20 = vector.extract_strided_slice %19 {offsets = [0, 0], sizes = [8, 32], strides = [1, 1]} : vector<8x128xf32> to vector<8x32xf32>
    %21 = vector.extract_strided_slice %19 {offsets = [0, 32], sizes = [8, 32], strides = [1, 1]} : vector<8x128xf32> to vector<8x32xf32>
    %22 = vector.extract_strided_slice %19 {offsets = [0, 64], sizes = [8, 32], strides = [1, 1]} : vector<8x128xf32> to vector<8x32xf32>
    %23 = vector.extract_strided_slice %19 {offsets = [0, 96], sizes = [8, 32], strides = [1, 1]} : vector<8x128xf32> to vector<8x32xf32>
    %24 = arith.mulf %21, %11 : vector<8x32xf32>
    %25 = arith.mulf %20, %22 : vector<8x32xf32>
    %26 = arith.addf %24, %25 : vector<8x32xf32>
    %27 = math.tanh %26 : vector<8x32xf32>
    %28 = arith.mulf %23, %27 : vector<8x32xf32>
    %c0_9 = arith.constant 0 : index
    %c0_10 = arith.constant 0 : index
    %29 = vector.load %arg4[%c0_9, %c0_10] : memref<64x32xf32, #tpu.memory_space<vmem>>, vector<8x32xf32>
    tpu.vector_store %arg4[%c0_9, %c0_10], %28 {strides = array<i32>} : memref<64x32xf32, #tpu.memory_space<vmem>>, vector<8x32xf32>,
    %30 = vector.extract_strided_slice %9 {offsets = [8, 0], sizes = [8, 128], strides = [1, 1]} : vector<64x128xf32> to vector<8x128xf32>
    %cst_11 = arith.constant dense<0.000000e+00> : vector<8x128xf32>
    %31 = tpu.matmul %28, %5, %cst_11 {dimension_numbers = #tpu.dot_dimension_numbers<[1], [0], [0], [1], [0, 0, 1, 1], [], []>} : vector<8x32xf32>, vector<32x128xf32>, vector<8x128xf32> -> vector<8x128xf32>
    %32 = arith.addf %30, %31 : vector<8x128xf32>
    %33 = math.tanh %32 : vector<8x128xf32>
    %34 = vector.broadcast %1 : vector<1x128xf32> to vector<8x128xf32>
    %35 = arith.mulf %33, %34 : vector<8x128xf32>
    %36 = vector.broadcast %2 : vector<1x128xf32> to vector<8x128xf32>
    %37 = arith.addf %35, %36 : vector<8x128xf32>
    %38 = vector.extract_strided_slice %37 {offsets = [0, 0], sizes = [8, 32], strides = [1, 1]} : vector<8x128xf32> to vector<8x32xf32>
    %39 = vector.extract_strided_slice %37 {offsets = [0, 32], sizes = [8, 32], strides = [1, 1]} : vector<8x128xf32> to vector<8x32xf32>
    %40 = vector.extract_strided_slice %37 {offsets = [0, 64], sizes = [8, 32], strides = [1, 1]} : vector<8x128xf32> to vector<8x32xf32>
    %41 = vector.extract_strided_slice %37 {offsets = [0, 96], sizes = [8, 32], strides = [1, 1]} : vector<8x128xf32> to vector<8x32xf32>
    %42 = arith.mulf %39, %26 : vector<8x32xf32>
    %43 = arith.mulf %38, %40 : vector<8x32xf32>
    %44 = arith.addf %42, %43 : vector<8x32xf32>
    %45 = math.tanh %44 : vector<8x32xf32>
    %46 = arith.mulf %41, %45 : vector<8x32xf32>
    %c8 = arith.constant 8 : index
    %c0_12 = arith.constant 0 : index
    %47 = vector.load %arg4[%c8, %c0_12] : memref<64x32xf32, #tpu.memory_space<vmem>>, vector<8x32xf32>
    tpu.vector_store %arg4[%c8, %c0_12], %46 {strides = array<i32>} : memref<64x32xf32, #tpu.memory_space<vmem>>, vector<8x32xf32>,
    %48 = vector.extract_strided_slice %9 {offsets = [16, 0], sizes = [8, 128], strides = [1, 1]} : vector<64x128xf32> to vector<8x128xf32>
    %cst_13 = arith.constant dense<0.000000e+00> : vector<8x128xf32>
    %49 = tpu.matmul %46, %5, %cst_13 {dimension_numbers = #tpu.dot_dimension_numbers<[1], [0], [0], [1], [0, 0, 1, 1], [], []>} : vector<8x32xf32>, vector<32x128xf32>, vector<8x128xf32> -> vector<8x128xf32>
    %50 = arith.addf %48, %49 : vector<8x128xf32>
    %51 = math.tanh %50 : vector<8x128xf32>
    %52 = vector.broadcast %1 : vector<1x128xf32> to vector<8x128xf32>
    %53 = arith.mulf %51, %52 : vector<8x128xf32>
    %54 = vector.broadcast %2 : vector<1x128xf32> to vector<8x128xf32>
    %55 = arith.addf %53, %54 : vector<8x128xf32>
    %56 = vector.extract_strided_slice %55 {offsets = [0, 0], sizes = [8, 32], strides = [1, 1]} : vector<8x128xf32> to vector<8x32xf32>
    %57 = vector.extract_strided_slice %55 {offsets = [0, 32], sizes = [8, 32], strides = [1, 1]} : vector<8x128xf32> to vector<8x32xf32>
    %58 = vector.extract_strided_slice %55 {offsets = [0, 64], sizes = [8, 32], strides = [1, 1]} : vector<8x128xf32> to vector<8x32xf32>
    %59 = vector.extract_strided_slice %55 {offsets = [0, 96], sizes = [8, 32], strides = [1, 1]} : vector<8x128xf32> to vector<8x32xf32>
    %60 = arith.mulf %57, %44 : vector<8x32xf32>
    %61 = arith.mulf %56, %58 : vector<8x32xf32>
    %62 = arith.addf %60, %61 : vector<8x32xf32>
    %63 = math.tanh %62 : vector<8x32xf32>
    %64 = arith.mulf %59, %63 : vector<8x32xf32>
    %c16_14 = arith.constant 16 : index
    %c0_15 = arith.constant 0 : index
    %65 = vector.load %arg4[%c16_14, %c0_15] : memref<64x32xf32, #tpu.memory_space<vmem>>, vector<8x32xf32>
    tpu.vector_store %arg4[%c16_14, %c0_15], %64 {strides = array<i32>} : memref<64x32xf32, #tpu.memory_space<vmem>>, vector<8x32xf32>,
    %66 = vector.extract_strided_slice %9 {offsets = [24, 0], sizes = [8, 128], strides = [1, 1]} : vector<64x128xf32> to vector<8x128xf32>
    %cst_16 = arith.constant dense<0.000000e+00> : vector<8x128xf32>
    %67 = tpu.matmul %64, %5, %cst_16 {dimension_numbers = #tpu.dot_dimension_numbers<[1], [0], [0], [1], [0, 0, 1, 1], [], []>} : vector<8x32xf32>, vector<32x128xf32>, vector<8x128xf32> -> vector<8x128xf32>
    %68 = arith.addf %66, %67 : vector<8x128xf32>
    %69 = math.tanh %68 : vector<8x128xf32>
    %70 = vector.broadcast %1 : vector<1x128xf32> to vector<8x128xf32>
    %71 = arith.mulf %69, %70 : vector<8x128xf32>
    %72 = vector.broadcast %2 : vector<1x128xf32> to vector<8x128xf32>
    %73 = arith.addf %71, %72 : vector<8x128xf32>
    %74 = vector.extract_strided_slice %73 {offsets = [0, 0], sizes = [8, 32], strides = [1, 1]} : vector<8x128xf32> to vector<8x32xf32>
    %75 = vector.extract_strided_slice %73 {offsets = [0, 32], sizes = [8, 32], strides = [1, 1]} : vector<8x128xf32> to vector<8x32xf32>
    %76 = vector.extract_strided_slice %73 {offsets = [0, 64], sizes = [8, 32], strides = [1, 1]} : vector<8x128xf32> to vector<8x32xf32>
    %77 = vector.extract_strided_slice %73 {offsets = [0, 96], sizes = [8, 32], strides = [1, 1]} : vector<8x128xf32> to vector<8x32xf32>
    %78 = arith.mulf %75, %62 : vector<8x32xf32>
    %79 = arith.mulf %74, %76 : vector<8x32xf32>
    %80 = arith.addf %78, %79 : vector<8x32xf32>
    %81 = math.tanh %80 : vector<8x32xf32>
    %82 = arith.mulf %77, %81 : vector<8x32xf32>
    %c24 = arith.constant 24 : index
    %c0_17 = arith.constant 0 : index
    %83 = vector.load %arg4[%c24, %c0_17] : memref<64x32xf32, #tpu.memory_space<vmem>>, vector<8x32xf32>
    tpu.vector_store %arg4[%c24, %c0_17], %82 {strides = array<i32>} : memref<64x32xf32, #tpu.memory_space<vmem>>, vector<8x32xf32>,
    %84 = vector.extract_strided_slice %9 {offsets = [32, 0], sizes = [8, 128], strides = [1, 1]} : vector<64x128xf32> to vector<8x128xf32>
    %cst_18 = arith.constant dense<0.000000e+00> : vector<8x128xf32>
    %85 = tpu.matmul %82, %5, %cst_18 {dimension_numbers = #tpu.dot_dimension_numbers<[1], [0], [0], [1], [0, 0, 1, 1], [], []>} : vector<8x32xf32>, vector<32x128xf32>, vector<8x128xf32> -> vector<8x128xf32>
    %86 = arith.addf %84, %85 : vector<8x128xf32>
    %87 = math.tanh %86 : vector<8x128xf32>
    %88 = vector.broadcast %1 : vector<1x128xf32> to vector<8x128xf32>
    %89 = arith.mulf %87, %88 : vector<8x128xf32>
    %90 = vector.broadcast %2 : vector<1x128xf32> to vector<8x128xf32>
    %91 = arith.addf %89, %90 : vector<8x128xf32>
    %92 = vector.extract_strided_slice %91 {offsets = [0, 0], sizes = [8, 32], strides = [1, 1]} : vector<8x128xf32> to vector<8x32xf32>
    %93 = vector.extract_strided_slice %91 {offsets = [0, 32], sizes = [8, 32], strides = [1, 1]} : vector<8x128xf32> to vector<8x32xf32>
    %94 = vector.extract_strided_slice %91 {offsets = [0, 64], sizes = [8, 32], strides = [1, 1]} : vector<8x128xf32> to vector<8x32xf32>
    %95 = vector.extract_strided_slice %91 {offsets = [0, 96], sizes = [8, 32], strides = [1, 1]} : vector<8x128xf32> to vector<8x32xf32>
    %96 = arith.mulf %93, %80 : vector<8x32xf32>
    %97 = arith.mulf %92, %94 : vector<8x32xf32>
    %98 = arith.addf %96, %97 : vector<8x32xf32>
    %99 = math.tanh %98 : vector<8x32xf32>
    %100 = arith.mulf %95, %99 : vector<8x32xf32>
    %c32 = arith.constant 32 : index
    %c0_19 = arith.constant 0 : index
    %101 = vector.load %arg4[%c32, %c0_19] : memref<64x32xf32, #tpu.memory_space<vmem>>, vector<8x32xf32>
    tpu.vector_store %arg4[%c32, %c0_19], %100 {strides = array<i32>} : memref<64x32xf32, #tpu.memory_space<vmem>>, vector<8x32xf32>,
    %102 = vector.extract_strided_slice %9 {offsets = [40, 0], sizes = [8, 128], strides = [1, 1]} : vector<64x128xf32> to vector<8x128xf32>
    %cst_20 = arith.constant dense<0.000000e+00> : vector<8x128xf32>
    %103 = tpu.matmul %100, %5, %cst_20 {dimension_numbers = #tpu.dot_dimension_numbers<[1], [0], [0], [1], [0, 0, 1, 1], [], []>} : vector<8x32xf32>, vector<32x128xf32>, vector<8x128xf32> -> vector<8x128xf32>
    %104 = arith.addf %102, %103 : vector<8x128xf32>
    %105 = math.tanh %104 : vector<8x128xf32>
    %106 = vector.broadcast %1 : vector<1x128xf32> to vector<8x128xf32>
    %107 = arith.mulf %105, %106 : vector<8x128xf32>
    %108 = vector.broadcast %2 : vector<1x128xf32> to vector<8x128xf32>
    %109 = arith.addf %107, %108 : vector<8x128xf32>
    %110 = vector.extract_strided_slice %109 {offsets = [0, 0], sizes = [8, 32], strides = [1, 1]} : vector<8x128xf32> to vector<8x32xf32>
    %111 = vector.extract_strided_slice %109 {offsets = [0, 32], sizes = [8, 32], strides = [1, 1]} : vector<8x128xf32> to vector<8x32xf32>
    %112 = vector.extract_strided_slice %109 {offsets = [0, 64], sizes = [8, 32], strides = [1, 1]} : vector<8x128xf32> to vector<8x32xf32>
    %113 = vector.extract_strided_slice %109 {offsets = [0, 96], sizes = [8, 32], strides = [1, 1]} : vector<8x128xf32> to vector<8x32xf32>
    %114 = arith.mulf %111, %98 : vector<8x32xf32>
    %115 = arith.mulf %110, %112 : vector<8x32xf32>
    %116 = arith.addf %114, %115 : vector<8x32xf32>
    %117 = math.tanh %116 : vector<8x32xf32>
    %118 = arith.mulf %113, %117 : vector<8x32xf32>
    %c40 = arith.constant 40 : index
    %c0_21 = arith.constant 0 : index
    %119 = vector.load %arg4[%c40, %c0_21] : memref<64x32xf32, #tpu.memory_space<vmem>>, vector<8x32xf32>
    tpu.vector_store %arg4[%c40, %c0_21], %118 {strides = array<i32>} : memref<64x32xf32, #tpu.memory_space<vmem>>, vector<8x32xf32>,
    %120 = vector.extract_strided_slice %9 {offsets = [48, 0], sizes = [8, 128], strides = [1, 1]} : vector<64x128xf32> to vector<8x128xf32>
    %cst_22 = arith.constant dense<0.000000e+00> : vector<8x128xf32>
    %121 = tpu.matmul %118, %5, %cst_22 {dimension_numbers = #tpu.dot_dimension_numbers<[1], [0], [0], [1], [0, 0, 1, 1], [], []>} : vector<8x32xf32>, vector<32x128xf32>, vector<8x128xf32> -> vector<8x128xf32>
    %122 = arith.addf %120, %121 : vector<8x128xf32>
    %123 = math.tanh %122 : vector<8x128xf32>
    %124 = vector.broadcast %1 : vector<1x128xf32> to vector<8x128xf32>
    %125 = arith.mulf %123, %124 : vector<8x128xf32>
    %126 = vector.broadcast %2 : vector<1x128xf32> to vector<8x128xf32>
    %127 = arith.addf %125, %126 : vector<8x128xf32>
    %128 = vector.extract_strided_slice %127 {offsets = [0, 0], sizes = [8, 32], strides = [1, 1]} : vector<8x128xf32> to vector<8x32xf32>
    %129 = vector.extract_strided_slice %127 {offsets = [0, 32], sizes = [8, 32], strides = [1, 1]} : vector<8x128xf32> to vector<8x32xf32>
    %130 = vector.extract_strided_slice %127 {offsets = [0, 64], sizes = [8, 32], strides = [1, 1]} : vector<8x128xf32> to vector<8x32xf32>
    %131 = vector.extract_strided_slice %127 {offsets = [0, 96], sizes = [8, 32], strides = [1, 1]} : vector<8x128xf32> to vector<8x32xf32>
    %132 = arith.mulf %129, %116 : vector<8x32xf32>
    %133 = arith.mulf %128, %130 : vector<8x32xf32>
    %134 = arith.addf %132, %133 : vector<8x32xf32>
    %135 = math.tanh %134 : vector<8x32xf32>
    %136 = arith.mulf %131, %135 : vector<8x32xf32>
    %c48_23 = arith.constant 48 : index
    %c0_24 = arith.constant 0 : index
    %137 = vector.load %arg4[%c48_23, %c0_24] : memref<64x32xf32, #tpu.memory_space<vmem>>, vector<8x32xf32>
    tpu.vector_store %arg4[%c48_23, %c0_24], %136 {strides = array<i32>} : memref<64x32xf32, #tpu.memory_space<vmem>>, vector<8x32xf32>,
    %138 = vector.extract_strided_slice %9 {offsets = [56, 0], sizes = [8, 128], strides = [1, 1]} : vector<64x128xf32> to vector<8x128xf32>
    %cst_25 = arith.constant dense<0.000000e+00> : vector<8x128xf32>
    %139 = tpu.matmul %136, %5, %cst_25 {dimension_numbers = #tpu.dot_dimension_numbers<[1], [0], [0], [1], [0, 0, 1, 1], [], []>} : vector<8x32xf32>, vector<32x128xf32>, vector<8x128xf32> -> vector<8x128xf32>
    %140 = arith.addf %138, %139 : vector<8x128xf32>
    %141 = math.tanh %140 : vector<8x128xf32>
    %142 = vector.broadcast %1 : vector<1x128xf32> to vector<8x128xf32>
    %143 = arith.mulf %141, %142 : vector<8x128xf32>
    %144 = vector.broadcast %2 : vector<1x128xf32> to vector<8x128xf32>
    %145 = arith.addf %143, %144 : vector<8x128xf32>
    %146 = vector.extract_strided_slice %145 {offsets = [0, 0], sizes = [8, 32], strides = [1, 1]} : vector<8x128xf32> to vector<8x32xf32>
    %147 = vector.extract_strided_slice %145 {offsets = [0, 32], sizes = [8, 32], strides = [1, 1]} : vector<8x128xf32> to vector<8x32xf32>
    %148 = vector.extract_strided_slice %145 {offsets = [0, 64], sizes = [8, 32], strides = [1, 1]} : vector<8x128xf32> to vector<8x32xf32>
    %149 = vector.extract_strided_slice %145 {offsets = [0, 96], sizes = [8, 32], strides = [1, 1]} : vector<8x128xf32> to vector<8x32xf32>
    %150 = arith.mulf %147, %134 : vector<8x32xf32>
    %151 = arith.mulf %146, %148 : vector<8x32xf32>
    %152 = arith.addf %150, %151 : vector<8x32xf32>
    %153 = math.tanh %152 : vector<8x32xf32>
    %154 = arith.mulf %149, %153 : vector<8x32xf32>
    %c56 = arith.constant 56 : index
    %c0_26 = arith.constant 0 : index
    %155 = vector.load %arg4[%c56, %c0_26] : memref<64x32xf32, #tpu.memory_space<vmem>>, vector<8x32xf32>
    tpu.vector_store %arg4[%c56, %c0_26], %154 {strides = array<i32>} : memref<64x32xf32, #tpu.memory_space<vmem>>, vector<8x32xf32>,
    %c0_27 = arith.constant 0 : index
    %c0_28 = arith.constant 0 : index
    %156 = vector.load %arg4[%c0_27, %c0_28] : memref<64x32xf32, #tpu.memory_space<vmem>>, vector<64x32xf32>
    %c56_29 = arith.constant 56 : index
    %c0_30 = arith.constant 0 : index
    %157 = vector.load %arg2[%c56_29, %c0_30] : memref<920x128xf32, #tpu.memory_space<vmem>>, vector<32x128xf32>
    %c88 = arith.constant 88 : index
    %c0_31 = arith.constant 0 : index
    %158 = vector.load %arg2[%c88, %c0_31] : memref<920x128xf32, #tpu.memory_space<vmem>>, vector<32x128xf32>
    %c120 = arith.constant 120 : index
    %c0_32 = arith.constant 0 : index
    %159 = vector.load %arg2[%c120, %c0_32] : memref<920x128xf32, #tpu.memory_space<vmem>>, vector<1x128xf32>
    %cst_33 = arith.constant dense<0.000000e+00> : vector<64x128xf32>
    %160 = tpu.matmul %156, %157, %cst_33 {dimension_numbers = #tpu.dot_dimension_numbers<[1], [0], [0], [1], [0, 0, 1, 1], [], []>} : vector<64x32xf32>, vector<32x128xf32>, vector<64x128xf32> -> vector<64x128xf32>
    %161 = vector.broadcast %159 : vector<1x128xf32> to vector<64x128xf32>
    %162 = arith.addf %160, %161 : vector<64x128xf32>
    %cst_34 = arith.constant 0.000000e+00 : f32
    %163 = vector.broadcast %cst_34 : f32 to vector<8x32xf32>
    %cst_35 = arith.constant 0.000000e+00 : f32
    %164 = vector.broadcast %cst_35 : f32 to vector<8x32xf32>
    %165 = vector.extract_strided_slice %162 {offsets = [0, 0], sizes = [8, 128], strides = [1, 1]} : vector<64x128xf32> to vector<8x128xf32>
    %cst_36 = arith.constant dense<0.000000e+00> : vector<8x128xf32>
    %166 = tpu.matmul %163, %158, %cst_36 {dimension_numbers = #tpu.dot_dimension_numbers<[1], [0], [0], [1], [0, 0, 1, 1], [], []>} : vector<8x32xf32>, vector<32x128xf32>, vector<8x128xf32> -> vector<8x128xf32>
    %167 = arith.addf %165, %166 : vector<8x128xf32>
    %168 = math.tanh %167 : vector<8x128xf32>
    %169 = vector.broadcast %1 : vector<1x128xf32> to vector<8x128xf32>
    %170 = arith.mulf %168, %169 : vector<8x128xf32>
    %171 = vector.broadcast %2 : vector<1x128xf32> to vector<8x128xf32>
    %172 = arith.addf %170, %171 : vector<8x128xf32>
    %173 = vector.extract_strided_slice %172 {offsets = [0, 0], sizes = [8, 32], strides = [1, 1]} : vector<8x128xf32> to vector<8x32xf32>
    %174 = vector.extract_strided_slice %172 {offsets = [0, 32], sizes = [8, 32], strides = [1, 1]} : vector<8x128xf32> to vector<8x32xf32>
    %175 = vector.extract_strided_slice %172 {offsets = [0, 64], sizes = [8, 32], strides = [1, 1]} : vector<8x128xf32> to vector<8x32xf32>
    %176 = vector.extract_strided_slice %172 {offsets = [0, 96], sizes = [8, 32], strides = [1, 1]} : vector<8x128xf32> to vector<8x32xf32>
    %177 = arith.mulf %174, %164 : vector<8x32xf32>
    %178 = arith.mulf %173, %175 : vector<8x32xf32>
    %179 = arith.addf %177, %178 : vector<8x32xf32>
    %180 = math.tanh %179 : vector<8x32xf32>
    %181 = arith.mulf %176, %180 : vector<8x32xf32>
    %c0_37 = arith.constant 0 : index
    %c0_38 = arith.constant 0 : index
    %182 = vector.load %arg4[%c0_37, %c0_38] : memref<64x32xf32, #tpu.memory_space<vmem>>, vector<8x32xf32>
    tpu.vector_store %arg4[%c0_37, %c0_38], %181 {strides = array<i32>} : memref<64x32xf32, #tpu.memory_space<vmem>>, vector<8x32xf32>,
    %183 = vector.extract_strided_slice %162 {offsets = [8, 0], sizes = [8, 128], strides = [1, 1]} : vector<64x128xf32> to vector<8x128xf32>
    %cst_39 = arith.constant dense<0.000000e+00> : vector<8x128xf32>
    %184 = tpu.matmul %181, %158, %cst_39 {dimension_numbers = #tpu.dot_dimension_numbers<[1], [0], [0], [1], [0, 0, 1, 1], [], []>} : vector<8x32xf32>, vector<32x128xf32>, vector<8x128xf32> -> vector<8x128xf32>
    %185 = arith.addf %183, %184 : vector<8x128xf32>
    %186 = math.tanh %185 : vector<8x128xf32>
    %187 = vector.broadcast %1 : vector<1x128xf32> to vector<8x128xf32>
    %188 = arith.mulf %186, %187 : vector<8x128xf32>
    %189 = vector.broadcast %2 : vector<1x128xf32> to vector<8x128xf32>
    %190 = arith.addf %188, %189 : vector<8x128xf32>
    %191 = vector.extract_strided_slice %190 {offsets = [0, 0], sizes = [8, 32], strides = [1, 1]} : vector<8x128xf32> to vector<8x32xf32>
    %192 = vector.extract_strided_slice %190 {offsets = [0, 32], sizes = [8, 32], strides = [1, 1]} : vector<8x128xf32> to vector<8x32xf32>
    %193 = vector.extract_strided_slice %190 {offsets = [0, 64], sizes = [8, 32], strides = [1, 1]} : vector<8x128xf32> to vector<8x32xf32>
    %194 = vector.extract_strided_slice %190 {offsets = [0, 96], sizes = [8, 32], strides = [1, 1]} : vector<8x128xf32> to vector<8x32xf32>
    %195 = arith.mulf %192, %179 : vector<8x32xf32>
    %196 = arith.mulf %191, %193 : vector<8x32xf32>
    %197 = arith.addf %195, %196 : vector<8x32xf32>
    %198 = math.tanh %197 : vector<8x32xf32>
    %199 = arith.mulf %194, %198 : vector<8x32xf32>
    %c8_40 = arith.constant 8 : index
    %c0_41 = arith.constant 0 : index
    %200 = vector.load %arg4[%c8_40, %c0_41] : memref<64x32xf32, #tpu.memory_space<vmem>>, vector<8x32xf32>
    tpu.vector_store %arg4[%c8_40, %c0_41], %199 {strides = array<i32>} : memref<64x32xf32, #tpu.memory_space<vmem>>, vector<8x32xf32>,
    %201 = vector.extract_strided_slice %162 {offsets = [16, 0], sizes = [8, 128], strides = [1, 1]} : vector<64x128xf32> to vector<8x128xf32>
    %cst_42 = arith.constant dense<0.000000e+00> : vector<8x128xf32>
    %202 = tpu.matmul %199, %158, %cst_42 {dimension_numbers = #tpu.dot_dimension_numbers<[1], [0], [0], [1], [0, 0, 1, 1], [], []>} : vector<8x32xf32>, vector<32x128xf32>, vector<8x128xf32> -> vector<8x128xf32>
    %203 = arith.addf %201, %202 : vector<8x128xf32>
    %204 = math.tanh %203 : vector<8x128xf32>
    %205 = vector.broadcast %1 : vector<1x128xf32> to vector<8x128xf32>
    %206 = arith.mulf %204, %205 : vector<8x128xf32>
    %207 = vector.broadcast %2 : vector<1x128xf32> to vector<8x128xf32>
    %208 = arith.addf %206, %207 : vector<8x128xf32>
    %209 = vector.extract_strided_slice %208 {offsets = [0, 0], sizes = [8, 32], strides = [1, 1]} : vector<8x128xf32> to vector<8x32xf32>
    %210 = vector.extract_strided_slice %208 {offsets = [0, 32], sizes = [8, 32], strides = [1, 1]} : vector<8x128xf32> to vector<8x32xf32>
    %211 = vector.extract_strided_slice %208 {offsets = [0, 64], sizes = [8, 32], strides = [1, 1]} : vector<8x128xf32> to vector<8x32xf32>
    %212 = vector.extract_strided_slice %208 {offsets = [0, 96], sizes = [8, 32], strides = [1, 1]} : vector<8x128xf32> to vector<8x32xf32>
    %213 = arith.mulf %210, %197 : vector<8x32xf32>
    %214 = arith.mulf %209, %211 : vector<8x32xf32>
    %215 = arith.addf %213, %214 : vector<8x32xf32>
    %216 = math.tanh %215 : vector<8x32xf32>
    %217 = arith.mulf %212, %216 : vector<8x32xf32>
    %c16_43 = arith.constant 16 : index
    %c0_44 = arith.constant 0 : index
    %218 = vector.load %arg4[%c16_43, %c0_44] : memref<64x32xf32, #tpu.memory_space<vmem>>, vector<8x32xf32>
    tpu.vector_store %arg4[%c16_43, %c0_44], %217 {strides = array<i32>} : memref<64x32xf32, #tpu.memory_space<vmem>>, vector<8x32xf32>,
    %219 = vector.extract_strided_slice %162 {offsets = [24, 0], sizes = [8, 128], strides = [1, 1]} : vector<64x128xf32> to vector<8x128xf32>
    %cst_45 = arith.constant dense<0.000000e+00> : vector<8x128xf32>
    %220 = tpu.matmul %217, %158, %cst_45 {dimension_numbers = #tpu.dot_dimension_numbers<[1], [0], [0], [1], [0, 0, 1, 1], [], []>} : vector<8x32xf32>, vector<32x128xf32>, vector<8x128xf32> -> vector<8x128xf32>
    %221 = arith.addf %219, %220 : vector<8x128xf32>
    %222 = math.tanh %221 : vector<8x128xf32>
    %223 = vector.broadcast %1 : vector<1x128xf32> to vector<8x128xf32>
    %224 = arith.mulf %222, %223 : vector<8x128xf32>
    %225 = vector.broadcast %2 : vector<1x128xf32> to vector<8x128xf32>
    %226 = arith.addf %224, %225 : vector<8x128xf32>
    %227 = vector.extract_strided_slice %226 {offsets = [0, 0], sizes = [8, 32], strides = [1, 1]} : vector<8x128xf32> to vector<8x32xf32>
    %228 = vector.extract_strided_slice %226 {offsets = [0, 32], sizes = [8, 32], strides = [1, 1]} : vector<8x128xf32> to vector<8x32xf32>
    %229 = vector.extract_strided_slice %226 {offsets = [0, 64], sizes = [8, 32], strides = [1, 1]} : vector<8x128xf32> to vector<8x32xf32>
    %230 = vector.extract_strided_slice %226 {offsets = [0, 96], sizes = [8, 32], strides = [1, 1]} : vector<8x128xf32> to vector<8x32xf32>
    %231 = arith.mulf %228, %215 : vector<8x32xf32>
    %232 = arith.mulf %227, %229 : vector<8x32xf32>
    %233 = arith.addf %231, %232 : vector<8x32xf32>
    %234 = math.tanh %233 : vector<8x32xf32>
    %235 = arith.mulf %230, %234 : vector<8x32xf32>
    %c24_46 = arith.constant 24 : index
    %c0_47 = arith.constant 0 : index
    %236 = vector.load %arg4[%c24_46, %c0_47] : memref<64x32xf32, #tpu.memory_space<vmem>>, vector<8x32xf32>
    tpu.vector_store %arg4[%c24_46, %c0_47], %235 {strides = array<i32>} : memref<64x32xf32, #tpu.memory_space<vmem>>, vector<8x32xf32>,
    %237 = vector.extract_strided_slice %162 {offsets = [32, 0], sizes = [8, 128], strides = [1, 1]} : vector<64x128xf32> to vector<8x128xf32>
    %cst_48 = arith.constant dense<0.000000e+00> : vector<8x128xf32>
    %238 = tpu.matmul %235, %158, %cst_48 {dimension_numbers = #tpu.dot_dimension_numbers<[1], [0], [0], [1], [0, 0, 1, 1], [], []>} : vector<8x32xf32>, vector<32x128xf32>, vector<8x128xf32> -> vector<8x128xf32>
    %239 = arith.addf %237, %238 : vector<8x128xf32>
    %240 = math.tanh %239 : vector<8x128xf32>
    %241 = vector.broadcast %1 : vector<1x128xf32> to vector<8x128xf32>
    %242 = arith.mulf %240, %241 : vector<8x128xf32>
    %243 = vector.broadcast %2 : vector<1x128xf32> to vector<8x128xf32>
    %244 = arith.addf %242, %243 : vector<8x128xf32>
    %245 = vector.extract_strided_slice %244 {offsets = [0, 0], sizes = [8, 32], strides = [1, 1]} : vector<8x128xf32> to vector<8x32xf32>
    %246 = vector.extract_strided_slice %244 {offsets = [0, 32], sizes = [8, 32], strides = [1, 1]} : vector<8x128xf32> to vector<8x32xf32>
    %247 = vector.extract_strided_slice %244 {offsets = [0, 64], sizes = [8, 32], strides = [1, 1]} : vector<8x128xf32> to vector<8x32xf32>
    %248 = vector.extract_strided_slice %244 {offsets = [0, 96], sizes = [8, 32], strides = [1, 1]} : vector<8x128xf32> to vector<8x32xf32>
    %249 = arith.mulf %246, %233 : vector<8x32xf32>
    %250 = arith.mulf %245, %247 : vector<8x32xf32>
    %251 = arith.addf %249, %250 : vector<8x32xf32>
    %252 = math.tanh %251 : vector<8x32xf32>
    %253 = arith.mulf %248, %252 : vector<8x32xf32>
    %c32_49 = arith.constant 32 : index
    %c0_50 = arith.constant 0 : index
    %254 = vector.load %arg4[%c32_49, %c0_50] : memref<64x32xf32, #tpu.memory_space<vmem>>, vector<8x32xf32>
    tpu.vector_store %arg4[%c32_49, %c0_50], %253 {strides = array<i32>} : memref<64x32xf32, #tpu.memory_space<vmem>>, vector<8x32xf32>,
    %255 = vector.extract_strided_slice %162 {offsets = [40, 0], sizes = [8, 128], strides = [1, 1]} : vector<64x128xf32> to vector<8x128xf32>
    %cst_51 = arith.constant dense<0.000000e+00> : vector<8x128xf32>
    %256 = tpu.matmul %253, %158, %cst_51 {dimension_numbers = #tpu.dot_dimension_numbers<[1], [0], [0], [1], [0, 0, 1, 1], [], []>} : vector<8x32xf32>, vector<32x128xf32>, vector<8x128xf32> -> vector<8x128xf32>
    %257 = arith.addf %255, %256 : vector<8x128xf32>
    %258 = math.tanh %257 : vector<8x128xf32>
    %259 = vector.broadcast %1 : vector<1x128xf32> to vector<8x128xf32>
    %260 = arith.mulf %258, %259 : vector<8x128xf32>
    %261 = vector.broadcast %2 : vector<1x128xf32> to vector<8x128xf32>
    %262 = arith.addf %260, %261 : vector<8x128xf32>
    %263 = vector.extract_strided_slice %262 {offsets = [0, 0], sizes = [8, 32], strides = [1, 1]} : vector<8x128xf32> to vector<8x32xf32>
    %264 = vector.extract_strided_slice %262 {offsets = [0, 32], sizes = [8, 32], strides = [1, 1]} : vector<8x128xf32> to vector<8x32xf32>
    %265 = vector.extract_strided_slice %262 {offsets = [0, 64], sizes = [8, 32], strides = [1, 1]} : vector<8x128xf32> to vector<8x32xf32>
    %266 = vector.extract_strided_slice %262 {offsets = [0, 96], sizes = [8, 32], strides = [1, 1]} : vector<8x128xf32> to vector<8x32xf32>
    %267 = arith.mulf %264, %251 : vector<8x32xf32>
    %268 = arith.mulf %263, %265 : vector<8x32xf32>
    %269 = arith.addf %267, %268 : vector<8x32xf32>
    %270 = math.tanh %269 : vector<8x32xf32>
    %271 = arith.mulf %266, %270 : vector<8x32xf32>
    %c40_52 = arith.constant 40 : index
    %c0_53 = arith.constant 0 : index
    %272 = vector.load %arg4[%c40_52, %c0_53] : memref<64x32xf32, #tpu.memory_space<vmem>>, vector<8x32xf32>
    tpu.vector_store %arg4[%c40_52, %c0_53], %271 {strides = array<i32>} : memref<64x32xf32, #tpu.memory_space<vmem>>, vector<8x32xf32>,
    %273 = vector.extract_strided_slice %162 {offsets = [48, 0], sizes = [8, 128], strides = [1, 1]} : vector<64x128xf32> to vector<8x128xf32>
    %cst_54 = arith.constant dense<0.000000e+00> : vector<8x128xf32>
    %274 = tpu.matmul %271, %158, %cst_54 {dimension_numbers = #tpu.dot_dimension_numbers<[1], [0], [0], [1], [0, 0, 1, 1], [], []>} : vector<8x32xf32>, vector<32x128xf32>, vector<8x128xf32> -> vector<8x128xf32>
    %275 = arith.addf %273, %274 : vector<8x128xf32>
    %276 = math.tanh %275 : vector<8x128xf32>
    %277 = vector.broadcast %1 : vector<1x128xf32> to vector<8x128xf32>
    %278 = arith.mulf %276, %277 : vector<8x128xf32>
    %279 = vector.broadcast %2 : vector<1x128xf32> to vector<8x128xf32>
    %280 = arith.addf %278, %279 : vector<8x128xf32>
    %281 = vector.extract_strided_slice %280 {offsets = [0, 0], sizes = [8, 32], strides = [1, 1]} : vector<8x128xf32> to vector<8x32xf32>
    %282 = vector.extract_strided_slice %280 {offsets = [0, 32], sizes = [8, 32], strides = [1, 1]} : vector<8x128xf32> to vector<8x32xf32>
    %283 = vector.extract_strided_slice %280 {offsets = [0, 64], sizes = [8, 32], strides = [1, 1]} : vector<8x128xf32> to vector<8x32xf32>
    %284 = vector.extract_strided_slice %280 {offsets = [0, 96], sizes = [8, 32], strides = [1, 1]} : vector<8x128xf32> to vector<8x32xf32>
    %285 = arith.mulf %282, %269 : vector<8x32xf32>
    %286 = arith.mulf %281, %283 : vector<8x32xf32>
    %287 = arith.addf %285, %286 : vector<8x32xf32>
    %288 = math.tanh %287 : vector<8x32xf32>
    %289 = arith.mulf %284, %288 : vector<8x32xf32>
    %c48_55 = arith.constant 48 : index
    %c0_56 = arith.constant 0 : index
    %290 = vector.load %arg4[%c48_55, %c0_56] : memref<64x32xf32, #tpu.memory_space<vmem>>, vector<8x32xf32>
    tpu.vector_store %arg4[%c48_55, %c0_56], %289 {strides = array<i32>} : memref<64x32xf32, #tpu.memory_space<vmem>>, vector<8x32xf32>,
    %291 = vector.extract_strided_slice %162 {offsets = [56, 0], sizes = [8, 128], strides = [1, 1]} : vector<64x128xf32> to vector<8x128xf32>
    %cst_57 = arith.constant dense<0.000000e+00> : vector<8x128xf32>
    %292 = tpu.matmul %289, %158, %cst_57 {dimension_numbers = #tpu.dot_dimension_numbers<[1], [0], [0], [1], [0, 0, 1, 1], [], []>} : vector<8x32xf32>, vector<32x128xf32>, vector<8x128xf32> -> vector<8x128xf32>
    %293 = arith.addf %291, %292 : vector<8x128xf32>
    %294 = math.tanh %293 : vector<8x128xf32>
    %295 = vector.broadcast %1 : vector<1x128xf32> to vector<8x128xf32>
    %296 = arith.mulf %294, %295 : vector<8x128xf32>
    %297 = vector.broadcast %2 : vector<1x128xf32> to vector<8x128xf32>
    %298 = arith.addf %296, %297 : vector<8x128xf32>
    %299 = vector.extract_strided_slice %298 {offsets = [0, 0], sizes = [8, 32], strides = [1, 1]} : vector<8x128xf32> to vector<8x32xf32>
    %300 = vector.extract_strided_slice %298 {offsets = [0, 32], sizes = [8, 32], strides = [1, 1]} : vector<8x128xf32> to vector<8x32xf32>
    %301 = vector.extract_strided_slice %298 {offsets = [0, 64], sizes = [8, 32], strides = [1, 1]} : vector<8x128xf32> to vector<8x32xf32>
    %302 = vector.extract_strided_slice %298 {offsets = [0, 96], sizes = [8, 32], strides = [1, 1]} : vector<8x128xf32> to vector<8x32xf32>
    %303 = arith.mulf %300, %287 : vector<8x32xf32>
    %304 = arith.mulf %299, %301 : vector<8x32xf32>
    %305 = arith.addf %303, %304 : vector<8x32xf32>
    %306 = math.tanh %305 : vector<8x32xf32>
    %307 = arith.mulf %302, %306 : vector<8x32xf32>
    %c56_58 = arith.constant 56 : index
    %c0_59 = arith.constant 0 : index
    %308 = vector.load %arg4[%c56_58, %c0_59] : memref<64x32xf32, #tpu.memory_space<vmem>>, vector<8x32xf32>
    tpu.vector_store %arg4[%c56_58, %c0_59], %307 {strides = array<i32>} : memref<64x32xf32, #tpu.memory_space<vmem>>, vector<8x32xf32>,
    %c0_60 = arith.constant 0 : index
    %c0_61 = arith.constant 0 : index
    %309 = vector.load %arg4[%c0_60, %c0_61] : memref<64x32xf32, #tpu.memory_space<vmem>>, vector<64x32xf32>
    %310 = vector.extract_strided_slice %309 {offsets = [56, 0], sizes = [8, 32], strides = [1, 1]} : vector<64x32xf32> to vector<8x32xf32>
    %c136 = arith.constant 136 : index
    %c0_62 = arith.constant 0 : index
    %311 = vector.load %arg2[%c136, %c0_62] : memref<920x128xf32, #tpu.memory_space<vmem>>, vector<32x64xf32>
    %cst_63 = arith.constant dense<0.000000e+00> : vector<8x64xf32>
    %312 = tpu.matmul %310, %311, %cst_63 {dimension_numbers = #tpu.dot_dimension_numbers<[1], [0], [0], [1], [0, 0, 1, 1], [], []>} : vector<8x32xf32>, vector<32x64xf32>, vector<8x64xf32> -> vector<8x64xf32>
    %c168 = arith.constant 168 : index
    %c0_64 = arith.constant 0 : index
    %313 = vector.load %arg2[%c168, %c0_64] : memref<920x128xf32, #tpu.memory_space<vmem>>, vector<1x64xf32>
    %314 = vector.broadcast %313 : vector<1x64xf32> to vector<8x64xf32>
    %315 = arith.addf %312, %314 : vector<8x64xf32>
    %c176 = arith.constant 176 : index
    %c0_65 = arith.constant 0 : index
    %316 = vector.load %arg2[%c176, %c0_65] : memref<920x128xf32, #tpu.memory_space<vmem>>, vector<32x64xf32>
    %cst_66 = arith.constant dense<0.000000e+00> : vector<64x64xf32>
    %317 = tpu.matmul %309, %316, %cst_66 {dimension_numbers = #tpu.dot_dimension_numbers<[1], [0], [0], [1], [0, 0, 1, 1], [], []>} : vector<64x32xf32>, vector<32x64xf32>, vector<64x64xf32> -> vector<64x64xf32>
    %c208 = arith.constant 208 : index
    %c0_67 = arith.constant 0 : index
    %318 = vector.load %arg2[%c208, %c0_67] : memref<920x128xf32, #tpu.memory_space<vmem>>, vector<1x64xf32>
    %319 = vector.broadcast %318 : vector<1x64xf32> to vector<64x64xf32>
    %320 = arith.addf %317, %319 : vector<64x64xf32>
    %321 = tpu.concatenate %315, %315, %315, %315, %315, %315, %315, %315 in 0 : vector<8x64xf32>, vector<8x64xf32>, vector<8x64xf32>, vector<8x64xf32>, vector<8x64xf32>, vector<8x64xf32>, vector<8x64xf32>, vector<8x64xf32> -> vector<64x64xf32>
    %322 = arith.mulf %320, %321 : vector<64x64xf32>
    %c216 = arith.constant 216 : index
    %c0_68 = arith.constant 0 : index
    %323 = vector.load %arg2[%c216, %c0_68] : memref<920x128xf32, #tpu.memory_space<vmem>>, vector<64x4xf32>
    %cst_69 = arith.constant dense<0.000000e+00> : vector<64x4xf32>
    %324 = tpu.matmul %322, %323, %cst_69 {dimension_numbers = #tpu.dot_dimension_numbers<[1], [0], [0], [1], [0, 0, 1, 1], [], []>} : vector<64x64xf32>, vector<64x4xf32>, vector<64x4xf32> -> vector<64x4xf32>
    %325 = vector.extract_strided_slice %324 {offsets = [0, 0], sizes = [32, 4], strides = [1, 1]} : vector<64x4xf32> to vector<32x4xf32>
    %326 = vector.extract_strided_slice %324 {offsets = [32, 0], sizes = [32, 4], strides = [1, 1]} : vector<64x4xf32> to vector<32x4xf32>
    %327 = arith.maximumf %325, %326 : vector<32x4xf32>
    %328 = vector.extract_strided_slice %327 {offsets = [0, 0], sizes = [16, 4], strides = [1, 1]} : vector<32x4xf32> to vector<16x4xf32>
    %329 = vector.extract_strided_slice %327 {offsets = [16, 0], sizes = [16, 4], strides = [1, 1]} : vector<32x4xf32> to vector<16x4xf32>
    %330 = arith.maximumf %328, %329 : vector<16x4xf32>
    %331 = vector.extract_strided_slice %330 {offsets = [0, 0], sizes = [8, 4], strides = [1, 1]} : vector<16x4xf32> to vector<8x4xf32>
    %332 = vector.extract_strided_slice %330 {offsets = [8, 0], sizes = [8, 4], strides = [1, 1]} : vector<16x4xf32> to vector<8x4xf32>
    %333 = arith.maximumf %331, %332 : vector<8x4xf32>
    %334 = tpu.concatenate %333, %333, %333, %333, %333, %333, %333, %333 in 0 : vector<8x4xf32>, vector<8x4xf32>, vector<8x4xf32>, vector<8x4xf32>, vector<8x4xf32>, vector<8x4xf32>, vector<8x4xf32>, vector<8x4xf32> -> vector<64x4xf32>
    %335 = arith.subf %324, %334 : vector<64x4xf32>
    %336 = math.exp %335 : vector<64x4xf32>
    %c288 = arith.constant 288 : index
    %c0_70 = arith.constant 0 : index
    %337 = vector.load %arg2[%c288, %c0_70] : memref<920x128xf32, #tpu.memory_space<vmem>>, vector<8x64xf32>
    %cst_71 = arith.constant dense<0.000000e+00> : vector<8x4xf32>
    %338 = tpu.matmul %337, %336, %cst_71 {dimension_numbers = #tpu.dot_dimension_numbers<[1], [0], [0], [1], [0, 0, 1, 1], [], []>} : vector<8x64xf32>, vector<64x4xf32>, vector<8x4xf32> -> vector<8x4xf32>
    %339 = tpu.reciprocal %338 {approx = true} : vector<8x4xf32> -> vector<8x4xf32>
    %340 = arith.mulf %338, %339 : vector<8x4xf32>
    %cst_72 = arith.constant 2.000000e+00 : f32
    %341 = vector.broadcast %cst_72 : f32 to vector<8x4xf32>
    %342 = arith.subf %341, %340 : vector<8x4xf32>
    %343 = arith.mulf %339, %342 : vector<8x4xf32>
    %c280 = arith.constant 280 : index
    %c0_73 = arith.constant 0 : index
    %344 = vector.load %arg2[%c280, %c0_73] : memref<920x128xf32, #tpu.memory_space<vmem>>, vector<4x64xf32>
    %cst_74 = arith.constant dense<0.000000e+00> : vector<64x64xf32>
    %345 = tpu.matmul %336, %344, %cst_74 {dimension_numbers = #tpu.dot_dimension_numbers<[1], [0], [0], [1], [0, 0, 1, 1], [], []>} : vector<64x4xf32>, vector<4x64xf32>, vector<64x64xf32> -> vector<64x64xf32>
    %346 = arith.mulf %345, %320 : vector<64x64xf32>
    %cst_75 = arith.constant dense<0.000000e+00> : vector<8x64xf32>
    %347 = tpu.matmul %337, %346, %cst_75 {dimension_numbers = #tpu.dot_dimension_numbers<[1], [0], [0], [1], [0, 0, 1, 1], [], []>} : vector<8x64xf32>, vector<64x64xf32>, vector<8x64xf32> -> vector<8x64xf32>
    %cst_76 = arith.constant dense<0.000000e+00> : vector<8x64xf32>
    %348 = tpu.matmul %343, %344, %cst_76 {dimension_numbers = #tpu.dot_dimension_numbers<[1], [0], [0], [1], [0, 0, 1, 1], [], []>} : vector<8x4xf32>, vector<4x64xf32>, vector<8x64xf32> -> vector<8x64xf32>
    %349 = arith.mulf %347, %348 : vector<8x64xf32>
    %c296 = arith.constant 296 : index
    %c0_77 = arith.constant 0 : index
    %350 = vector.load %arg2[%c296, %c0_77] : memref<920x128xf32, #tpu.memory_space<vmem>>, vector<64x32xf32>
    %cst_78 = arith.constant dense<0.000000e+00> : vector<8x32xf32>
    %351 = tpu.matmul %349, %350, %cst_78 {dimension_numbers = #tpu.dot_dimension_numbers<[1], [0], [0], [1], [0, 0, 1, 1], [], []>} : vector<8x64xf32>, vector<64x32xf32>, vector<8x32xf32> -> vector<8x32xf32>
    %c360 = arith.constant 360 : index
    %c0_79 = arith.constant 0 : index
    %352 = vector.load %arg2[%c360, %c0_79] : memref<920x128xf32, #tpu.memory_space<vmem>>, vector<1x32xf32>
    %353 = vector.broadcast %352 : vector<1x32xf32> to vector<8x32xf32>
    %354 = arith.addf %351, %353 : vector<8x32xf32>
    %cst_80 = arith.constant 0.000000e+00 : f32
    %355 = vector.broadcast %cst_80 : f32 to vector<8x32xf32>
    %356 = arith.maximumf %354, %355 : vector<8x32xf32>
    %c912 = arith.constant 912 : index
    %c0_81 = arith.constant 0 : index
    %357 = vector.load %arg2[%c912, %c0_81] : memref<920x128xf32, #tpu.memory_space<vmem>>, vector<1x128xf32>
    %c368 = arith.constant 368 : index
    %c0_82 = arith.constant 0 : index
    %358 = vector.load %arg2[%c368, %c0_82] : memref<920x128xf32, #tpu.memory_space<vmem>>, vector<32x128xf32>
    %cst_83 = arith.constant dense<0.000000e+00> : vector<8x128xf32>
    %359 = tpu.matmul %356, %358, %cst_83 {dimension_numbers = #tpu.dot_dimension_numbers<[1], [0], [0], [1], [0, 0, 1, 1], [], []>} : vector<8x32xf32>, vector<32x128xf32>, vector<8x128xf32> -> vector<8x128xf32>
    %360 = vector.broadcast %357 : vector<1x128xf32> to vector<8x128xf32>
    %361 = arith.addf %359, %360 : vector<8x128xf32>
    %cst_84 = arith.constant 0.000000e+00 : f32
    %362 = vector.broadcast %cst_84 : f32 to vector<8x128xf32>
    %363 = arith.maximumf %361, %362 : vector<8x128xf32>
    %c913 = arith.constant 913 : index
    %c0_85 = arith.constant 0 : index
    %364 = vector.load %arg2[%c913, %c0_85] : memref<920x128xf32, #tpu.memory_space<vmem>>, vector<1x128xf32>
    %c400 = arith.constant 400 : index
    %c0_86 = arith.constant 0 : index
    %365 = vector.load %arg2[%c400, %c0_86] : memref<920x128xf32, #tpu.memory_space<vmem>>, vector<128x128xf32>
    %cst_87 = arith.constant dense<0.000000e+00> : vector<8x128xf32>
    %366 = tpu.matmul %363, %365, %cst_87 {dimension_numbers = #tpu.dot_dimension_numbers<[1], [0], [0], [1], [0, 0, 1, 1], [], []>} : vector<8x128xf32>, vector<128x128xf32>, vector<8x128xf32> -> vector<8x128xf32>
    %367 = vector.broadcast %364 : vector<1x128xf32> to vector<8x128xf32>
    %368 = arith.addf %366, %367 : vector<8x128xf32>
    %cst_88 = arith.constant 0.000000e+00 : f32
    %369 = vector.broadcast %cst_88 : f32 to vector<8x128xf32>
    %370 = arith.maximumf %368, %369 : vector<8x128xf32>
    %c914 = arith.constant 914 : index
    %c0_89 = arith.constant 0 : index
    %371 = vector.load %arg2[%c914, %c0_89] : memref<920x128xf32, #tpu.memory_space<vmem>>, vector<1x128xf32>
    %c528 = arith.constant 528 : index
    %c0_90 = arith.constant 0 : index
    %372 = vector.load %arg2[%c528, %c0_90] : memref<920x128xf32, #tpu.memory_space<vmem>>, vector<128x128xf32>
    %cst_91 = arith.constant dense<0.000000e+00> : vector<8x128xf32>
    %373 = tpu.matmul %370, %372, %cst_91 {dimension_numbers = #tpu.dot_dimension_numbers<[1], [0], [0], [1], [0, 0, 1, 1], [], []>} : vector<8x128xf32>, vector<128x128xf32>, vector<8x128xf32> -> vector<8x128xf32>
    %374 = vector.broadcast %371 : vector<1x128xf32> to vector<8x128xf32>
    %375 = arith.addf %373, %374 : vector<8x128xf32>
    %cst_92 = arith.constant 0.000000e+00 : f32
    %376 = vector.broadcast %cst_92 : f32 to vector<8x128xf32>
    %377 = arith.maximumf %375, %376 : vector<8x128xf32>
    %c915 = arith.constant 915 : index
    %c0_93 = arith.constant 0 : index
    %378 = vector.load %arg2[%c915, %c0_93] : memref<920x128xf32, #tpu.memory_space<vmem>>, vector<1x128xf32>
    %c656 = arith.constant 656 : index
    %c0_94 = arith.constant 0 : index
    %379 = vector.load %arg2[%c656, %c0_94] : memref<920x128xf32, #tpu.memory_space<vmem>>, vector<128x128xf32>
    %cst_95 = arith.constant dense<0.000000e+00> : vector<8x128xf32>
    %380 = tpu.matmul %377, %379, %cst_95 {dimension_numbers = #tpu.dot_dimension_numbers<[1], [0], [0], [1], [0, 0, 1, 1], [], []>} : vector<8x128xf32>, vector<128x128xf32>, vector<8x128xf32> -> vector<8x128xf32>
    %381 = vector.broadcast %378 : vector<1x128xf32> to vector<8x128xf32>
    %382 = arith.addf %380, %381 : vector<8x128xf32>
    %cst_96 = arith.constant 0.000000e+00 : f32
    %383 = vector.broadcast %cst_96 : f32 to vector<8x128xf32>
    %384 = arith.maximumf %382, %383 : vector<8x128xf32>
    %c916 = arith.constant 916 : index
    %c0_97 = arith.constant 0 : index
    %385 = vector.load %arg2[%c916, %c0_97] : memref<920x128xf32, #tpu.memory_space<vmem>>, vector<1x128xf32>
    %c784 = arith.constant 784 : index
    %c0_98 = arith.constant 0 : index
    %386 = vector.load %arg2[%c784, %c0_98] : memref<920x128xf32, #tpu.memory_space<vmem>>, vector<128x128xf32>
    %cst_99 = arith.constant dense<0.000000e+00> : vector<8x128xf32>
    %387 = tpu.matmul %384, %386, %cst_99 {dimension_numbers = #tpu.dot_dimension_numbers<[1], [0], [0], [1], [0, 0, 1, 1], [], []>} : vector<8x128xf32>, vector<128x128xf32>, vector<8x128xf32> -> vector<8x128xf32>
    %388 = vector.broadcast %385 : vector<1x128xf32> to vector<8x128xf32>
    %389 = arith.addf %387, %388 : vector<8x128xf32>
    %c0_100 = arith.constant 0 : index
    %c0_101 = arith.constant 0 : index
    %390 = vector.load %arg3[%c0_100, %c0_101] : memref<8x128xf32, #tpu.memory_space<vmem>>, vector<8x128xf32>
    tpu.vector_store %arg3[%c0_100, %c0_101], %389 {strides = array<i32>} : memref<8x128xf32, #tpu.memory_space<vmem>>, vector<8x128xf32>,
    return
  }
  func.func @transform_0(%arg0: i32) -> (i32, i32) {
    %c0_i32 = arith.constant 0 : i32
    %c0_i32_0 = arith.constant 0 : i32
    return %arg0, %c0_i32 : i32, i32
  }
  func.func @transform_1(%arg0: i32) -> (i32, i32) {
    %c0_i32 = arith.constant 0 : i32
    %c0_i32_0 = arith.constant 0 : i32
    %c0_i32_1 = arith.constant 0 : i32
    return %c0_i32, %c0_i32_0 : i32, i32
  }
  func.func @transform_2(%arg0: i32) -> (i32, i32) {
    %c0_i32 = arith.constant 0 : i32
    %c0_i32_0 = arith.constant 0 : i32
    return %arg0, %c0_i32 : i32, i32
  }
}

</mosaic_0001>

<llo_original>
// kernel: tpu_custom_call.1
$region0: #{tpu_custom_call.1}
  #allocation0 [shape = 'u32[]', space=smem, size = 0x4, offset = 0x4, fixed_abs, tag = 'smem constant byte address 0x4 - core index']
  #allocation1 [shape = 'u32[144,128]{1,0:T(1,128)}', space=vmem, size = 0x12000, scoped, tag = 'internal scratch']
  #allocation2 [shape = 'f32[64,32]{1,0:T(8,128)}', space=vmem, size = 0x8000, scoped, tag = 'scratch operand']
  %s0 = inlined_call_operand.vmem [shape: f32[64,16], index: 0, kind: input, shape index: {}]
  %s1 = inlined_call_operand.hbm [shape: f32[920,128], index: 1, kind: input, shape index: {}]
  %s2 = inlined_call_operand.hbm [shape: f32[8,128], index: 2, kind: output, shape index: {}]
  %s3 = sld [smem:[#allocation0]]
  $region22: #{tpu_custom_call.1} parent=0
    _
  %s5 = ssub.s32 1, %s3
  %s6 = scalar_select 0, %s5, %s3
  $region1: #{tpu_custom_call.1} parent=0
    #allocation3 [shape = 'u8[471040]{0}', space=vmem, size = 0x73000, scoped, tag = 'input window, operand 1, single buffered']
    #allocation4 [shape = 's32[1]{0}', space=sflag, size = 0x4, scoped, tag = 'scoped memory for tpu_custom_call.1']
    #allocation5 [shape = 's32[1]{0}', space=sflag, size = 0x4, scoped, tag = 'scoped memory for tpu_custom_call.1']
    #allocation6 [shape = 'u8[4096]{0}', space=vmem, size = 0x1000, scoped, tag = 'output window, operand 0, single buffered']
    %7 = vsyncpa [#allocation4], 0
    %8 = vsyncpa [#allocation5], 0
    // Predicated region
    $region2: #{tpu_custom_call.1} parent=1 // pred_check
      _
    $region3: #{tpu_custom_call.1} parent=1 // pred_check_branch
      %10 = sbr.rel (0) target = $region5
    $region4: #{tpu_custom_call.1} parent=1 // pred_region
      _
    $region5: #{tpu_custom_call.1} parent=1 // pred_fallthru
      _
    // Predicated region
    $region6: #{tpu_custom_call.1} parent=1 // pred_check
      _
    $region7: #{tpu_custom_call.1} parent=1 // pred_check_branch
      %12 = sbr.rel (0) target = $region9
    $region8: #{tpu_custom_call.1} parent=1 // pred_region
      %s14 = ssub.s32 14720, 14720
      %15 = vsyncadd [#allocation4], %s14
      %s16 = sshll.u32 [#allocation3], 4
      %s17 = int_to_ptr.vmem [resolvable:$true] %s16
      %22 = dma.hbm_to_vmem [thread:$0]  %s1, 14720, %s17, [#allocation4], 128, 128, 8
    $region9: #{tpu_custom_call.1} parent=1 // pred_fallthru
      _
    // Predicated region
    $region10: #{tpu_custom_call.1} parent=1 // pred_check
      _
    $region11: #{tpu_custom_call.1} parent=1 // pred_check_branch
      %24 = sbr.rel (0) target = $region13
    $region12: #{tpu_custom_call.1} parent=1 // pred_region
      %25 = dma.done [#allocation4], 14720
    $region13: #{tpu_custom_call.1} parent=1 // pred_fallthru
      _
    %v26 = vld [vmem:[#allocation3 + $0x80] sm:$0x3]
    %v27 = vld [vmem:[%s0] sm:$0xff]
    %v28 = vld [vmem:[%s0 + $0x8] sm:$0xff]
    %v29 = vld [vmem:[%s0 + $0x10] sm:$0xff]
    %v30 = vld [vmem:[%s0 + $0x18] sm:$0xff]
    %v31 = vld [vmem:[%s0 + $0x20] sm:$0xff]
    %v32 = vld [vmem:[%s0 + $0x28] sm:$0xff]
    %v33 = vld [vmem:[%s0 + $0x30] sm:$0xff]
    %v34 = vld [vmem:[%s0 + $0x38] sm:$0xff]
    %v35 = vld [vmem:[#allocation3] sm:$0xff]
    %v36 = vld [vmem:[#allocation3 + $0x8] sm:$0xff]
    %v37 = vld [vmem:[#allocation3 + $0x10] sm:$0xff]
    %v38 = vld [vmem:[#allocation3 + $0x18] sm:$0xff]
    %v39 = vld [vmem:[#allocation3 + $0x20] sm:$0xff]
    %v40 = vld [vmem:[#allocation3 + $0x28] sm:$0xff]
    %v41 = vld [vmem:[#allocation3 + $0x30] sm:$0x1]
    %v42 = vlaneseq
    %v43 = vshrl.u32 %v42, 7
    %v44 = vsub.s32 0, %v43
    %v45 = vrot.slane %v41, %v44
    %vm46 = vcmask 130048
    %v48 = vsel %vm46, %v27, 0
    %v51 = vsel %vm46, %v28, 0
    %v54 = vsel %vm46, %v29, 0
    %v57 = vsel %vm46, %v30, 0
    %v60 = vsel %vm46, %v31, 0
    %v63 = vsel %vm46, %v32, 0
    %v66 = vsel %vm46, %v33, 0
    %v69 = vsel %vm46, %v34, 0
    %71 = vmatprep.subr.mxu0 0.0
    %72 = vmatpush1.msra.mxu0 0.0
    %73 = vmatprep.subr.mxu0 0.0
    %74 = vmatpush1.msra.mxu0 0.0
    %75 = vmatprep.subr.mxu0 0.0
    %76 = vmatpush1.msra.mxu0 0.0
    %77 = vmatprep.subr.mxu0 0.0
    %78 = vmatpush1.msra.mxu0 0.0
    %79 = vmatprep.subr.mxu0 0.0
    %80 = vmatpush1.msra.mxu0 0.0
    %81 = vmatprep.subr.mxu0 0.0
    %82 = vmatpush1.msra.mxu0 0.0
    %83 = vmatprep.subr.mxu0 0.0
    %84 = vmatpush1.msra.mxu0 0.0
    %85 = vmatprep.subr.mxu0 0.0
    %86 = vmatpush1.msra.mxu0 0.0
    %87 = vmatprep.subr.mxu0 0.0
    %88 = vmatpush1.msra.mxu0 0.0
    %89 = vmatprep.subr.mxu0 0.0
    %90 = vmatpush1.msra.mxu0 0.0
    %91 = vmatprep.subr.mxu0 0.0
    %92 = vmatpush1.msra.mxu0 0.0
    %93 = vmatprep.subr.mxu0 0.0
    %94 = vmatpush1.msra.mxu0 0.0
    %95 = vmatprep.subr.mxu0 0.0
    %96 = vmatpush1.msra.mxu0 0.0
    %97 = vmatprep.subr.mxu0 0.0
    %98 = vmatpush1.msra.mxu0 0.0
    %99 = vmatprep.subr.mxu0 0.0
    %100 = vmatpush1.msra.mxu0 %v36
    %101 = vmatprep.subr.mxu0 0.0
    %102 = vmatpush1.msra.mxu0 %v35
    %103 = vmatprep.subr.mxu0 0.0
    %104 = vmatpush2.msra.mxu0 0.0
    %105 = vmatprep.subr.mxu0 0.0
    %106 = vmatpush2.msra.mxu0 0.0
    %107 = vmatprep.subr.mxu0 0.0
    %108 = vmatpush2.msra.mxu0 0.0
    %109 = vmatprep.subr.mxu0 0.0
    %110 = vmatpush2.msra.mxu0 0.0
    %111 = vmatprep.subr.mxu0 0.0
    %112 = vmatpush2.msra.mxu0 0.0
    %113 = vmatprep.subr.mxu0 0.0
    %114 = vmatpush2.msra.mxu0 0.0
    %115 = vmatprep.subr.mxu0 0.0
    %116 = vmatpush2.msra.mxu0 0.0
    %117 = vmatprep.subr.mxu0 0.0
    %118 = vmatpush2.msra.mxu0 0.0
    %119 = vmatprep.subr.mxu0 0.0
    %120 = vmatpush2.msra.mxu0 0.0
    %121 = vmatprep.subr.mxu0 0.0
    %122 = vmatpush2.msra.mxu0 0.0
    %123 = vmatprep.subr.mxu0 0.0
    %124 = vmatpush2.msra.mxu0 0.0
    %125 = vmatprep.subr.mxu0 0.0
    %126 = vmatpush2.msra.mxu0 0.0
    %127 = vmatprep.subr.mxu0 0.0
    %128 = vmatpush2.msra.mxu0 0.0
    %129 = vmatprep.subr.mxu0 0.0
    %130 = vmatpush2.msra.mxu0 0.0
    %131 = vmatprep.subr.mxu0 0.0
    %132 = vmatpush2.msra.mxu0 0.0
    %133 = vmatprep.subr.mxu0 0.0
    %134 = vmatpush2.msra.mxu0 0.0
    %135 = vmatprep.mubr.f32.mxu0 0.0
    %136 = vmatmul.mubr.f32.gmra.mxu0 %v48
    %v137 = vpop.f32.mrf.mxu0
    %v138 = vadd.f32 %v45, %v137
    %v139 = vpop.f32.mrf.mxu0
    %140 = vmatprep.mubr.f32.mxu0 0.0
    %141 = vmatmul.mubr.f32.gmra.mxu0 %v51
    %v142 = vpop.f32.mrf.mxu0
    %v143 = vadd.f32 %v45, %v142
    %v144 = vpop.f32.mrf.mxu0
    %145 = vmatprep.mubr.f32.mxu0 0.0
    %146 = vmatmul.mubr.f32.gmra.mxu0 %v54
    %v147 = vpop.f32.mrf.mxu0
    %v148 = vadd.f32 %v45, %v147
    %v149 = vpop.f32.mrf.mxu0
    %150 = vmatprep.mubr.f32.mxu0 0.0
    %151 = vmatmul.mubr.f32.gmra.mxu0 %v57
    %v152 = vpop.f32.mrf.mxu0
    %v153 = vadd.f32 %v45, %v152
    %v154 = vpop.f32.mrf.mxu0
    %155 = vmatprep.mubr.f32.mxu0 0.0
    %156 = vmatmul.mubr.f32.gmra.mxu0 %v60
    %v157 = vpop.f32.mrf.mxu0
    %v158 = vadd.f32 %v45, %v157
    %v159 = vpop.f32.mrf.mxu0
    %160 = vmatprep.mubr.f32.mxu0 0.0
    %161 = vmatmul.mubr.f32.gmra.mxu0 %v63
    %v162 = vpop.f32.mrf.mxu0
    %v163 = vadd.f32 %v45, %v162
    %v164 = vpop.f32.mrf.mxu0
    %165 = vmatprep.mubr.f32.mxu0 0.0
    %166 = vmatmul.mubr.f32.gmra.mxu0 %v66
    %v167 = vpop.f32.mrf.mxu0
    %v168 = vadd.f32 %v45, %v167
    %v169 = vpop.f32.mrf.mxu0
    %170 = vmatprep.mubr.f32.mxu0 0.0
    %171 = vmatmul.mubr.f32.gmra.mxu0 %v69
    %v172 = vpop.f32.mrf.mxu0
    %v173 = vadd.f32 %v45, %v172
    %v174 = vpop.f32.mrf.mxu0
    %175 = vdwg.mxu0
    %vm176 = vcmask 261120
    %v178 = vsel %vm176, 0.0, 0
    %180 = vmatprep.subr.mxu0 0.0
    %181 = vmatpush1.msra.mxu0 0.0
    %182 = vmatprep.subr.mxu0 0.0
    %183 = vmatpush1.msra.mxu0 0.0
    %184 = vmatprep.subr.mxu0 0.0
    %185 = vmatpush1.msra.mxu0 0.0
    %186 = vmatprep.subr.mxu0 0.0
    %187 = vmatpush1.msra.mxu0 0.0
    %188 = vmatprep.subr.mxu0 0.0
    %189 = vmatpush1.msra.mxu0 0.0
    %190 = vmatprep.subr.mxu0 0.0
    %191 = vmatpush1.msra.mxu0 0.0
    %192 = vmatprep.subr.mxu0 0.0
    %193 = vmatpush1.msra.mxu0 0.0
    %194 = vmatprep.subr.mxu0 0.0
    %195 = vmatpush1.msra.mxu0 0.0
    %196 = vmatprep.subr.mxu0 0.0
    %197 = vmatpush1.msra.mxu0 0.0
    %198 = vmatprep.subr.mxu0 0.0
    %199 = vmatpush1.msra.mxu0 0.0
    %200 = vmatprep.subr.mxu0 0.0
    %201 = vmatpush1.msra.mxu0 0.0
    %202 = vmatprep.subr.mxu0 0.0
    %203 = vmatpush1.msra.mxu0 0.0
    %204 = vmatprep.subr.mxu0 0.0
    %205 = vmatpush1.msra.mxu0 %v40
    %206 = vmatprep.subr.mxu0 0.0
    %207 = vmatpush1.msra.mxu0 %v39
    %208 = vmatprep.subr.mxu0 0.0
    %209 = vmatpush1.msra.mxu0 %v38
    %210 = vmatprep.subr.mxu0 0.0
    %211 = vmatpush1.msra.mxu0 %v37
    %212 = vmatprep.subr.mxu0 0.0
    %213 = vmatpush2.msra.mxu0 0.0
    %214 = vmatprep.subr.mxu0 0.0
    %215 = vmatpush2.msra.mxu0 0.0
    %216 = vmatprep.subr.mxu0 0.0
    %217 = vmatpush2.msra.mxu0 0.0
    %218 = vmatprep.subr.mxu0 0.0
    %219 = vmatpush2.msra.mxu0 0.0
    %220 = vmatprep.subr.mxu0 0.0
    %221 = vmatpush2.msra.mxu0 0.0
    %222 = vmatprep.subr.mxu0 0.0
    %223 = vmatpush2.msra.mxu0 0.0
    %224 = vmatprep.subr.mxu0 0.0
    %225 = vmatpush2.msra.mxu0 0.0
    %226 = vmatprep.subr.mxu0 0.0
    %227 = vmatpush2.msra.mxu0 0.0
    %228 = vmatprep.subr.mxu0 0.0
    %229 = vmatpush2.msra.mxu0 0.0
    %230 = vmatprep.subr.mxu0 0.0
    %231 = vmatpush2.msra.mxu0 0.0
    %232 = vmatprep.subr.mxu0 0.0
    %233 = vmatpush2.msra.mxu0 0.0
    %234 = vmatprep.subr.mxu0 0.0
    %235 = vmatpush2.msra.mxu0 0.0
    %236 = vmatprep.subr.mxu0 0.0
    %237 = vmatpush2.msra.mxu0 0.0
    %238 = vmatprep.subr.mxu0 0.0
    %239 = vmatpush2.msra.mxu0 0.0
    %240 = vmatprep.subr.mxu0 0.0
    %241 = vmatpush2.msra.mxu0 0.0
    %242 = vmatprep.subr.mxu0 0.0
    %243 = vmatpush2.msra.mxu0 0.0
    %244 = vmatprep.mubr.f32.mxu0 0.0
    %245 = vmatmul.mubr.f32.gmra.mxu0 %v178
    %v246 = vpop.f32.mrf.mxu0
    %v247 = vadd.f32 0.0, %v246
    %v248 = vpop.f32.mrf.mxu0
    %249 = vdwg.mxu0
    %v250 = vadd.f32 %v138, %v247
    %v251 = vtanh.pop %v250
    %v252 = vlaneseq
    %v253 = vshrl.u32 %v252, 7
    %v254 = vsub.s32 0, %v253
    %v255 = vrot.slane %v26, %v254
    %v256 = vmul.f32 %v251, %v255
    %v257 = vlaneseq
    %v258 = vshrl.u32 %v257, 7
    %v259 = vsub.s32 1, %v258
    %v260 = vrot.slane %v26, %v259
    %v261 = vadd.f32 %v256, %v260
    %v262 = vmul.f32 %v261, 0.0
    %264 = vrot.lane.b32.xlu0 %v261, 64
    %v265 = vpop.permute.xlu0 %264
    %v267 = vmul.f32 %v261, %v265
    %269 = vrot.lane.b32.xlu0 %v267, 32
    %v270 = vpop.permute.xlu0 %269
    %v272 = vadd.f32 %v262, %v270
    %v273 = vtanh.pop %v272
    %275 = vrot.lane.b32.xlu0 %v273, 64
    %v276 = vpop.permute.xlu0 %275
    %v278 = vmul.f32 %v261, %v276
    %280 = vrot.lane.b32.xlu0 %v278, 32
    %v281 = vpop.permute.xlu0 %280
    %283 = vst.msk [vmem:[#allocation2] sm:$0xff] %vm176, %v281
    %v284 = vsel %vm176, %v281, 0
    %286 = vmatprep.subr.mxu0 0.0
    %287 = vmatpush1.msra.mxu0 0.0
    %288 = vmatprep.subr.mxu0 0.0
    %289 = vmatpush1.msra.mxu0 0.0
    %290 = vmatprep.subr.mxu0 0.0
    %291 = vmatpush1.msra.mxu0 0.0
    %292 = vmatprep.subr.mxu0 0.0
    %293 = vmatpush1.msra.mxu0 0.0
    %294 = vmatprep.subr.mxu0 0.0
    %295 = vmatpush1.msra.mxu0 0.0
    %296 = vmatprep.subr.mxu0 0.0
    %297 = vmatpush1.msra.mxu0 0.0
    %298 = vmatprep.subr.mxu0 0.0
    %299 = vmatpush1.msra.mxu0 0.0
    %300 = vmatprep.subr.mxu0 0.0
    %301 = vmatpush1.msra.mxu0 0.0
    %302 = vmatprep.subr.mxu0 0.0
    %303 = vmatpush1.msra.mxu0 0.0
    %304 = vmatprep.subr.mxu0 0.0
    %305 = vmatpush1.msra.mxu0 0.0
    %306 = vmatprep.subr.mxu0 0.0
    %307 = vmatpush1.msra.mxu0 0.0
    %308 = vmatprep.subr.mxu0 0.0
    %309 = vmatpush1.msra.mxu0 0.0
    %310 = vmatprep.subr.mxu0 0.0
    %311 = vmatpush1.msra.mxu0 %v40
    %312 = vmatprep.subr.mxu0 0.0
    %313 = vmatpush1.msra.mxu0 %v39
    %314 = vmatprep.subr.mxu0 0.0
    %315 = vmatpush1.msra.mxu0 %v38
    %316 = vmatprep.subr.mxu0 0.0
    %317 = vmatpush1.msra.mxu0 %v37
    %318 = vmatprep.subr.mxu0 0.0
    %319 = vmatpush2.msra.mxu0 0.0
    %320 = vmatprep.subr.mxu0 0.0
    %321 = vmatpush2.msra.mxu0 0.0
    %322 = vmatprep.subr.mxu0 0.0
    %323 = vmatpush2.msra.mxu0 0.0
    %324 = vmatprep.subr.mxu0 0.0
    %325 = vmatpush2.msra.mxu0 0.0
    %326 = vmatprep.subr.mxu0 0.0
    %327 = vmatpush2.msra.mxu0 0.0
    %328 = vmatprep.subr.mxu0 0.0
    %329 = vmatpush2.msra.mxu0 0.0
    %330 = vmatprep.subr.mxu0 0.0
    %331 = vmatpush2.msra.mxu0 0.0
    %332 = vmatprep.subr.mxu0 0.0
    %333 = vmatpush2.msra.mxu0 0.0
    %334 = vmatprep.subr.mxu0 0.0
    %335 = vmatpush2.msra.mxu0 0.0
    %336 = vmatprep.subr.mxu0 0.0
    %337 = vmatpush2.msra.mxu0 0.0
    %338 = vmatprep.subr.mxu0 0.0
    %339 = vmatpush2.msra.mxu0 0.0
    %340 = vmatprep.subr.mxu0 0.0
    %341 = vmatpush2.msra.mxu0 0.0
    %342 = vmatprep.subr.mxu0 0.0
    %343 = vmatpush2.msra.mxu0 0.0
    %344 = vmatprep.subr.mxu0 0.0
    %345 = vmatpush2.msra.mxu0 0.0
    %346 = vmatprep.subr.mxu0 0.0
    %347 = vmatpush2.msra.mxu0 0.0
    %348 = vmatprep.subr.mxu0 0.0
    %349 = vmatpush2.msra.mxu0 0.0
    %350 = vmatprep.mubr.f32.mxu0 0.0
    %351 = vmatmul.mubr.f32.gmra.mxu0 %v284
    %v352 = vpop.f32.mrf.mxu0
    %v353 = vadd.f32 0.0, %v352
    %v354 = vpop.f32.mrf.mxu0
    %355 = vdwg.mxu0
    %v356 = vadd.f32 %v143, %v353
    %v357 = vtanh.pop %v356
    %v358 = vmul.f32 %v357, %v255
    %v359 = vadd.f32 %v358, %v260
    %v360 = vmul.f32 %v359, %v272
    %362 = vrot.lane.b32.xlu0 %v359, 64
    %v363 = vpop.permute.xlu0 %362
    %v365 = vmul.f32 %v359, %v363
    %367 = vrot.lane.b32.xlu0 %v365, 32
    %v368 = vpop.permute.xlu0 %367
    %v370 = vadd.f32 %v360, %v368
    %v371 = vtanh.pop %v370
    %373 = vrot.lane.b32.xlu0 %v371, 64
    %v374 = vpop.permute.xlu0 %373
    %v376 = vmul.f32 %v359, %v374
    %378 = vrot.lane.b32.xlu0 %v376, 32
    %v379 = vpop.permute.xlu0 %378
    %381 = vst.msk [vmem:[#allocation2 + $0x8] sm:$0xff] %vm176, %v379
    %v382 = vsel %vm176, %v379, 0
    %384 = vmatprep.subr.mxu0 0.0
    %385 = vmatpush1.msra.mxu0 0.0
    %386 = vmatprep.subr.mxu0 0.0
    %387 = vmatpush1.msra.mxu0 0.0
    %388 = vmatprep.subr.mxu0 0.0
    %389 = vmatpush1.msra.mxu0 0.0
    %390 = vmatprep.subr.mxu0 0.0
    %391 = vmatpush1.msra.mxu0 0.0
    %392 = vmatprep.subr.mxu0 0.0
    %393 = vmatpush1.msra.mxu0 0.0
    %394 = vmatprep.subr.mxu0 0.0
    %395 = vmatpush1.msra.mxu0 0.0
    %396 = vmatprep.subr.mxu0 0.0
    %397 = vmatpush1.msra.mxu0 0.0
    %398 = vmatprep.subr.mxu0 0.0
    %399 = vmatpush1.msra.mxu0 0.0
    %400 = vmatprep.subr.mxu0 0.0
    %401 = vmatpush1.msra.mxu0 0.0
    %402 = vmatprep.subr.mxu0 0.0
    %403 = vmatpush1.msra.mxu0 0.0
    %404 = vmatprep.subr.mxu0 0.0
    %405 = vmatpush1.msra.mxu0 0.0
    %406 = vmatprep.subr.mxu0 0.0
    %407 = vmatpush1.msra.mxu0 0.0
    %408 = vmatprep.subr.mxu0 0.0
    %409 = vmatpush1.msra.mxu0 %v40
    %410 = vmatprep.subr.mxu0 0.0
    %411 = vmatpush1.msra.mxu0 %v39
    %412 = vmatprep.subr.mxu0 0.0
    %413 = vmatpush1.msra.mxu0 %v38
    %414 = vmatprep.subr.mxu0 0.0
    %415 = vmatpush1.msra.mxu0 %v37
    %416 = vmatprep.subr.mxu0 0.0
    %417 = vmatpush2.msra.mxu0 0.0
    %418 = vmatprep.subr.mxu0 0.0
    %419 = vmatpush2.msra.mxu0 0.0
    %420 = vmatprep.subr.mxu0 0.0
    %421 = vmatpush2.msra.mxu0 0.0
    %422 = vmatprep.subr.mxu0 0.0
    %423 = vmatpush2.msra.mxu0 0.0
    %424 = vmatprep.subr.mxu0 0.0
    %425 = vmatpush2.msra.mxu0 0.0
    %426 = vmatprep.subr.mxu0 0.0
    %427 = vmatpush2.msra.mxu0 0.0
    %428 = vmatprep.subr.mxu0 0.0
    %429 = vmatpush2.msra.mxu0 0.0
    %430 = vmatprep.subr.mxu0 0.0
    %431 = vmatpush2.msra.mxu0 0.0
    %432 = vmatprep.subr.mxu0 0.0
    %433 = vmatpush2.msra.mxu0 0.0
    %434 = vmatprep.subr.mxu0 0.0
    %435 = vmatpush2.msra.mxu0 0.0
    %436 = vmatprep.subr.mxu0 0.0
    %437 = vmatpush2.msra.mxu0 0.0
    %438 = vmatprep.subr.mxu0 0.0
    %439 = vmatpush2.msra.mxu0 0.0
    %440 = vmatprep.subr.mxu0 0.0
    %441 = vmatpush2.msra.mxu0 0.0
    %442 = vmatprep.subr.mxu0 0.0
    %443 = vmatpush2.msra.mxu0 0.0
    %444 = vmatprep.subr.mxu0 0.0
    %445 = vmatpush2.msra.mxu0 0.0
    %446 = vmatprep.subr.mxu0 0.0
    %447 = vmatpush2.msra.mxu0 0.0
    %448 = vmatprep.mubr.f32.mxu0 0.0
    %449 = vmatmul.mubr.f32.gmra.mxu0 %v382
    %v450 = vpop.f32.mrf.mxu0
    %v451 = vadd.f32 0.0, %v450
    %v452 = vpop.f32.mrf.mxu0
    %453 = vdwg.mxu0
    %v454 = vadd.f32 %v148, %v451
    %v455 = vtanh.pop %v454
    %v456 = vmul.f32 %v455, %v255
    %v457 = vadd.f32 %v456, %v260
    %v458 = vmul.f32 %v457, %v370
    %460 = vrot.lane.b32.xlu0 %v457, 64
    %v461 = vpop.permute.xlu0 %460
    %v463 = vmul.f32 %v457, %v461
    %465 = vrot.lane.b32.xlu0 %v463, 32
    %v466 = vpop.permute.xlu0 %465
    %v468 = vadd.f32 %v458, %v466
    %v469 = vtanh.pop %v468
    %471 = vrot.lane.b32.xlu0 %v469, 64
    %v472 = vpop.permute.xlu0 %471
    %v474 = vmul.f32 %v457, %v472
    %476 = vrot.lane.b32.xlu0 %v474, 32
    %v477 = vpop.permute.xlu0 %476
    %479 = vst.msk [vmem:[#allocation2 + $0x10] sm:$0xff] %vm176, %v477
    %v480 = vsel %vm176, %v477, 0
    %482 = vmatprep.subr.mxu0 0.0
    %483 = vmatpush1.msra.mxu0 0.0
    %484 = vmatprep.subr.mxu0 0.0
    %485 = vmatpush1.msra.mxu0 0.0
    %486 = vmatprep.subr.mxu0 0.0
    %487 = vmatpush1.msra.mxu0 0.0
    %488 = vmatprep.subr.mxu0 0.0
    %489 = vmatpush1.msra.mxu0 0.0
    %490 = vmatprep.subr.mxu0 0.0
    %491 = vmatpush1.msra.mxu0 0.0
    %492 = vmatprep.subr.mxu0 0.0
    %493 = vmatpush1.msra.mxu0 0.0
    %494 = vmatprep.subr.mxu0 0.0
    %495 = vmatpush1.msra.mxu0 0.0
    %496 = vmatprep.subr.mxu0 0.0
    %497 = vmatpush1.msra.mxu0 0.0
    %498 = vmatprep.subr.mxu0 0.0
    %499 = vmatpush1.msra.mxu0 0.0
    %500 = vmatprep.subr.mxu0 0.0
    %501 = vmatpush1.msra.mxu0 0.0
    %502 = vmatprep.subr.mxu0 0.0
    %503 = vmatpush1.msra.mxu0 0.0
    %504 = vmatprep.subr.mxu0 0.0
    %505 = vmatpush1.msra.mxu0 0.0
    %506 = vmatprep.subr.mxu0 0.0
    %507 = vmatpush1.msra.mxu0 %v40
    %508 = vmatprep.subr.mxu0 0.0
    %509 = vmatpush1.msra.mxu0 %v39
    %510 = vmatprep.subr.mxu0 0.0
    %511 = vmatpush1.msra.mxu0 %v38
    %512 = vmatprep.subr.mxu0 0.0
    %513 = vmatpush1.msra.mxu0 %v37
    %514 = vmatprep.subr.mxu0 0.0
    %515 = vmatpush2.msra.mxu0 0.0
    %516 = vmatprep.subr.mxu0 0.0
    %517 = vmatpush2.msra.mxu0 0.0
    %518 = vmatprep.subr.mxu0 0.0
    %519 = vmatpush2.msra.mxu0 0.0
    %520 = vmatprep.subr.mxu0 0.0
    %521 = vmatpush2.msra.mxu0 0.0
    %522 = vmatprep.subr.mxu0 0.0
    %523 = vmatpush2.msra.mxu0 0.0
    %524 = vmatprep.subr.mxu0 0.0
    %525 = vmatpush2.msra.mxu0 0.0
    %526 = vmatprep.subr.mxu0 0.0
    %527 = vmatpush2.msra.mxu0 0.0
    %528 = vmatprep.subr.mxu0 0.0
    %529 = vmatpush2.msra.mxu0 0.0
    %530 = vmatprep.subr.mxu0 0.0
    %531 = vmatpush2.msra.mxu0 0.0
    %532 = vmatprep.subr.mxu0 0.0
    %533 = vmatpush2.msra.mxu0 0.0
    %534 = vmatprep.subr.mxu0 0.0
    %535 = vmatpush2.msra.mxu0 0.0
    %536 = vmatprep.subr.mxu0 0.0
    %537 = vmatpush2.msra.mxu0 0.0
    %538 = vmatprep.subr.mxu0 0.0
    %539 = vmatpush2.msra.mxu0 0.0
    %540 = vmatprep.subr.mxu0 0.0
    %541 = vmatpush2.msra.mxu0 0.0
    %542 = vmatprep.subr.mxu0 0.0
    %543 = vmatpush2.msra.mxu0 0.0
    %544 = vmatprep.subr.mxu0 0.0
    %545 = vmatpush2.msra.mxu0 0.0
    %546 = vmatprep.mubr.f32.mxu0 0.0
    %547 = vmatmul.mubr.f32.gmra.mxu0 %v480
    %v548 = vpop.f32.mrf.mxu0
    %v549 = vadd.f32 0.0, %v548
    %v550 = vpop.f32.mrf.mxu0
    %551 = vdwg.mxu0
    %v552 = vadd.f32 %v153, %v549
    %v553 = vtanh.pop %v552
    %v554 = vmul.f32 %v553, %v255
    %v555 = vadd.f32 %v554, %v260
    %v556 = vmul.f32 %v555, %v468
    %558 = vrot.lane.b32.xlu0 %v555, 64
    %v559 = vpop.permute.xlu0 %558
    %v561 = vmul.f32 %v555, %v559
    %563 = vrot.lane.b32.xlu0 %v561, 32
    %v564 = vpop.permute.xlu0 %563
    %v566 = vadd.f32 %v556, %v564
    %v567 = vtanh.pop %v566
    %569 = vrot.lane.b32.xlu0 %v567, 64
    %v570 = vpop.permute.xlu0 %569
    %v572 = vmul.f32 %v555, %v570
    %574 = vrot.lane.b32.xlu0 %v572, 32
    %v575 = vpop.permute.xlu0 %574
    %577 = vst.msk [vmem:[#allocation2 + $0x18] sm:$0xff] %vm176, %v575
    %v578 = vsel %vm176, %v575, 0
    %580 = vmatprep.subr.mxu0 0.0
    %581 = vmatpush1.msra.mxu0 0.0
    %582 = vmatprep.subr.mxu0 0.0
    %583 = vmatpush1.msra.mxu0 0.0
    %584 = vmatprep.subr.mxu0 0.0
    %585 = vmatpush1.msra.mxu0 0.0
    %586 = vmatprep.subr.mxu0 0.0
    %587 = vmatpush1.msra.mxu0 0.0
    %588 = vmatprep.subr.mxu0 0.0
    %589 = vmatpush1.msra.mxu0 0.0
    %590 = vmatprep.subr.mxu0 0.0
    %591 = vmatpush1.msra.mxu0 0.0
    %592 = vmatprep.subr.mxu0 0.0
    %593 = vmatpush1.msra.mxu0 0.0
    %594 = vmatprep.subr.mxu0 0.0
    %595 = vmatpush1.msra.mxu0 0.0
    %596 = vmatprep.subr.mxu0 0.0
    %597 = vmatpush1.msra.mxu0 0.0
    %598 = vmatprep.subr.mxu0 0.0
    %599 = vmatpush1.msra.mxu0 0.0
    %600 = vmatprep.subr.mxu0 0.0
    %601 = vmatpush1.msra.mxu0 0.0
    %602 = vmatprep.subr.mxu0 0.0
    %603 = vmatpush1.msra.mxu0 0.0
    %604 = vmatprep.subr.mxu0 0.0
    %605 = vmatpush1.msra.mxu0 %v40
    %606 = vmatprep.subr.mxu0 0.0
    %607 = vmatpush1.msra.mxu0 %v39
    %608 = vmatprep.subr.mxu0 0.0
    %609 = vmatpush1.msra.mxu0 %v38
    %610 = vmatprep.subr.mxu0 0.0
    %611 = vmatpush1.msra.mxu0 %v37
    %612 = vmatprep.subr.mxu0 0.0
    %613 = vmatpush2.msra.mxu0 0.0
    %614 = vmatprep.subr.mxu0 0.0
    %615 = vmatpush2.msra.mxu0 0.0
    %616 = vmatprep.subr.mxu0 0.0
    %617 = vmatpush2.msra.mxu0 0.0
    %618 = vmatprep.subr.mxu0 0.0
    %619 = vmatpush2.msra.mxu0 0.0
    %620 = vmatprep.subr.mxu0 0.0
    %621 = vmatpush2.msra.mxu0 0.0
    %622 = vmatprep.subr.mxu0 0.0
    %623 = vmatpush2.msra.mxu0 0.0
    %624 = vmatprep.subr.mxu0 0.0
    %625 = vmatpush2.msra.mxu0 0.0
    %626 = vmatprep.subr.mxu0 0.0
    %627 = vmatpush2.msra.mxu0 0.0
    %628 = vmatprep.subr.mxu0 0.0
    %629 = vmatpush2.msra.mxu0 0.0
    %630 = vmatprep.subr.mxu0 0.0
    %631 = vmatpush2.msra.mxu0 0.0
    %632 = vmatprep.subr.mxu0 0.0
    %633 = vmatpush2.msra.mxu0 0.0
    %634 = vmatprep.subr.mxu0 0.0
    %635 = vmatpush2.msra.mxu0 0.0
    %636 = vmatprep.subr.mxu0 0.0
    %637 = vmatpush2.msra.mxu0 0.0
    %638 = vmatprep.subr.mxu0 0.0
    %639 = vmatpush2.msra.mxu0 0.0
    %640 = vmatprep.subr.mxu0 0.0
    %641 = vmatpush2.msra.mxu0 0.0
    %642 = vmatprep.subr.mxu0 0.0
    %643 = vmatpush2.msra.mxu0 0.0
    %644 = vmatprep.mubr.f32.mxu0 0.0
    %645 = vmatmul.mubr.f32.gmra.mxu0 %v578
    %v646 = vpop.f32.mrf.mxu0
    %v647 = vadd.f32 0.0, %v646
    %v648 = vpop.f32.mrf.mxu0
    %649 = vdwg.mxu0
    %v650 = vadd.f32 %v158, %v647
    %v651 = vtanh.pop %v650
    %v652 = vmul.f32 %v651, %v255
    %v653 = vadd.f32 %v652, %v260
    %v654 = vmul.f32 %v653, %v566
    %656 = vrot.lane.b32.xlu0 %v653, 64
    %v657 = vpop.permute.xlu0 %656
    %v659 = vmul.f32 %v653, %v657
    %661 = vrot.lane.b32.xlu0 %v659, 32
    %v662 = vpop.permute.xlu0 %661
    %v664 = vadd.f32 %v654, %v662
    %v665 = vtanh.pop %v664
    %667 = vrot.lane.b32.xlu0 %v665, 64
    %v668 = vpop.permute.xlu0 %667
    %v670 = vmul.f32 %v653, %v668
    %672 = vrot.lane.b32.xlu0 %v670, 32
    %v673 = vpop.permute.xlu0 %672
    %675 = vst.msk [vmem:[#allocation2 + $0x20] sm:$0xff] %vm176, %v673
    %v676 = vsel %vm176, %v673, 0
    %678 = vmatprep.subr.mxu0 0.0
    %679 = vmatpush1.msra.mxu0 0.0
    %680 = vmatprep.subr.mxu0 0.0
    %681 = vmatpush1.msra.mxu0 0.0
    %682 = vmatprep.subr.mxu0 0.0
    %683 = vmatpush1.msra.mxu0 0.0
    %684 = vmatprep.subr.mxu0 0.0
    %685 = vmatpush1.msra.mxu0 0.0
    %686 = vmatprep.subr.mxu0 0.0
    %687 = vmatpush1.msra.mxu0 0.0
    %688 = vmatprep.subr.mxu0 0.0
    %689 = vmatpush1.msra.mxu0 0.0
    %690 = vmatprep.subr.mxu0 0.0
    %691 = vmatpush1.msra.mxu0 0.0
    %692 = vmatprep.subr.mxu0 0.0
    %693 = vmatpush1.msra.mxu0 0.0
    %694 = vmatprep.subr.mxu0 0.0
    %695 = vmatpush1.msra.mxu0 0.0
    %696 = vmatprep.subr.mxu0 0.0
    %697 = vmatpush1.msra.mxu0 0.0
    %698 = vmatprep.subr.mxu0 0.0
    %699 = vmatpush1.msra.mxu0 0.0
    %700 = vmatprep.subr.mxu0 0.0
    %701 = vmatpush1.msra.mxu0 0.0
    %702 = vmatprep.subr.mxu0 0.0
    %703 = vmatpush1.msra.mxu0 %v40
    %704 = vmatprep.subr.mxu0 0.0
    %705 = vmatpush1.msra.mxu0 %v39
    %706 = vmatprep.subr.mxu0 0.0
    %707 = vmatpush1.msra.mxu0 %v38
    %708 = vmatprep.subr.mxu0 0.0
    %709 = vmatpush1.msra.mxu0 %v37
    %710 = vmatprep.subr.mxu0 0.0
    %711 = vmatpush2.msra.mxu0 0.0
    %712 = vmatprep.subr.mxu0 0.0
    %713 = vmatpush2.msra.mxu0 0.0
    %714 = vmatprep.subr.mxu0 0.0
    %715 = vmatpush2.msra.mxu0 0.0
    %716 = vmatprep.subr.mxu0 0.0
    %717 = vmatpush2.msra.mxu0 0.0
    %718 = vmatprep.subr.mxu0 0.0
    %719 = vmatpush2.msra.mxu0 0.0
    %720 = vmatprep.subr.mxu0 0.0
    %721 = vmatpush2.msra.mxu0 0.0
    %722 = vmatprep.subr.mxu0 0.0
    %723 = vmatpush2.msra.mxu0 0.0
    %724 = vmatprep.subr.mxu0 0.0
    %725 = vmatpush2.msra.mxu0 0.0
    %726 = vmatprep.subr.mxu0 0.0
    %727 = vmatpush2.msra.mxu0 0.0
    %728 = vmatprep.subr.mxu0 0.0
    %729 = vmatpush2.msra.mxu0 0.0
    %730 = vmatprep.subr.mxu0 0.0
    %731 = vmatpush2.msra.mxu0 0.0
    %732 = vmatprep.subr.mxu0 0.0
    %733 = vmatpush2.msra.mxu0 0.0
    %734 = vmatprep.subr.mxu0 0.0
    %735 = vmatpush2.msra.mxu0 0.0
    %736 = vmatprep.subr.mxu0 0.0
    %737 = vmatpush2.msra.mxu0 0.0
    %738 = vmatprep.subr.mxu0 0.0
    %739 = vmatpush2.msra.mxu0 0.0
    %740 = vmatprep.subr.mxu0 0.0
    %741 = vmatpush2.msra.mxu0 0.0
    %742 = vmatprep.mubr.f32.mxu0 0.0
    %743 = vmatmul.mubr.f32.gmra.mxu0 %v676
    %v744 = vpop.f32.mrf.mxu0
    %v745 = vadd.f32 0.0, %v744
    %v746 = vpop.f32.mrf.mxu0
    %747 = vdwg.mxu0
    %v748 = vadd.f32 %v163, %v745
    %v749 = vtanh.pop %v748
    %v750 = vmul.f32 %v749, %v255
    %v751 = vadd.f32 %v750, %v260
    %v752 = vmul.f32 %v751, %v664
    %754 = vrot.lane.b32.xlu0 %v751, 64
    %v755 = vpop.permute.xlu0 %754
    %v757 = vmul.f32 %v751, %v755
    %759 = vrot.lane.b32.xlu0 %v757, 32
    %v760 = vpop.permute.xlu0 %759
    %v762 = vadd.f32 %v752, %v760
    %v763 = vtanh.pop %v762
    %765 = vrot.lane.b32.xlu0 %v763, 64
    %v766 = vpop.permute.xlu0 %765
    %v768 = vmul.f32 %v751, %v766
    %770 = vrot.lane.b32.xlu0 %v768, 32
    %v771 = vpop.permute.xlu0 %770
    %773 = vst.msk [vmem:[#allocation2 + $0x28] sm:$0xff] %vm176, %v771
    %v774 = vsel %vm176, %v771, 0
    %776 = vmatprep.subr.mxu0 0.0
    %777 = vmatpush1.msra.mxu0 0.0
    %778 = vmatprep.subr.mxu0 0.0
    %779 = vmatpush1.msra.mxu0 0.0
    %780 = vmatprep.subr.mxu0 0.0
    %781 = vmatpush1.msra.mxu0 0.0
    %782 = vmatprep.subr.mxu0 0.0
    %783 = vmatpush1.msra.mxu0 0.0
    %784 = vmatprep.subr.mxu0 0.0
    %785 = vmatpush1.msra.mxu0 0.0
    %786 = vmatprep.subr.mxu0 0.0
    %787 = vmatpush1.msra.mxu0 0.0
    %788 = vmatprep.subr.mxu0 0.0
    %789 = vmatpush1.msra.mxu0 0.0
    %790 = vmatprep.subr.mxu0 0.0
    %791 = vmatpush1.msra.mxu0 0.0
    %792 = vmatprep.subr.mxu0 0.0
    %793 = vmatpush1.msra.mxu0 0.0
    %794 = vmatprep.subr.mxu0 0.0
    %795 = vmatpush1.msra.mxu0 0.0
    %796 = vmatprep.subr.mxu0 0.0
    %797 = vmatpush1.msra.mxu0 0.0
    %798 = vmatprep.subr.mxu0 0.0
    %799 = vmatpush1.msra.mxu0 0.0
    %800 = vmatprep.subr.mxu0 0.0
    %801 = vmatpush1.msra.mxu0 %v40
    %802 = vmatprep.subr.mxu0 0.0
    %803 = vmatpush1.msra.mxu0 %v39
    %804 = vmatprep.subr.mxu0 0.0
    %805 = vmatpush1.msra.mxu0 %v38
    %806 = vmatprep.subr.mxu0 0.0
    %807 = vmatpush1.msra.mxu0 %v37
    %808 = vmatprep.subr.mxu0 0.0
    %809 = vmatpush2.msra.mxu0 0.0
    %810 = vmatprep.subr.mxu0 0.0
    %811 = vmatpush2.msra.mxu0 0.0
    %812 = vmatprep.subr.mxu0 0.0
    %813 = vmatpush2.msra.mxu0 0.0
    %814 = vmatprep.subr.mxu0 0.0
    %815 = vmatpush2.msra.mxu0 0.0
    %816 = vmatprep.subr.mxu0 0.0
    %817 = vmatpush2.msra.mxu0 0.0
    %818 = vmatprep.subr.mxu0 0.0
    %819 = vmatpush2.msra.mxu0 0.0
    %820 = vmatprep.subr.mxu0 0.0
    %821 = vmatpush2.msra.mxu0 0.0
    %822 = vmatprep.subr.mxu0 0.0
    %823 = vmatpush2.msra.mxu0 0.0
    %824 = vmatprep.subr.mxu0 0.0
    %825 = vmatpush2.msra.mxu0 0.0
    %826 = vmatprep.subr.mxu0 0.0
    %827 = vmatpush2.msra.mxu0 0.0
    %828 = vmatprep.subr.mxu0 0.0
    %829 = vmatpush2.msra.mxu0 0.0
    %830 = vmatprep.subr.mxu0 0.0
    %831 = vmatpush2.msra.mxu0 0.0
    %832 = vmatprep.subr.mxu0 0.0
    %833 = vmatpush2.msra.mxu0 0.0
    %834 = vmatprep.subr.mxu0 0.0
    %835 = vmatpush2.msra.mxu0 0.0
    %836 = vmatprep.subr.mxu0 0.0
    %837 = vmatpush2.msra.mxu0 0.0
    %838 = vmatprep.subr.mxu0 0.0
    %839 = vmatpush2.msra.mxu0 0.0
    %840 = vmatprep.mubr.f32.mxu0 0.0
    %841 = vmatmul.mubr.f32.gmra.mxu0 %v774
    %v842 = vpop.f32.mrf.mxu0
    %v843 = vadd.f32 0.0, %v842
    %v844 = vpop.f32.mrf.mxu0
    %845 = vdwg.mxu0
    %v846 = vadd.f32 %v168, %v843
    %v847 = vtanh.pop %v846
    %v848 = vmul.f32 %v847, %v255
    %v849 = vadd.f32 %v848, %v260
    %v850 = vmul.f32 %v849, %v762
    %852 = vrot.lane.b32.xlu0 %v849, 64
    %v853 = vpop.permute.xlu0 %852
    %v855 = vmul.f32 %v849, %v853
    %857 = vrot.lane.b32.xlu0 %v855, 32
    %v858 = vpop.permute.xlu0 %857
    %v860 = vadd.f32 %v850, %v858
    %v861 = vtanh.pop %v860
    %863 = vrot.lane.b32.xlu0 %v861, 64
    %v864 = vpop.permute.xlu0 %863
    %v866 = vmul.f32 %v849, %v864
    %868 = vrot.lane.b32.xlu0 %v866, 32
    %v869 = vpop.permute.xlu0 %868
    %871 = vst.msk [vmem:[#allocation2 + $0x30] sm:$0xff] %vm176, %v869
    %v872 = vsel %vm176, %v869, 0
    %874 = vmatprep.subr.mxu0 0.0
    %875 = vmatpush1.msra.mxu0 0.0
    %876 = vmatprep.subr.mxu0 0.0
    %877 = vmatpush1.msra.mxu0 0.0
    %878 = vmatprep.subr.mxu0 0.0
    %879 = vmatpush1.msra.mxu0 0.0
    %880 = vmatprep.subr.mxu0 0.0
    %881 = vmatpush1.msra.mxu0 0.0
    %882 = vmatprep.subr.mxu0 0.0
    %883 = vmatpush1.msra.mxu0 0.0
    %884 = vmatprep.subr.mxu0 0.0
    %885 = vmatpush1.msra.mxu0 0.0
    %886 = vmatprep.subr.mxu0 0.0
    %887 = vmatpush1.msra.mxu0 0.0
    %888 = vmatprep.subr.mxu0 0.0
    %889 = vmatpush1.msra.mxu0 0.0
    %890 = vmatprep.subr.mxu0 0.0
    %891 = vmatpush1.msra.mxu0 0.0
    %892 = vmatprep.subr.mxu0 0.0
    %893 = vmatpush1.msra.mxu0 0.0
    %894 = vmatprep.subr.mxu0 0.0
    %895 = vmatpush1.msra.mxu0 0.0
    %896 = vmatprep.subr.mxu0 0.0
    %897 = vmatpush1.msra.mxu0 0.0
    %898 = vmatprep.subr.mxu0 0.0
    %899 = vmatpush1.msra.mxu0 %v40
    %900 = vmatprep.subr.mxu0 0.0
    %901 = vmatpush1.msra.mxu0 %v39
    %902 = vmatprep.subr.mxu0 0.0
    %903 = vmatpush1.msra.mxu0 %v38
    %904 = vmatprep.subr.mxu0 0.0
    %905 = vmatpush1.msra.mxu0 %v37
    %906 = vmatprep.subr.mxu0 0.0
    %907 = vmatpush2.msra.mxu0 0.0
    %908 = vmatprep.subr.mxu0 0.0
    %909 = vmatpush2.msra.mxu0 0.0
    %910 = vmatprep.subr.mxu0 0.0
    %911 = vmatpush2.msra.mxu0 0.0
    %912 = vmatprep.subr.mxu0 0.0
    %913 = vmatpush2.msra.mxu0 0.0
    %914 = vmatprep.subr.mxu0 0.0
    %915 = vmatpush2.msra.mxu0 0.0
    %916 = vmatprep.subr.mxu0 0.0
    %917 = vmatpush2.msra.mxu0 0.0
    %918 = vmatprep.subr.mxu0 0.0
    %919 = vmatpush2.msra.mxu0 0.0
    %920 = vmatprep.subr.mxu0 0.0
    %921 = vmatpush2.msra.mxu0 0.0
    %922 = vmatprep.subr.mxu0 0.0
    %923 = vmatpush2.msra.mxu0 0.0
    %924 = vmatprep.subr.mxu0 0.0
    %925 = vmatpush2.msra.mxu0 0.0
    %926 = vmatprep.subr.mxu0 0.0
    %927 = vmatpush2.msra.mxu0 0.0
    %928 = vmatprep.subr.mxu0 0.0
    %929 = vmatpush2.msra.mxu0 0.0
    %930 = vmatprep.subr.mxu0 0.0
    %931 = vmatpush2.msra.mxu0 0.0
    %932 = vmatprep.subr.mxu0 0.0
    %933 = vmatpush2.msra.mxu0 0.0
    %934 = vmatprep.subr.mxu0 0.0
    %935 = vmatpush2.msra.mxu0 0.0
    %936 = vmatprep.subr.mxu0 0.0
    %937 = vmatpush2.msra.mxu0 0.0
    %938 = vmatprep.mubr.f32.mxu0 0.0
    %939 = vmatmul.mubr.f32.gmra.mxu0 %v872
    %v940 = vpop.f32.mrf.mxu0
    %v941 = vadd.f32 0.0, %v940
    %v942 = vpop.f32.mrf.mxu0
    %943 = vdwg.mxu0
    %v944 = vadd.f32 %v173, %v941
    %v945 = vtanh.pop %v944
    %v946 = vmul.f32 %v945, %v255
    %v947 = vadd.f32 %v946, %v260
    %v948 = vmul.f32 %v947, %v860
    %950 = vrot.lane.b32.xlu0 %v947, 64
    %v951 = vpop.permute.xlu0 %950
    %v953 = vmul.f32 %v947, %v951
    %955 = vrot.lane.b32.xlu0 %v953, 32
    %v956 = vpop.permute.xlu0 %955
    %v958 = vadd.f32 %v948, %v956
    %v959 = vtanh.pop %v958
    %961 = vrot.lane.b32.xlu0 %v959, 64
    %v962 = vpop.permute.xlu0 %961
    %v964 = vmul.f32 %v947, %v962
    %966 = vrot.lane.b32.xlu0 %v964, 32
    %v967 = vpop.permute.xlu0 %966
    %969 = vst.msk [vmem:[#allocation2 + $0x38] sm:$0xff] %vm176, %v967
    %v970 = vld [vmem:[#allocation2] sm:$0xff]
    %v971 = vld [vmem:[#allocation2 + $0x8] sm:$0xff]
    %v972 = vld [vmem:[#allocation2 + $0x10] sm:$0xff]
    %v973 = vld [vmem:[#allocation2 + $0x18] sm:$0xff]
    %v974 = vld [vmem:[#allocation2 + $0x20] sm:$0xff]
    %v975 = vld [vmem:[#allocation2 + $0x28] sm:$0xff]
    %v976 = vld [vmem:[#allocation2 + $0x30] sm:$0xff]
    %v977 = vld [vmem:[#allocation2 + $0x38] sm:$0xff]
    %v978 = vld [vmem:[#allocation3 + $0x38] sm:$0xff]
    %v979 = vld [vmem:[#allocation3 + $0x40] sm:$0xff]
    %v980 = vld [vmem:[#allocation3 + $0x48] sm:$0xff]
    %v981 = vld [vmem:[#allocation3 + $0x50] sm:$0xff]
    %v982 = vld [vmem:[#allocation3 + $0x58] sm:$0xff]
    %v983 = vld [vmem:[#allocation3 + $0x60] sm:$0xff]
    %v984 = vld [vmem:[#allocation3 + $0x68] sm:$0xff]
    %v985 = vld [vmem:[#allocation3 + $0x70] sm:$0xff]
    %v986 = vld [vmem:[#allocation3 + $0x78] sm:$0x1]
    %v987 = vlaneseq
    %v988 = vshrl.u32 %v987, 7
    %v989 = vsub.s32 0, %v988
    %v990 = vrot.slane %v986, %v989
    %v992 = vsel %vm176, %v970, 0
    %v995 = vsel %vm176, %v971, 0
    %v998 = vsel %vm176, %v972, 0
    %v1001 = vsel %vm176, %v973, 0
    %v1004 = vsel %vm176, %v974, 0
    %v1007 = vsel %vm176, %v975, 0
    %v1010 = vsel %vm176, %v976, 0
    %v1013 = vsel %vm176, %v977, 0
    %1015 = vmatprep.subr.mxu0 0.0
    %1016 = vmatpush1.msra.mxu0 0.0
    %1017 = vmatprep.subr.mxu0 0.0
    %1018 = vmatpush1.msra.mxu0 0.0
    %1019 = vmatprep.subr.mxu0 0.0
    %1020 = vmatpush1.msra.mxu0 0.0
    %1021 = vmatprep.subr.mxu0 0.0
    %1022 = vmatpush1.msra.mxu0 0.0
    %1023 = vmatprep.subr.mxu0 0.0
    %1024 = vmatpush1.msra.mxu0 0.0
    %1025 = vmatprep.subr.mxu0 0.0
    %1026 = vmatpush1.msra.mxu0 0.0
    %1027 = vmatprep.subr.mxu0 0.0
    %1028 = vmatpush1.msra.mxu0 0.0
    %1029 = vmatprep.subr.mxu0 0.0
    %1030 = vmatpush1.msra.mxu0 0.0
    %1031 = vmatprep.subr.mxu0 0.0
    %1032 = vmatpush1.msra.mxu0 0.0
    %1033 = vmatprep.subr.mxu0 0.0
    %1034 = vmatpush1.msra.mxu0 0.0
    %1035 = vmatprep.subr.mxu0 0.0
    %1036 = vmatpush1.msra.mxu0 0.0
    %1037 = vmatprep.subr.mxu0 0.0
    %1038 = vmatpush1.msra.mxu0 0.0
    %1039 = vmatprep.subr.mxu0 0.0
    %1040 = vmatpush1.msra.mxu0 %v981
    %1041 = vmatprep.subr.mxu0 0.0
    %1042 = vmatpush1.msra.mxu0 %v980
    %1043 = vmatprep.subr.mxu0 0.0
    %1044 = vmatpush1.msra.mxu0 %v979
    %1045 = vmatprep.subr.mxu0 0.0
    %1046 = vmatpush1.msra.mxu0 %v978
    %1047 = vmatprep.subr.mxu0 0.0
    %1048 = vmatpush2.msra.mxu0 0.0
    %1049 = vmatprep.subr.mxu0 0.0
    %1050 = vmatpush2.msra.mxu0 0.0
    %1051 = vmatprep.subr.mxu0 0.0
    %1052 = vmatpush2.msra.mxu0 0.0
    %1053 = vmatprep.subr.mxu0 0.0
    %1054 = vmatpush2.msra.mxu0 0.0
    %1055 = vmatprep.subr.mxu0 0.0
    %1056 = vmatpush2.msra.mxu0 0.0
    %1057 = vmatprep.subr.mxu0 0.0
    %1058 = vmatpush2.msra.mxu0 0.0
    %1059 = vmatprep.subr.mxu0 0.0
    %1060 = vmatpush2.msra.mxu0 0.0
    %1061 = vmatprep.subr.mxu0 0.0
    %1062 = vmatpush2.msra.mxu0 0.0
    %1063 = vmatprep.subr.mxu0 0.0
    %1064 = vmatpush2.msra.mxu0 0.0
    %1065 = vmatprep.subr.mxu0 0.0
    %1066 = vmatpush2.msra.mxu0 0.0
    %1067 = vmatprep.subr.mxu0 0.0
    %1068 = vmatpush2.msra.mxu0 0.0
    %1069 = vmatprep.subr.mxu0 0.0
    %1070 = vmatpush2.msra.mxu0 0.0
    %1071 = vmatprep.subr.mxu0 0.0
    %1072 = vmatpush2.msra.mxu0 0.0
    %1073 = vmatprep.subr.mxu0 0.0
    %1074 = vmatpush2.msra.mxu0 0.0
    %1075 = vmatprep.subr.mxu0 0.0
    %1076 = vmatpush2.msra.mxu0 0.0
    %1077 = vmatprep.subr.mxu0 0.0
    %1078 = vmatpush2.msra.mxu0 0.0
    %1079 = vmatprep.mubr.f32.mxu0 0.0
    %1080 = vmatmul.mubr.f32.gmra.mxu0 %v992
    %v1081 = vpop.f32.mrf.mxu0
    %v1082 = vadd.f32 %v990, %v1081
    %v1083 = vpop.f32.mrf.mxu0
    %1084 = vmatprep.mubr.f32.mxu0 0.0
    %1085 = vmatmul.mubr.f32.gmra.mxu0 %v995
    %v1086 = vpop.f32.mrf.mxu0
    %v1087 = vadd.f32 %v990, %v1086
    %v1088 = vpop.f32.mrf.mxu0
    %1089 = vmatprep.mubr.f32.mxu0 0.0
    %1090 = vmatmul.mubr.f32.gmra.mxu0 %v998
    %v1091 = vpop.f32.mrf.mxu0
    %v1092 = vadd.f32 %v990, %v1091
    %v1093 = vpop.f32.mrf.mxu0
    %1094 = vmatprep.mubr.f32.mxu0 0.0
    %1095 = vmatmul.mubr.f32.gmra.mxu0 %v1001
    %v1096 = vpop.f32.mrf.mxu0
    %v1097 = vadd.f32 %v990, %v1096
    %v1098 = vpop.f32.mrf.mxu0
    %1099 = vmatprep.mubr.f32.mxu0 0.0
    %1100 = vmatmul.mubr.f32.gmra.mxu0 %v1004
    %v1101 = vpop.f32.mrf.mxu0
    %v1102 = vadd.f32 %v990, %v1101
    %v1103 = vpop.f32.mrf.mxu0
    %1104 = vmatprep.mubr.f32.mxu0 0.0
    %1105 = vmatmul.mubr.f32.gmra.mxu0 %v1007
    %v1106 = vpop.f32.mrf.mxu0
    %v1107 = vadd.f32 %v990, %v1106
    %v1108 = vpop.f32.mrf.mxu0
    %1109 = vmatprep.mubr.f32.mxu0 0.0
    %1110 = vmatmul.mubr.f32.gmra.mxu0 %v1010
    %v1111 = vpop.f32.mrf.mxu0
    %v1112 = vadd.f32 %v990, %v1111
    %v1113 = vpop.f32.mrf.mxu0
    %1114 = vmatprep.mubr.f32.mxu0 0.0
    %1115 = vmatmul.mubr.f32.gmra.mxu0 %v1013
    %v1116 = vpop.f32.mrf.mxu0
    %v1117 = vadd.f32 %v990, %v1116
    %v1118 = vpop.f32.mrf.mxu0
    %1119 = vdwg.mxu0
    %1120 = vmatprep.subr.mxu0 0.0
    %1121 = vmatpush1.msra.mxu0 0.0
    %1122 = vmatprep.subr.mxu0 0.0
    %1123 = vmatpush1.msra.mxu0 0.0
    %1124 = vmatprep.subr.mxu0 0.0
    %1125 = vmatpush1.msra.mxu0 0.0
    %1126 = vmatprep.subr.mxu0 0.0
    %1127 = vmatpush1.msra.mxu0 0.0
    %1128 = vmatprep.subr.mxu0 0.0
    %1129 = vmatpush1.msra.mxu0 0.0
    %1130 = vmatprep.subr.mxu0 0.0
    %1131 = vmatpush1.msra.mxu0 0.0
    %1132 = vmatprep.subr.mxu0 0.0
    %1133 = vmatpush1.msra.mxu0 0.0
    %1134 = vmatprep.subr.mxu0 0.0
    %1135 = vmatpush1.msra.mxu0 0.0
    %1136 = vmatprep.subr.mxu0 0.0
    %1137 = vmatpush1.msra.mxu0 0.0
    %1138 = vmatprep.subr.mxu0 0.0
    %1139 = vmatpush1.msra.mxu0 0.0
    %1140 = vmatprep.subr.mxu0 0.0
    %1141 = vmatpush1.msra.mxu0 0.0
    %1142 = vmatprep.subr.mxu0 0.0
    %1143 = vmatpush1.msra.mxu0 0.0
    %1144 = vmatprep.subr.mxu0 0.0
    %1145 = vmatpush1.msra.mxu0 %v985
    %1146 = vmatprep.subr.mxu0 0.0
    %1147 = vmatpush1.msra.mxu0 %v984
    %1148 = vmatprep.subr.mxu0 0.0
    %1149 = vmatpush1.msra.mxu0 %v983
    %1150 = vmatprep.subr.mxu0 0.0
    %1151 = vmatpush1.msra.mxu0 %v982
    %1152 = vmatprep.subr.mxu0 0.0
    %1153 = vmatpush2.msra.mxu0 0.0
    %1154 = vmatprep.subr.mxu0 0.0
    %1155 = vmatpush2.msra.mxu0 0.0
    %1156 = vmatprep.subr.mxu0 0.0
    %1157 = vmatpush2.msra.mxu0 0.0
    %1158 = vmatprep.subr.mxu0 0.0
    %1159 = vmatpush2.msra.mxu0 0.0
    %1160 = vmatprep.subr.mxu0 0.0
    %1161 = vmatpush2.msra.mxu0 0.0
    %1162 = vmatprep.subr.mxu0 0.0
    %1163 = vmatpush2.msra.mxu0 0.0
    %1164 = vmatprep.subr.mxu0 0.0
    %1165 = vmatpush2.msra.mxu0 0.0
    %1166 = vmatprep.subr.mxu0 0.0
    %1167 = vmatpush2.msra.mxu0 0.0
    %1168 = vmatprep.subr.mxu0 0.0
    %1169 = vmatpush2.msra.mxu0 0.0
    %1170 = vmatprep.subr.mxu0 0.0
    %1171 = vmatpush2.msra.mxu0 0.0
    %1172 = vmatprep.subr.mxu0 0.0
    %1173 = vmatpush2.msra.mxu0 0.0
    %1174 = vmatprep.subr.mxu0 0.0
    %1175 = vmatpush2.msra.mxu0 0.0
    %1176 = vmatprep.subr.mxu0 0.0
    %1177 = vmatpush2.msra.mxu0 0.0
    %1178 = vmatprep.subr.mxu0 0.0
    %1179 = vmatpush2.msra.mxu0 0.0
    %1180 = vmatprep.subr.mxu0 0.0
    %1181 = vmatpush2.msra.mxu0 0.0
    %1182 = vmatprep.subr.mxu0 0.0
    %1183 = vmatpush2.msra.mxu0 0.0
    %1184 = vmatprep.mubr.f32.mxu0 0.0
    %1185 = vmatmul.mubr.f32.gmra.mxu0 %v178
    %v1186 = vpop.f32.mrf.mxu0
    %v1187 = vadd.f32 0.0, %v1186
    %v1188 = vpop.f32.mrf.mxu0
    %1189 = vdwg.mxu0
    %v1190 = vadd.f32 %v1082, %v1187
    %v1191 = vtanh.pop %v1190
    %v1192 = vmul.f32 %v1191, %v255
    %v1193 = vadd.f32 %v1192, %v260
    %v1194 = vmul.f32 %v1193, 0.0
    %1196 = vrot.lane.b32.xlu0 %v1193, 64
    %v1197 = vpop.permute.xlu0 %1196
    %v1199 = vmul.f32 %v1193, %v1197
    %1201 = vrot.lane.b32.xlu0 %v1199, 32
    %v1202 = vpop.permute.xlu0 %1201
    %v1204 = vadd.f32 %v1194, %v1202
    %v1205 = vtanh.pop %v1204
    %1207 = vrot.lane.b32.xlu0 %v1205, 64
    %v1208 = vpop.permute.xlu0 %1207
    %v1210 = vmul.f32 %v1193, %v1208
    %1212 = vrot.lane.b32.xlu0 %v1210, 32
    %v1213 = vpop.permute.xlu0 %1212
    %1215 = vst.msk [vmem:[#allocation2] sm:$0xff] %vm176, %v1213
    %v1216 = vsel %vm176, %v1213, 0
    %1218 = vmatprep.subr.mxu0 0.0
    %1219 = vmatpush1.msra.mxu0 0.0
    %1220 = vmatprep.subr.mxu0 0.0
    %1221 = vmatpush1.msra.mxu0 0.0
    %1222 = vmatprep.subr.mxu0 0.0
    %1223 = vmatpush1.msra.mxu0 0.0
    %1224 = vmatprep.subr.mxu0 0.0
    %1225 = vmatpush1.msra.mxu0 0.0
    %1226 = vmatprep.subr.mxu0 0.0
    %1227 = vmatpush1.msra.mxu0 0.0
    %1228 = vmatprep.subr.mxu0 0.0
    %1229 = vmatpush1.msra.mxu0 0.0
    %1230 = vmatprep.subr.mxu0 0.0
    %1231 = vmatpush1.msra.mxu0 0.0
    %1232 = vmatprep.subr.mxu0 0.0
    %1233 = vmatpush1.msra.mxu0 0.0
    %1234 = vmatprep.subr.mxu0 0.0
    %1235 = vmatpush1.msra.mxu0 0.0
    %1236 = vmatprep.subr.mxu0 0.0
    %1237 = vmatpush1.msra.mxu0 0.0
    %1238 = vmatprep.subr.mxu0 0.0
    %1239 = vmatpush1.msra.mxu0 0.0
    %1240 = vmatprep.subr.mxu0 0.0
    %1241 = vmatpush1.msra.mxu0 0.0
    %1242 = vmatprep.subr.mxu0 0.0
    %1243 = vmatpush1.msra.mxu0 %v985
    %1244 = vmatprep.subr.mxu0 0.0
    %1245 = vmatpush1.msra.mxu0 %v984
    %1246 = vmatprep.subr.mxu0 0.0
    %1247 = vmatpush1.msra.mxu0 %v983
    %1248 = vmatprep.subr.mxu0 0.0
    %1249 = vmatpush1.msra.mxu0 %v982
    %1250 = vmatprep.subr.mxu0 0.0
    %1251 = vmatpush2.msra.mxu0 0.0
    %1252 = vmatprep.subr.mxu0 0.0
    %1253 = vmatpush2.msra.mxu0 0.0
    %1254 = vmatprep.subr.mxu0 0.0
    %1255 = vmatpush2.msra.mxu0 0.0
    %1256 = vmatprep.subr.mxu0 0.0
    %1257 = vmatpush2.msra.mxu0 0.0
    %1258 = vmatprep.subr.mxu0 0.0
    %1259 = vmatpush2.msra.mxu0 0.0
    %1260 = vmatprep.subr.mxu0 0.0
    %1261 = vmatpush2.msra.mxu0 0.0
    %1262 = vmatprep.subr.mxu0 0.0
    %1263 = vmatpush2.msra.mxu0 0.0
    %1264 = vmatprep.subr.mxu0 0.0
    %1265 = vmatpush2.msra.mxu0 0.0
    %1266 = vmatprep.subr.mxu0 0.0
    %1267 = vmatpush2.msra.mxu0 0.0
    %1268 = vmatprep.subr.mxu0 0.0
    %1269 = vmatpush2.msra.mxu0 0.0
    %1270 = vmatprep.subr.mxu0 0.0
    %1271 = vmatpush2.msra.mxu0 0.0
    %1272 = vmatprep.subr.mxu0 0.0
    %1273 = vmatpush2.msra.mxu0 0.0
    %1274 = vmatprep.subr.mxu0 0.0
    %1275 = vmatpush2.msra.mxu0 0.0
    %1276 = vmatprep.subr.mxu0 0.0
    %1277 = vmatpush2.msra.mxu0 0.0
    %1278 = vmatprep.subr.mxu0 0.0
    %1279 = vmatpush2.msra.mxu0 0.0
    %1280 = vmatprep.subr.mxu0 0.0
    %1281 = vmatpush2.msra.mxu0 0.0
    %1282 = vmatprep.mubr.f32.mxu0 0.0
    %1283 = vmatmul.mubr.f32.gmra.mxu0 %v1216
    %v1284 = vpop.f32.mrf.mxu0
    %v1285 = vadd.f32 0.0, %v1284
    %v1286 = vpop.f32.mrf.mxu0
    %1287 = vdwg.mxu0
    %v1288 = vadd.f32 %v1087, %v1285
    %v1289 = vtanh.pop %v1288
    %v1290 = vmul.f32 %v1289, %v255
    %v1291 = vadd.f32 %v1290, %v260
    %v1292 = vmul.f32 %v1291, %v1204
    %1294 = vrot.lane.b32.xlu0 %v1291, 64
    %v1295 = vpop.permute.xlu0 %1294
    %v1297 = vmul.f32 %v1291, %v1295
    %1299 = vrot.lane.b32.xlu0 %v1297, 32
    %v1300 = vpop.permute.xlu0 %1299
    %v1302 = vadd.f32 %v1292, %v1300
    %v1303 = vtanh.pop %v1302
    %1305 = vrot.lane.b32.xlu0 %v1303, 64
    %v1306 = vpop.permute.xlu0 %1305
    %v1308 = vmul.f32 %v1291, %v1306
    %1310 = vrot.lane.b32.xlu0 %v1308, 32
    %v1311 = vpop.permute.xlu0 %1310
    %1313 = vst.msk [vmem:[#allocation2 + $0x8] sm:$0xff] %vm176, %v1311
    %v1314 = vsel %vm176, %v1311, 0
    %1316 = vmatprep.subr.mxu0 0.0
    %1317 = vmatpush1.msra.mxu0 0.0
    %1318 = vmatprep.subr.mxu0 0.0
    %1319 = vmatpush1.msra.mxu0 0.0
    %1320 = vmatprep.subr.mxu0 0.0
    %1321 = vmatpush1.msra.mxu0 0.0
    %1322 = vmatprep.subr.mxu0 0.0
    %1323 = vmatpush1.msra.mxu0 0.0
    %1324 = vmatprep.subr.mxu0 0.0
    %1325 = vmatpush1.msra.mxu0 0.0
    %1326 = vmatprep.subr.mxu0 0.0
    %1327 = vmatpush1.msra.mxu0 0.0
    %1328 = vmatprep.subr.mxu0 0.0
    %1329 = vmatpush1.msra.mxu0 0.0
    %1330 = vmatprep.subr.mxu0 0.0
    %1331 = vmatpush1.msra.mxu0 0.0
    %1332 = vmatprep.subr.mxu0 0.0
    %1333 = vmatpush1.msra.mxu0 0.0
    %1334 = vmatprep.subr.mxu0 0.0
    %1335 = vmatpush1.msra.mxu0 0.0
    %1336 = vmatprep.subr.mxu0 0.0
    %1337 = vmatpush1.msra.mxu0 0.0
    %1338 = vmatprep.subr.mxu0 0.0
    %1339 = vmatpush1.msra.mxu0 0.0
    %1340 = vmatprep.subr.mxu0 0.0
    %1341 = vmatpush1.msra.mxu0 %v985
    %1342 = vmatprep.subr.mxu0 0.0
    %1343 = vmatpush1.msra.mxu0 %v984
    %1344 = vmatprep.subr.mxu0 0.0
    %1345 = vmatpush1.msra.mxu0 %v983
    %1346 = vmatprep.subr.mxu0 0.0
    %1347 = vmatpush1.msra.mxu0 %v982
    %1348 = vmatprep.subr.mxu0 0.0
    %1349 = vmatpush2.msra.mxu0 0.0
    %1350 = vmatprep.subr.mxu0 0.0
    %1351 = vmatpush2.msra.mxu0 0.0
    %1352 = vmatprep.subr.mxu0 0.0
    %1353 = vmatpush2.msra.mxu0 0.0
    %1354 = vmatprep.subr.mxu0 0.0
    %1355 = vmatpush2.msra.mxu0 0.0
    %1356 = vmatprep.subr.mxu0 0.0
    %1357 = vmatpush2.msra.mxu0 0.0
    %1358 = vmatprep.subr.mxu0 0.0
    %1359 = vmatpush2.msra.mxu0 0.0
    %1360 = vmatprep.subr.mxu0 0.0
    %1361 = vmatpush2.msra.mxu0 0.0
    %1362 = vmatprep.subr.mxu0 0.0
    %1363 = vmatpush2.msra.mxu0 0.0
    %1364 = vmatprep.subr.mxu0 0.0
    %1365 = vmatpush2.msra.mxu0 0.0
    %1366 = vmatprep.subr.mxu0 0.0
    %1367 = vmatpush2.msra.mxu0 0.0
    %1368 = vmatprep.subr.mxu0 0.0
    %1369 = vmatpush2.msra.mxu0 0.0
    %1370 = vmatprep.subr.mxu0 0.0
    %1371 = vmatpush2.msra.mxu0 0.0
    %1372 = vmatprep.subr.mxu0 0.0
    %1373 = vmatpush2.msra.mxu0 0.0
    %1374 = vmatprep.subr.mxu0 0.0
    %1375 = vmatpush2.msra.mxu0 0.0
    %1376 = vmatprep.subr.mxu0 0.0
    %1377 = vmatpush2.msra.mxu0 0.0
    %1378 = vmatprep.subr.mxu0 0.0
    %1379 = vmatpush2.msra.mxu0 0.0
    %1380 = vmatprep.mubr.f32.mxu0 0.0
    %1381 = vmatmul.mubr.f32.gmra.mxu0 %v1314
    %v1382 = vpop.f32.mrf.mxu0
    %v1383 = vadd.f32 0.0, %v1382
    %v1384 = vpop.f32.mrf.mxu0
    %1385 = vdwg.mxu0
    %v1386 = vadd.f32 %v1092, %v1383
    %v1387 = vtanh.pop %v1386
    %v1388 = vmul.f32 %v1387, %v255
    %v1389 = vadd.f32 %v1388, %v260
    %v1390 = vmul.f32 %v1389, %v1302
    %1392 = vrot.lane.b32.xlu0 %v1389, 64
    %v1393 = vpop.permute.xlu0 %1392
    %v1395 = vmul.f32 %v1389, %v1393
    %1397 = vrot.lane.b32.xlu0 %v1395, 32
    %v1398 = vpop.permute.xlu0 %1397
    %v1400 = vadd.f32 %v1390, %v1398
    %v1401 = vtanh.pop %v1400
    %1403 = vrot.lane.b32.xlu0 %v1401, 64
    %v1404 = vpop.permute.xlu0 %1403
    %v1406 = vmul.f32 %v1389, %v1404
    %1408 = vrot.lane.b32.xlu0 %v1406, 32
    %v1409 = vpop.permute.xlu0 %1408
    %1411 = vst.msk [vmem:[#allocation2 + $0x10] sm:$0xff] %vm176, %v1409
    %v1412 = vsel %vm176, %v1409, 0
    %1414 = vmatprep.subr.mxu0 0.0
    %1415 = vmatpush1.msra.mxu0 0.0
    %1416 = vmatprep.subr.mxu0 0.0
    %1417 = vmatpush1.msra.mxu0 0.0
    %1418 = vmatprep.subr.mxu0 0.0
    %1419 = vmatpush1.msra.mxu0 0.0
    %1420 = vmatprep.subr.mxu0 0.0
    %1421 = vmatpush1.msra.mxu0 0.0
    %1422 = vmatprep.subr.mxu0 0.0
    %1423 = vmatpush1.msra.mxu0 0.0
    %1424 = vmatprep.subr.mxu0 0.0
    %1425 = vmatpush1.msra.mxu0 0.0
    %1426 = vmatprep.subr.mxu0 0.0
    %1427 = vmatpush1.msra.mxu0 0.0
    %1428 = vmatprep.subr.mxu0 0.0
    %1429 = vmatpush1.msra.mxu0 0.0
    %1430 = vmatprep.subr.mxu0 0.0
    %1431 = vmatpush1.msra.mxu0 0.0
    %1432 = vmatprep.subr.mxu0 0.0
    %1433 = vmatpush1.msra.mxu0 0.0
    %1434 = vmatprep.subr.mxu0 0.0
    %1435 = vmatpush1.msra.mxu0 0.0
    %1436 = vmatprep.subr.mxu0 0.0
    %1437 = vmatpush1.msra.mxu0 0.0
    %1438 = vmatprep.subr.mxu0 0.0
    %1439 = vmatpush1.msra.mxu0 %v985
    %1440 = vmatprep.subr.mxu0 0.0
    %1441 = vmatpush1.msra.mxu0 %v984
    %1442 = vmatprep.subr.mxu0 0.0
    %1443 = vmatpush1.msra.mxu0 %v983
    %1444 = vmatprep.subr.mxu0 0.0
    %1445 = vmatpush1.msra.mxu0 %v982
    %1446 = vmatprep.subr.mxu0 0.0
    %1447 = vmatpush2.msra.mxu0 0.0
    %1448 = vmatprep.subr.mxu0 0.0
    %1449 = vmatpush2.msra.mxu0 0.0
    %1450 = vmatprep.subr.mxu0 0.0
    %1451 = vmatpush2.msra.mxu0 0.0
    %1452 = vmatprep.subr.mxu0 0.0
    %1453 = vmatpush2.msra.mxu0 0.0
    %1454 = vmatprep.subr.mxu0 0.0
    %1455 = vmatpush2.msra.mxu0 0.0
    %1456 = vmatprep.subr.mxu0 0.0
    %1457 = vmatpush2.msra.mxu0 0.0
    %1458 = vmatprep.subr.mxu0 0.0
    %1459 = vmatpush2.msra.mxu0 0.0
    %1460 = vmatprep.subr.mxu0 0.0
    %1461 = vmatpush2.msra.mxu0 0.0
    %1462 = vmatprep.subr.mxu0 0.0
    %1463 = vmatpush2.msra.mxu0 0.0
    %1464 = vmatprep.subr.mxu0 0.0
    %1465 = vmatpush2.msra.mxu0 0.0
    %1466 = vmatprep.subr.mxu0 0.0
    %1467 = vmatpush2.msra.mxu0 0.0
    %1468 = vmatprep.subr.mxu0 0.0
    %1469 = vmatpush2.msra.mxu0 0.0
    %1470 = vmatprep.subr.mxu0 0.0
    %1471 = vmatpush2.msra.mxu0 0.0
    %1472 = vmatprep.subr.mxu0 0.0
    %1473 = vmatpush2.msra.mxu0 0.0
    %1474 = vmatprep.subr.mxu0 0.0
    %1475 = vmatpush2.msra.mxu0 0.0
    %1476 = vmatprep.subr.mxu0 0.0
    %1477 = vmatpush2.msra.mxu0 0.0
    %1478 = vmatprep.mubr.f32.mxu0 0.0
    %1479 = vmatmul.mubr.f32.gmra.mxu0 %v1412
    %v1480 = vpop.f32.mrf.mxu0
    %v1481 = vadd.f32 0.0, %v1480
    %v1482 = vpop.f32.mrf.mxu0
    %1483 = vdwg.mxu0
    %v1484 = vadd.f32 %v1097, %v1481
    %v1485 = vtanh.pop %v1484
    %v1486 = vmul.f32 %v1485, %v255
    %v1487 = vadd.f32 %v1486, %v260
    %v1488 = vmul.f32 %v1487, %v1400
    %1490 = vrot.lane.b32.xlu0 %v1487, 64
    %v1491 = vpop.permute.xlu0 %1490
    %v1493 = vmul.f32 %v1487, %v1491
    %1495 = vrot.lane.b32.xlu0 %v1493, 32
    %v1496 = vpop.permute.xlu0 %1495
    %v1498 = vadd.f32 %v1488, %v1496
    %v1499 = vtanh.pop %v1498
    %1501 = vrot.lane.b32.xlu0 %v1499, 64
    %v1502 = vpop.permute.xlu0 %1501
    %v1504 = vmul.f32 %v1487, %v1502
    %1506 = vrot.lane.b32.xlu0 %v1504, 32
    %v1507 = vpop.permute.xlu0 %1506
    %1509 = vst.msk [vmem:[#allocation2 + $0x18] sm:$0xff] %vm176, %v1507
    %v1510 = vsel %vm176, %v1507, 0
    %1512 = vmatprep.subr.mxu0 0.0
    %1513 = vmatpush1.msra.mxu0 0.0
    %1514 = vmatprep.subr.mxu0 0.0
    %1515 = vmatpush1.msra.mxu0 0.0
    %1516 = vmatprep.subr.mxu0 0.0
    %1517 = vmatpush1.msra.mxu0 0.0
    %1518 = vmatprep.subr.mxu0 0.0
    %1519 = vmatpush1.msra.mxu0 0.0
    %1520 = vmatprep.subr.mxu0 0.0
    %1521 = vmatpush1.msra.mxu0 0.0
    %1522 = vmatprep.subr.mxu0 0.0
    %1523 = vmatpush1.msra.mxu0 0.0
    %1524 = vmatprep.subr.mxu0 0.0
    %1525 = vmatpush1.msra.mxu0 0.0
    %1526 = vmatprep.subr.mxu0 0.0
    %1527 = vmatpush1.msra.mxu0 0.0
    %1528 = vmatprep.subr.mxu0 0.0
    %1529 = vmatpush1.msra.mxu0 0.0
    %1530 = vmatprep.subr.mxu0 0.0
    %1531 = vmatpush1.msra.mxu0 0.0
    %1532 = vmatprep.subr.mxu0 0.0
    %1533 = vmatpush1.msra.mxu0 0.0
    %1534 = vmatprep.subr.mxu0 0.0
    %1535 = vmatpush1.msra.mxu0 0.0
    %1536 = vmatprep.subr.mxu0 0.0
    %1537 = vmatpush1.msra.mxu0 %v985
    %1538 = vmatprep.subr.mxu0 0.0
    %1539 = vmatpush1.msra.mxu0 %v984
    %1540 = vmatprep.subr.mxu0 0.0
    %1541 = vmatpush1.msra.mxu0 %v983
    %1542 = vmatprep.subr.mxu0 0.0
    %1543 = vmatpush1.msra.mxu0 %v982
    %1544 = vmatprep.subr.mxu0 0.0
    %1545 = vmatpush2.msra.mxu0 0.0
    %1546 = vmatprep.subr.mxu0 0.0
    %1547 = vmatpush2.msra.mxu0 0.0
    %1548 = vmatprep.subr.mxu0 0.0
    %1549 = vmatpush2.msra.mxu0 0.0
    %1550 = vmatprep.subr.mxu0 0.0
    %1551 = vmatpush2.msra.mxu0 0.0
    %1552 = vmatprep.subr.mxu0 0.0
    %1553 = vmatpush2.msra.mxu0 0.0
    %1554 = vmatprep.subr.mxu0 0.0
    %1555 = vmatpush2.msra.mxu0 0.0
    %1556 = vmatprep.subr.mxu0 0.0
    %1557 = vmatpush2.msra.mxu0 0.0
    %1558 = vmatprep.subr.mxu0 0.0
    %1559 = vmatpush2.msra.mxu0 0.0
    %1560 = vmatprep.subr.mxu0 0.0
    %1561 = vmatpush2.msra.mxu0 0.0
    %1562 = vmatprep.subr.mxu0 0.0
    %1563 = vmatpush2.msra.mxu0 0.0
    %1564 = vmatprep.subr.mxu0 0.0
    %1565 = vmatpush2.msra.mxu0 0.0
    %1566 = vmatprep.subr.mxu0 0.0
    %1567 = vmatpush2.msra.mxu0 0.0
    %1568 = vmatprep.subr.mxu0 0.0
    %1569 = vmatpush2.msra.mxu0 0.0
    %1570 = vmatprep.subr.mxu0 0.0
    %1571 = vmatpush2.msra.mxu0 0.0
    %1572 = vmatprep.subr.mxu0 0.0
    %1573 = vmatpush2.msra.mxu0 0.0
    %1574 = vmatprep.subr.mxu0 0.0
    %1575 = vmatpush2.msra.mxu0 0.0
    %1576 = vmatprep.mubr.f32.mxu0 0.0
    %1577 = vmatmul.mubr.f32.gmra.mxu0 %v1510
    %v1578 = vpop.f32.mrf.mxu0
    %v1579 = vadd.f32 0.0, %v1578
    %v1580 = vpop.f32.mrf.mxu0
    %1581 = vdwg.mxu0
    %v1582 = vadd.f32 %v1102, %v1579
    %v1583 = vtanh.pop %v1582
    %v1584 = vmul.f32 %v1583, %v255
    %v1585 = vadd.f32 %v1584, %v260
    %v1586 = vmul.f32 %v1585, %v1498
    %1588 = vrot.lane.b32.xlu0 %v1585, 64
    %v1589 = vpop.permute.xlu0 %1588
    %v1591 = vmul.f32 %v1585, %v1589
    %1593 = vrot.lane.b32.xlu0 %v1591, 32
    %v1594 = vpop.permute.xlu0 %1593
    %v1596 = vadd.f32 %v1586, %v1594
    %v1597 = vtanh.pop %v1596
    %1599 = vrot.lane.b32.xlu0 %v1597, 64
    %v1600 = vpop.permute.xlu0 %1599
    %v1602 = vmul.f32 %v1585, %v1600
    %1604 = vrot.lane.b32.xlu0 %v1602, 32
    %v1605 = vpop.permute.xlu0 %1604
    %1607 = vst.msk [vmem:[#allocation2 + $0x20] sm:$0xff] %vm176, %v1605
    %v1608 = vsel %vm176, %v1605, 0
    %1610 = vmatprep.subr.mxu0 0.0
    %1611 = vmatpush1.msra.mxu0 0.0
    %1612 = vmatprep.subr.mxu0 0.0
    %1613 = vmatpush1.msra.mxu0 0.0
    %1614 = vmatprep.subr.mxu0 0.0
    %1615 = vmatpush1.msra.mxu0 0.0
    %1616 = vmatprep.subr.mxu0 0.0
    %1617 = vmatpush1.msra.mxu0 0.0
    %1618 = vmatprep.subr.mxu0 0.0
    %1619 = vmatpush1.msra.mxu0 0.0
    %1620 = vmatprep.subr.mxu0 0.0
    %1621 = vmatpush1.msra.mxu0 0.0
    %1622 = vmatprep.subr.mxu0 0.0
    %1623 = vmatpush1.msra.mxu0 0.0
    %1624 = vmatprep.subr.mxu0 0.0
    %1625 = vmatpush1.msra.mxu0 0.0
    %1626 = vmatprep.subr.mxu0 0.0
    %1627 = vmatpush1.msra.mxu0 0.0
    %1628 = vmatprep.subr.mxu0 0.0
    %1629 = vmatpush1.msra.mxu0 0.0
    %1630 = vmatprep.subr.mxu0 0.0
    %1631 = vmatpush1.msra.mxu0 0.0
    %1632 = vmatprep.subr.mxu0 0.0
    %1633 = vmatpush1.msra.mxu0 0.0
    %1634 = vmatprep.subr.mxu0 0.0
    %1635 = vmatpush1.msra.mxu0 %v985
    %1636 = vmatprep.subr.mxu0 0.0
    %1637 = vmatpush1.msra.mxu0 %v984
    %1638 = vmatprep.subr.mxu0 0.0
    %1639 = vmatpush1.msra.mxu0 %v983
    %1640 = vmatprep.subr.mxu0 0.0
    %1641 = vmatpush1.msra.mxu0 %v982
    %1642 = vmatprep.subr.mxu0 0.0
    %1643 = vmatpush2.msra.mxu0 0.0
    %1644 = vmatprep.subr.mxu0 0.0
    %1645 = vmatpush2.msra.mxu0 0.0
    %1646 = vmatprep.subr.mxu0 0.0
    %1647 = vmatpush2.msra.mxu0 0.0
    %1648 = vmatprep.subr.mxu0 0.0
    %1649 = vmatpush2.msra.mxu0 0.0
    %1650 = vmatprep.subr.mxu0 0.0
    %1651 = vmatpush2.msra.mxu0 0.0
    %1652 = vmatprep.subr.mxu0 0.0
    %1653 = vmatpush2.msra.mxu0 0.0
    %1654 = vmatprep.subr.mxu0 0.0
    %1655 = vmatpush2.msra.mxu0 0.0
    %1656 = vmatprep.subr.mxu0 0.0
    %1657 = vmatpush2.msra.mxu0 0.0
    %1658 = vmatprep.subr.mxu0 0.0
    %1659 = vmatpush2.msra.mxu0 0.0
    %1660 = vmatprep.subr.mxu0 0.0
    %1661 = vmatpush2.msra.mxu0 0.0
    %1662 = vmatprep.subr.mxu0 0.0
    %1663 = vmatpush2.msra.mxu0 0.0
    %1664 = vmatprep.subr.mxu0 0.0
    %1665 = vmatpush2.msra.mxu0 0.0
    %1666 = vmatprep.subr.mxu0 0.0
    %1667 = vmatpush2.msra.mxu0 0.0
    %1668 = vmatprep.subr.mxu0 0.0
    %1669 = vmatpush2.msra.mxu0 0.0
    %1670 = vmatprep.subr.mxu0 0.0
    %1671 = vmatpush2.msra.mxu0 0.0
    %1672 = vmatprep.subr.mxu0 0.0
    %1673 = vmatpush2.msra.mxu0 0.0
    %1674 = vmatprep.mubr.f32.mxu0 0.0
    %1675 = vmatmul.mubr.f32.gmra.mxu0 %v1608
    %v1676 = vpop.f32.mrf.mxu0
    %v1677 = vadd.f32 0.0, %v1676
    %v1678 = vpop.f32.mrf.mxu0
    %1679 = vdwg.mxu0
    %v1680 = vadd.f32 %v1107, %v1677
    %v1681 = vtanh.pop %v1680
    %v1682 = vmul.f32 %v1681, %v255
    %v1683 = vadd.f32 %v1682, %v260
    %v1684 = vmul.f32 %v1683, %v1596
    %1686 = vrot.lane.b32.xlu0 %v1683, 64
    %v1687 = vpop.permute.xlu0 %1686
    %v1689 = vmul.f32 %v1683, %v1687
    %1691 = vrot.lane.b32.xlu0 %v1689, 32
    %v1692 = vpop.permute.xlu0 %1691
    %v1694 = vadd.f32 %v1684, %v1692
    %v1695 = vtanh.pop %v1694
    %1697 = vrot.lane.b32.xlu0 %v1695, 64
    %v1698 = vpop.permute.xlu0 %1697
    %v1700 = vmul.f32 %v1683, %v1698
    %1702 = vrot.lane.b32.xlu0 %v1700, 32
    %v1703 = vpop.permute.xlu0 %1702
    %1705 = vst.msk [vmem:[#allocation2 + $0x28] sm:$0xff] %vm176, %v1703
    %v1706 = vsel %vm176, %v1703, 0
    %1708 = vmatprep.subr.mxu0 0.0
    %1709 = vmatpush1.msra.mxu0 0.0
    %1710 = vmatprep.subr.mxu0 0.0
    %1711 = vmatpush1.msra.mxu0 0.0
    %1712 = vmatprep.subr.mxu0 0.0
    %1713 = vmatpush1.msra.mxu0 0.0
    %1714 = vmatprep.subr.mxu0 0.0
    %1715 = vmatpush1.msra.mxu0 0.0
    %1716 = vmatprep.subr.mxu0 0.0
    %1717 = vmatpush1.msra.mxu0 0.0
    %1718 = vmatprep.subr.mxu0 0.0
    %1719 = vmatpush1.msra.mxu0 0.0
    %1720 = vmatprep.subr.mxu0 0.0
    %1721 = vmatpush1.msra.mxu0 0.0
    %1722 = vmatprep.subr.mxu0 0.0
    %1723 = vmatpush1.msra.mxu0 0.0
    %1724 = vmatprep.subr.mxu0 0.0
    %1725 = vmatpush1.msra.mxu0 0.0
    %1726 = vmatprep.subr.mxu0 0.0
    %1727 = vmatpush1.msra.mxu0 0.0
    %1728 = vmatprep.subr.mxu0 0.0
    %1729 = vmatpush1.msra.mxu0 0.0
    %1730 = vmatprep.subr.mxu0 0.0
    %1731 = vmatpush1.msra.mxu0 0.0
    %1732 = vmatprep.subr.mxu0 0.0
    %1733 = vmatpush1.msra.mxu0 %v985
    %1734 = vmatprep.subr.mxu0 0.0
    %1735 = vmatpush1.msra.mxu0 %v984
    %1736 = vmatprep.subr.mxu0 0.0
    %1737 = vmatpush1.msra.mxu0 %v983
    %1738 = vmatprep.subr.mxu0 0.0
    %1739 = vmatpush1.msra.mxu0 %v982
    %1740 = vmatprep.subr.mxu0 0.0
    %1741 = vmatpush2.msra.mxu0 0.0
    %1742 = vmatprep.subr.mxu0 0.0
    %1743 = vmatpush2.msra.mxu0 0.0
    %1744 = vmatprep.subr.mxu0 0.0
    %1745 = vmatpush2.msra.mxu0 0.0
    %1746 = vmatprep.subr.mxu0 0.0
    %1747 = vmatpush2.msra.mxu0 0.0
    %1748 = vmatprep.subr.mxu0 0.0
    %1749 = vmatpush2.msra.mxu0 0.0
    %1750 = vmatprep.subr.mxu0 0.0
    %1751 = vmatpush2.msra.mxu0 0.0
    %1752 = vmatprep.subr.mxu0 0.0
    %1753 = vmatpush2.msra.mxu0 0.0
    %1754 = vmatprep.subr.mxu0 0.0
    %1755 = vmatpush2.msra.mxu0 0.0
    %1756 = vmatprep.subr.mxu0 0.0
    %1757 = vmatpush2.msra.mxu0 0.0
    %1758 = vmatprep.subr.mxu0 0.0
    %1759 = vmatpush2.msra.mxu0 0.0
    %1760 = vmatprep.subr.mxu0 0.0
    %1761 = vmatpush2.msra.mxu0 0.0
    %1762 = vmatprep.subr.mxu0 0.0
    %1763 = vmatpush2.msra.mxu0 0.0
    %1764 = vmatprep.subr.mxu0 0.0
    %1765 = vmatpush2.msra.mxu0 0.0
    %1766 = vmatprep.subr.mxu0 0.0
    %1767 = vmatpush2.msra.mxu0 0.0
    %1768 = vmatprep.subr.mxu0 0.0
    %1769 = vmatpush2.msra.mxu0 0.0
    %1770 = vmatprep.subr.mxu0 0.0
    %1771 = vmatpush2.msra.mxu0 0.0
    %1772 = vmatprep.mubr.f32.mxu0 0.0
    %1773 = vmatmul.mubr.f32.gmra.mxu0 %v1706
    %v1774 = vpop.f32.mrf.mxu0
    %v1775 = vadd.f32 0.0, %v1774
    %v1776 = vpop.f32.mrf.mxu0
    %1777 = vdwg.mxu0
    %v1778 = vadd.f32 %v1112, %v1775
    %v1779 = vtanh.pop %v1778
    %v1780 = vmul.f32 %v1779, %v255
    %v1781 = vadd.f32 %v1780, %v260
    %v1782 = vmul.f32 %v1781, %v1694
    %1784 = vrot.lane.b32.xlu0 %v1781, 64
    %v1785 = vpop.permute.xlu0 %1784
    %v1787 = vmul.f32 %v1781, %v1785
    %1789 = vrot.lane.b32.xlu0 %v1787, 32
    %v1790 = vpop.permute.xlu0 %1789
    %v1792 = vadd.f32 %v1782, %v1790
    %v1793 = vtanh.pop %v1792
    %1795 = vrot.lane.b32.xlu0 %v1793, 64
    %v1796 = vpop.permute.xlu0 %1795
    %v1798 = vmul.f32 %v1781, %v1796
    %1800 = vrot.lane.b32.xlu0 %v1798, 32
    %v1801 = vpop.permute.xlu0 %1800
    %1803 = vst.msk [vmem:[#allocation2 + $0x30] sm:$0xff] %vm176, %v1801
    %v1804 = vsel %vm176, %v1801, 0
    %1806 = vmatprep.subr.mxu0 0.0
    %1807 = vmatpush1.msra.mxu0 0.0
    %1808 = vmatprep.subr.mxu0 0.0
    %1809 = vmatpush1.msra.mxu0 0.0
    %1810 = vmatprep.subr.mxu0 0.0
    %1811 = vmatpush1.msra.mxu0 0.0
    %1812 = vmatprep.subr.mxu0 0.0
    %1813 = vmatpush1.msra.mxu0 0.0
    %1814 = vmatprep.subr.mxu0 0.0
    %1815 = vmatpush1.msra.mxu0 0.0
    %1816 = vmatprep.subr.mxu0 0.0
    %1817 = vmatpush1.msra.mxu0 0.0
    %1818 = vmatprep.subr.mxu0 0.0
    %1819 = vmatpush1.msra.mxu0 0.0
    %1820 = vmatprep.subr.mxu0 0.0
    %1821 = vmatpush1.msra.mxu0 0.0
    %1822 = vmatprep.subr.mxu0 0.0
    %1823 = vmatpush1.msra.mxu0 0.0
    %1824 = vmatprep.subr.mxu0 0.0
    %1825 = vmatpush1.msra.mxu0 0.0
    %1826 = vmatprep.subr.mxu0 0.0
    %1827 = vmatpush1.msra.mxu0 0.0
    %1828 = vmatprep.subr.mxu0 0.0
    %1829 = vmatpush1.msra.mxu0 0.0
    %1830 = vmatprep.subr.mxu0 0.0
    %1831 = vmatpush1.msra.mxu0 %v985
    %1832 = vmatprep.subr.mxu0 0.0
    %1833 = vmatpush1.msra.mxu0 %v984
    %1834 = vmatprep.subr.mxu0 0.0
    %1835 = vmatpush1.msra.mxu0 %v983
    %1836 = vmatprep.subr.mxu0 0.0
    %1837 = vmatpush1.msra.mxu0 %v982
    %1838 = vmatprep.subr.mxu0 0.0
    %1839 = vmatpush2.msra.mxu0 0.0
    %1840 = vmatprep.subr.mxu0 0.0
    %1841 = vmatpush2.msra.mxu0 0.0
    %1842 = vmatprep.subr.mxu0 0.0
    %1843 = vmatpush2.msra.mxu0 0.0
    %1844 = vmatprep.subr.mxu0 0.0
    %1845 = vmatpush2.msra.mxu0 0.0
    %1846 = vmatprep.subr.mxu0 0.0
    %1847 = vmatpush2.msra.mxu0 0.0
    %1848 = vmatprep.subr.mxu0 0.0
    %1849 = vmatpush2.msra.mxu0 0.0
    %1850 = vmatprep.subr.mxu0 0.0
    %1851 = vmatpush2.msra.mxu0 0.0
    %1852 = vmatprep.subr.mxu0 0.0
    %1853 = vmatpush2.msra.mxu0 0.0
    %1854 = vmatprep.subr.mxu0 0.0
    %1855 = vmatpush2.msra.mxu0 0.0
    %1856 = vmatprep.subr.mxu0 0.0
    %1857 = vmatpush2.msra.mxu0 0.0
    %1858 = vmatprep.subr.mxu0 0.0
    %1859 = vmatpush2.msra.mxu0 0.0
    %1860 = vmatprep.subr.mxu0 0.0
    %1861 = vmatpush2.msra.mxu0 0.0
    %1862 = vmatprep.subr.mxu0 0.0
    %1863 = vmatpush2.msra.mxu0 0.0
    %1864 = vmatprep.subr.mxu0 0.0
    %1865 = vmatpush2.msra.mxu0 0.0
    %1866 = vmatprep.subr.mxu0 0.0
    %1867 = vmatpush2.msra.mxu0 0.0
    %1868 = vmatprep.subr.mxu0 0.0
    %1869 = vmatpush2.msra.mxu0 0.0
    %1870 = vmatprep.mubr.f32.mxu0 0.0
    %1871 = vmatmul.mubr.f32.gmra.mxu0 %v1804
    %v1872 = vpop.f32.mrf.mxu0
    %v1873 = vadd.f32 0.0, %v1872
    %v1874 = vpop.f32.mrf.mxu0
    %1875 = vdwg.mxu0
    %v1876 = vadd.f32 %v1117, %v1873
    %v1877 = vtanh.pop %v1876
    %v1878 = vmul.f32 %v1877, %v255
    %v1879 = vadd.f32 %v1878, %v260
    %v1880 = vmul.f32 %v1879, %v1792
    %1882 = vrot.lane.b32.xlu0 %v1879, 64
    %v1883 = vpop.permute.xlu0 %1882
    %v1885 = vmul.f32 %v1879, %v1883
    %1887 = vrot.lane.b32.xlu0 %v1885, 32
    %v1888 = vpop.permute.xlu0 %1887
    %v1890 = vadd.f32 %v1880, %v1888
    %v1891 = vtanh.pop %v1890
    %1893 = vrot.lane.b32.xlu0 %v1891, 64
    %v1894 = vpop.permute.xlu0 %1893
    %v1896 = vmul.f32 %v1879, %v1894
    %1898 = vrot.lane.b32.xlu0 %v1896, 32
    %v1899 = vpop.permute.xlu0 %1898
    %1901 = vst.msk [vmem:[#allocation2 + $0x38] sm:$0xff] %vm176, %v1899
    %v1902 = vld [vmem:[#allocation2] sm:$0xff]
    %v1903 = vld [vmem:[#allocation2 + $0x8] sm:$0xff]
    %v1904 = vld [vmem:[#allocation2 + $0x10] sm:$0xff]
    %v1905 = vld [vmem:[#allocation2 + $0x18] sm:$0xff]
    %v1906 = vld [vmem:[#allocation2 + $0x20] sm:$0xff]
    %v1907 = vld [vmem:[#allocation2 + $0x28] sm:$0xff]
    %v1908 = vld [vmem:[#allocation2 + $0x30] sm:$0xff]
    %v1909 = vld [vmem:[#allocation2 + $0x38] sm:$0xff]
    %v1910 = vld [vmem:[#allocation3 + $0x88] sm:$0xff]
    %v1911 = vld [vmem:[#allocation3 + $0x90] sm:$0xff]
    %v1912 = vld [vmem:[#allocation3 + $0x98] sm:$0xff]
    %v1913 = vld [vmem:[#allocation3 + $0xa0] sm:$0xff]
    %v1914 = vld [vmem:[#allocation3 + $0xa8] sm:$0x1]
    %v1915 = vlaneseq
    %v1916 = vshrl.u32 %v1915, 7
    %v1917 = vsub.s32 0, %v1916
    %v1918 = vrot.slane %v1914, %v1917
    %v1920 = vsel %vm176, %v1909, 0
    %1922 = vmatprep.subr.mxu0 0.0
    %1923 = vmatpush1.msra.mxu0 0.0
    %1924 = vmatprep.subr.mxu0 0.0
    %1925 = vmatpush1.msra.mxu0 0.0
    %1926 = vmatprep.subr.mxu0 0.0
    %1927 = vmatpush1.msra.mxu0 0.0
    %1928 = vmatprep.subr.mxu0 0.0
    %1929 = vmatpush1.msra.mxu0 0.0
    %1930 = vmatprep.subr.mxu0 0.0
    %1931 = vmatpush1.msra.mxu0 0.0
    %1932 = vmatprep.subr.mxu0 0.0
    %1933 = vmatpush1.msra.mxu0 0.0
    %1934 = vmatprep.subr.mxu0 0.0
    %1935 = vmatpush1.msra.mxu0 0.0
    %1936 = vmatprep.subr.mxu0 0.0
    %1937 = vmatpush1.msra.mxu0 0.0
    %1938 = vmatprep.subr.mxu0 0.0
    %1939 = vmatpush1.msra.mxu0 0.0
    %1940 = vmatprep.subr.mxu0 0.0
    %1941 = vmatpush1.msra.mxu0 0.0
    %1942 = vmatprep.subr.mxu0 0.0
    %1943 = vmatpush1.msra.mxu0 0.0
    %1944 = vmatprep.subr.mxu0 0.0
    %1945 = vmatpush1.msra.mxu0 0.0
    %1946 = vmatprep.subr.mxu0 0.0
    %1947 = vmatpush1.msra.mxu0 %v1913
    %1948 = vmatprep.subr.mxu0 0.0
    %1949 = vmatpush1.msra.mxu0 %v1912
    %1950 = vmatprep.subr.mxu0 0.0
    %1951 = vmatpush1.msra.mxu0 %v1911
    %1952 = vmatprep.subr.mxu0 0.0
    %1953 = vmatpush1.msra.mxu0 %v1910
    %1954 = vmatprep.subr.mxu0 0.0
    %1955 = vmatpush2.msra.mxu0 0.0
    %1956 = vmatprep.subr.mxu0 0.0
    %1957 = vmatpush2.msra.mxu0 0.0
    %1958 = vmatprep.subr.mxu0 0.0
    %1959 = vmatpush2.msra.mxu0 0.0
    %1960 = vmatprep.subr.mxu0 0.0
    %1961 = vmatpush2.msra.mxu0 0.0
    %1962 = vmatprep.subr.mxu0 0.0
    %1963 = vmatpush2.msra.mxu0 0.0
    %1964 = vmatprep.subr.mxu0 0.0
    %1965 = vmatpush2.msra.mxu0 0.0
    %1966 = vmatprep.subr.mxu0 0.0
    %1967 = vmatpush2.msra.mxu0 0.0
    %1968 = vmatprep.subr.mxu0 0.0
    %1969 = vmatpush2.msra.mxu0 0.0
    %1970 = vmatprep.subr.mxu0 0.0
    %1971 = vmatpush2.msra.mxu0 0.0
    %1972 = vmatprep.subr.mxu0 0.0
    %1973 = vmatpush2.msra.mxu0 0.0
    %1974 = vmatprep.subr.mxu0 0.0
    %1975 = vmatpush2.msra.mxu0 0.0
    %1976 = vmatprep.subr.mxu0 0.0
    %1977 = vmatpush2.msra.mxu0 0.0
    %1978 = vmatprep.subr.mxu0 0.0
    %1979 = vmatpush2.msra.mxu0 0.0
    %1980 = vmatprep.subr.mxu0 0.0
    %1981 = vmatpush2.msra.mxu0 0.0
    %1982 = vmatprep.subr.mxu0 0.0
    %1983 = vmatpush2.msra.mxu0 0.0
    %1984 = vmatprep.subr.mxu0 0.0
    %1985 = vmatpush2.msra.mxu0 0.0
    %1986 = vmatprep.mubr.f32.mxu0 0.0
    %1987 = vmatmul.mubr.f32.gmra.mxu0 %v1920
    %v1988 = vpop.f32.mrf.mxu0
    %v1989 = vadd.f32 %v1918, %v1988
    %v1990 = vpop.f32.mrf.mxu0
    %1991 = vdwg.mxu0
    %v1992 = vld [vmem:[#allocation3 + $0xb0] sm:$0xff]
    %v1993 = vld [vmem:[#allocation3 + $0xb8] sm:$0xff]
    %v1994 = vld [vmem:[#allocation3 + $0xc0] sm:$0xff]
    %v1995 = vld [vmem:[#allocation3 + $0xc8] sm:$0xff]
    %v1996 = vld [vmem:[#allocation3 + $0xd0] sm:$0x1]
    %v1997 = vlaneseq
    %v1998 = vshrl.u32 %v1997, 7
    %v1999 = vsub.s32 0, %v1998
    %v2000 = vrot.slane %v1996, %v1999
    %v2002 = vsel %vm176, %v1902, 0
    %v2005 = vsel %vm176, %v1903, 0
    %v2008 = vsel %vm176, %v1904, 0
    %v2011 = vsel %vm176, %v1905, 0
    %v2014 = vsel %vm176, %v1906, 0
    %v2017 = vsel %vm176, %v1907, 0
    %v2020 = vsel %vm176, %v1908, 0
    %2022 = vmatprep.subr.mxu0 0.0
    %2023 = vmatpush1.msra.mxu0 0.0
    %2024 = vmatprep.subr.mxu0 0.0
    %2025 = vmatpush1.msra.mxu0 0.0
    %2026 = vmatprep.subr.mxu0 0.0
    %2027 = vmatpush1.msra.mxu0 0.0
    %2028 = vmatprep.subr.mxu0 0.0
    %2029 = vmatpush1.msra.mxu0 0.0
    %2030 = vmatprep.subr.mxu0 0.0
    %2031 = vmatpush1.msra.mxu0 0.0
    %2032 = vmatprep.subr.mxu0 0.0
    %2033 = vmatpush1.msra.mxu0 0.0
    %2034 = vmatprep.subr.mxu0 0.0
    %2035 = vmatpush1.msra.mxu0 0.0
    %2036 = vmatprep.subr.mxu0 0.0
    %2037 = vmatpush1.msra.mxu0 0.0
    %2038 = vmatprep.subr.mxu0 0.0
    %2039 = vmatpush1.msra.mxu0 0.0
    %2040 = vmatprep.subr.mxu0 0.0
    %2041 = vmatpush1.msra.mxu0 0.0
    %2042 = vmatprep.subr.mxu0 0.0
    %2043 = vmatpush1.msra.mxu0 0.0
    %2044 = vmatprep.subr.mxu0 0.0
    %2045 = vmatpush1.msra.mxu0 0.0
    %2046 = vmatprep.subr.mxu0 0.0
    %2047 = vmatpush1.msra.mxu0 %v1995
    %2048 = vmatprep.subr.mxu0 0.0
    %2049 = vmatpush1.msra.mxu0 %v1994
    %2050 = vmatprep.subr.mxu0 0.0
    %2051 = vmatpush1.msra.mxu0 %v1993
    %2052 = vmatprep.subr.mxu0 0.0
    %2053 = vmatpush1.msra.mxu0 %v1992
    %2054 = vmatprep.subr.mxu0 0.0
    %2055 = vmatpush2.msra.mxu0 0.0
    %2056 = vmatprep.subr.mxu0 0.0
    %2057 = vmatpush2.msra.mxu0 0.0
    %2058 = vmatprep.subr.mxu0 0.0
    %2059 = vmatpush2.msra.mxu0 0.0
    %2060 = vmatprep.subr.mxu0 0.0
    %2061 = vmatpush2.msra.mxu0 0.0
    %2062 = vmatprep.subr.mxu0 0.0
    %2063 = vmatpush2.msra.mxu0 0.0
    %2064 = vmatprep.subr.mxu0 0.0
    %2065 = vmatpush2.msra.mxu0 0.0
    %2066 = vmatprep.subr.mxu0 0.0
    %2067 = vmatpush2.msra.mxu0 0.0
    %2068 = vmatprep.subr.mxu0 0.0
    %2069 = vmatpush2.msra.mxu0 0.0
    %2070 = vmatprep.subr.mxu0 0.0
    %2071 = vmatpush2.msra.mxu0 0.0
    %2072 = vmatprep.subr.mxu0 0.0
    %2073 = vmatpush2.msra.mxu0 0.0
    %2074 = vmatprep.subr.mxu0 0.0
    %2075 = vmatpush2.msra.mxu0 0.0
    %2076 = vmatprep.subr.mxu0 0.0
    %2077 = vmatpush2.msra.mxu0 0.0
    %2078 = vmatprep.subr.mxu0 0.0
    %2079 = vmatpush2.msra.mxu0 0.0
    %2080 = vmatprep.subr.mxu0 0.0
    %2081 = vmatpush2.msra.mxu0 0.0
    %2082 = vmatprep.subr.mxu0 0.0
    %2083 = vmatpush2.msra.mxu0 0.0
    %2084 = vmatprep.subr.mxu0 0.0
    %2085 = vmatpush2.msra.mxu0 0.0
    %2086 = vmatprep.mubr.f32.mxu0 0.0
    %2087 = vmatmul.mubr.f32.gmra.mxu0 %v2002
    %v2088 = vpop.f32.mrf.mxu0
    %v2089 = vadd.f32 %v2000, %v2088
    %v2090 = vpop.f32.mrf.mxu0
    %2091 = vmatprep.mubr.f32.mxu0 0.0
    %2092 = vmatmul.mubr.f32.gmra.mxu0 %v2005
    %v2093 = vpop.f32.mrf.mxu0
    %v2094 = vadd.f32 %v2000, %v2093
    %v2095 = vpop.f32.mrf.mxu0
    %2096 = vmatprep.mubr.f32.mxu0 0.0
    %2097 = vmatmul.mubr.f32.gmra.mxu0 %v2008
    %v2098 = vpop.f32.mrf.mxu0
    %v2099 = vadd.f32 %v2000, %v2098
    %v2100 = vpop.f32.mrf.mxu0
    %2101 = vmatprep.mubr.f32.mxu0 0.0
    %2102 = vmatmul.mubr.f32.gmra.mxu0 %v2011
    %v2103 = vpop.f32.mrf.mxu0
    %v2104 = vadd.f32 %v2000, %v2103
    %v2105 = vpop.f32.mrf.mxu0
    %2106 = vmatprep.mubr.f32.mxu0 0.0
    %2107 = vmatmul.mubr.f32.gmra.mxu0 %v2014
    %v2108 = vpop.f32.mrf.mxu0
    %v2109 = vadd.f32 %v2000, %v2108
    %v2110 = vpop.f32.mrf.mxu0
    %2111 = vmatprep.mubr.f32.mxu0 0.0
    %2112 = vmatmul.mubr.f32.gmra.mxu0 %v2017
    %v2113 = vpop.f32.mrf.mxu0
    %v2114 = vadd.f32 %v2000, %v2113
    %v2115 = vpop.f32.mrf.mxu0
    %2116 = vmatprep.mubr.f32.mxu0 0.0
    %2117 = vmatmul.mubr.f32.gmra.mxu0 %v2020
    %v2118 = vpop.f32.mrf.mxu0
    %v2119 = vadd.f32 %v2000, %v2118
    %v2120 = vpop.f32.mrf.mxu0
    %2121 = vmatprep.mubr.f32.mxu0 0.0
    %2122 = vmatmul.mubr.f32.gmra.mxu0 %v1920
    %v2123 = vpop.f32.mrf.mxu0
    %v2124 = vadd.f32 %v2000, %v2123
    %v2125 = vpop.f32.mrf.mxu0
    %2126 = vdwg.mxu0
    %v2127 = vmul.f32 %v2089, %v1989
    %v2128 = vmul.f32 %v2094, %v1989
    %v2129 = vmul.f32 %v2099, %v1989
    %v2130 = vmul.f32 %v2104, %v1989
    %v2131 = vmul.f32 %v2109, %v1989
    %v2132 = vmul.f32 %v2114, %v1989
    %v2133 = vmul.f32 %v2119, %v1989
    %v2134 = vmul.f32 %v2124, %v1989
    %v2135 = vld [vmem:[#allocation3 + $0xd8] sm:$0xff]
    %v2136 = vld [vmem:[#allocation3 + $0xe0] sm:$0xff]
    %v2137 = vld [vmem:[#allocation3 + $0xe8] sm:$0xff]
    %v2138 = vld [vmem:[#allocation3 + $0xf0] sm:$0xff]
    %v2139 = vld [vmem:[#allocation3 + $0xf8] sm:$0xff]
    %v2140 = vld [vmem:[#allocation3 + $0x100] sm:$0xff]
    %v2141 = vld [vmem:[#allocation3 + $0x108] sm:$0xff]
    %v2142 = vld [vmem:[#allocation3 + $0x110] sm:$0xff]
    %vm2143 = vcmask 523264
    %v2145 = vsel %vm2143, %v2127, 0
    %v2148 = vsel %vm2143, %v2128, 0
    %v2151 = vsel %vm2143, %v2129, 0
    %v2154 = vsel %vm2143, %v2130, 0
    %v2157 = vsel %vm2143, %v2131, 0
    %v2160 = vsel %vm2143, %v2132, 0
    %v2163 = vsel %vm2143, %v2133, 0
    %v2166 = vsel %vm2143, %v2134, 0
    %2168 = vmatprep.subr.mxu0 0.0
    %2169 = vmatpush1.msra.mxu0 0.0
    %2170 = vmatprep.subr.mxu0 0.0
    %2171 = vmatpush1.msra.mxu0 0.0
    %2172 = vmatprep.subr.mxu0 0.0
    %2173 = vmatpush1.msra.mxu0 0.0
    %2174 = vmatprep.subr.mxu0 0.0
    %2175 = vmatpush1.msra.mxu0 0.0
    %2176 = vmatprep.subr.mxu0 0.0
    %2177 = vmatpush1.msra.mxu0 0.0
    %2178 = vmatprep.subr.mxu0 0.0
    %2179 = vmatpush1.msra.mxu0 0.0
    %2180 = vmatprep.subr.mxu0 0.0
    %2181 = vmatpush1.msra.mxu0 0.0
    %2182 = vmatprep.subr.mxu0 0.0
    %2183 = vmatpush1.msra.mxu0 0.0
    %2184 = vmatprep.subr.mxu0 0.0
    %2185 = vmatpush1.msra.mxu0 %v2142
    %2186 = vmatprep.subr.mxu0 0.0
    %2187 = vmatpush1.msra.mxu0 %v2141
    %2188 = vmatprep.subr.mxu0 0.0
    %2189 = vmatpush1.msra.mxu0 %v2140
    %2190 = vmatprep.subr.mxu0 0.0
    %2191 = vmatpush1.msra.mxu0 %v2139
    %2192 = vmatprep.subr.mxu0 0.0
    %2193 = vmatpush1.msra.mxu0 %v2138
    %2194 = vmatprep.subr.mxu0 0.0
    %2195 = vmatpush1.msra.mxu0 %v2137
    %2196 = vmatprep.subr.mxu0 0.0
    %2197 = vmatpush1.msra.mxu0 %v2136
    %2198 = vmatprep.subr.mxu0 0.0
    %2199 = vmatpush1.msra.mxu0 %v2135
    %2200 = vmatprep.subr.mxu0 0.0
    %2201 = vmatpush2.msra.mxu0 0.0
    %2202 = vmatprep.subr.mxu0 0.0
    %2203 = vmatpush2.msra.mxu0 0.0
    %2204 = vmatprep.subr.mxu0 0.0
    %2205 = vmatpush2.msra.mxu0 0.0
    %2206 = vmatprep.subr.mxu0 0.0
    %2207 = vmatpush2.msra.mxu0 0.0
    %2208 = vmatprep.subr.mxu0 0.0
    %2209 = vmatpush2.msra.mxu0 0.0
    %2210 = vmatprep.subr.mxu0 0.0
    %2211 = vmatpush2.msra.mxu0 0.0
    %2212 = vmatprep.subr.mxu0 0.0
    %2213 = vmatpush2.msra.mxu0 0.0
    %2214 = vmatprep.subr.mxu0 0.0
    %2215 = vmatpush2.msra.mxu0 0.0
    %2216 = vmatprep.subr.mxu0 0.0
    %2217 = vmatpush2.msra.mxu0 0.0
    %2218 = vmatprep.subr.mxu0 0.0
    %2219 = vmatpush2.msra.mxu0 0.0
    %2220 = vmatprep.subr.mxu0 0.0
    %2221 = vmatpush2.msra.mxu0 0.0
    %2222 = vmatprep.subr.mxu0 0.0
    %2223 = vmatpush2.msra.mxu0 0.0
    %2224 = vmatprep.subr.mxu0 0.0
    %2225 = vmatpush2.msra.mxu0 0.0
    %2226 = vmatprep.subr.mxu0 0.0
    %2227 = vmatpush2.msra.mxu0 0.0
    %2228 = vmatprep.subr.mxu0 0.0
    %2229 = vmatpush2.msra.mxu0 0.0
    %2230 = vmatprep.subr.mxu0 0.0
    %2231 = vmatpush2.msra.mxu0 0.0
    %2232 = vmatprep.mubr.f32.mxu0 0.0
    %2233 = vmatmul.mubr.f32.gmra.mxu0 %v2145
    %v2234 = vpop.f32.mrf.mxu0
    %v2235 = vadd.f32 0.0, %v2234
    %v2236 = vpop.f32.mrf.mxu0
    %2237 = vmatprep.mubr.f32.mxu0 0.0
    %2238 = vmatmul.mubr.f32.gmra.mxu0 %v2148
    %v2239 = vpop.f32.mrf.mxu0
    %v2240 = vadd.f32 0.0, %v2239
    %v2241 = vpop.f32.mrf.mxu0
    %2242 = vmatprep.mubr.f32.mxu0 0.0
    %2243 = vmatmul.mubr.f32.gmra.mxu0 %v2151
    %v2244 = vpop.f32.mrf.mxu0
    %v2245 = vadd.f32 0.0, %v2244
    %v2246 = vpop.f32.mrf.mxu0
    %2247 = vmatprep.mubr.f32.mxu0 0.0
    %2248 = vmatmul.mubr.f32.gmra.mxu0 %v2154
    %v2249 = vpop.f32.mrf.mxu0
    %v2250 = vadd.f32 0.0, %v2249
    %v2251 = vpop.f32.mrf.mxu0
    %2252 = vmatprep.mubr.f32.mxu0 0.0
    %2253 = vmatmul.mubr.f32.gmra.mxu0 %v2157
    %v2254 = vpop.f32.mrf.mxu0
    %v2255 = vadd.f32 0.0, %v2254
    %v2256 = vpop.f32.mrf.mxu0
    %2257 = vmatprep.mubr.f32.mxu0 0.0
    %2258 = vmatmul.mubr.f32.gmra.mxu0 %v2160
    %v2259 = vpop.f32.mrf.mxu0
    %v2260 = vadd.f32 0.0, %v2259
    %v2261 = vpop.f32.mrf.mxu0
    %2262 = vmatprep.mubr.f32.mxu0 0.0
    %2263 = vmatmul.mubr.f32.gmra.mxu0 %v2163
    %v2264 = vpop.f32.mrf.mxu0
    %v2265 = vadd.f32 0.0, %v2264
    %v2266 = vpop.f32.mrf.mxu0
    %2267 = vmatprep.mubr.f32.mxu0 0.0
    %2268 = vmatmul.mubr.f32.gmra.mxu0 %v2166
    %v2269 = vpop.f32.mrf.mxu0
    %v2270 = vadd.f32 0.0, %v2269
    %v2271 = vpop.f32.mrf.mxu0
    %2272 = vdwg.mxu0
    %v2273 = vmax.f32 %v2235, %v2255
    %v2274 = vmax.f32 %v2240, %v2260
    %v2275 = vmax.f32 %v2245, %v2265
    %v2276 = vmax.f32 %v2250, %v2270
    %v2277 = vmax.f32 %v2273, %v2275
    %v2278 = vmax.f32 %v2274, %v2276
    %v2279 = vmax.f32 %v2277, %v2278
    %v2280 = vsub.f32 %v2235, %v2279
    %v2281 = vsub.f32 %v2240, %v2279
    %v2282 = vsub.f32 %v2245, %v2279
    %v2283 = vsub.f32 %v2250, %v2279
    %v2284 = vsub.f32 %v2255, %v2279
    %v2285 = vsub.f32 %v2260, %v2279
    %v2286 = vsub.f32 %v2265, %v2279
    %v2287 = vsub.f32 %v2270, %v2279
    %v2288 = vmul.f32 %v2280, 1.442695
    %v2289 = vpow.pop %v2288
    %v2290 = vmul.f32 %v2281, 1.442695
    %v2291 = vpow.pop %v2290
    %v2292 = vmul.f32 %v2282, 1.442695
    %v2293 = vpow.pop %v2292
    %v2294 = vmul.f32 %v2283, 1.442695
    %v2295 = vpow.pop %v2294
    %v2296 = vmul.f32 %v2284, 1.442695
    %v2297 = vpow.pop %v2296
    %v2298 = vmul.f32 %v2285, 1.442695
    %v2299 = vpow.pop %v2298
    %v2300 = vmul.f32 %v2286, 1.442695
    %v2301 = vpow.pop %v2300
    %v2302 = vmul.f32 %v2287, 1.442695
    %v2303 = vpow.pop %v2302
    %v2304 = vld [vmem:[#allocation3 + $0x120] sm:$0xff]
    %v2306 = vsel %vm2143, %v2304, 0
    %2308 = vmatprep.subr.mxu0 0.0
    %2309 = vmatpush1.msra.mxu0 0.0
    %2310 = vmatprep.subr.mxu0 0.0
    %2311 = vmatpush1.msra.mxu0 0.0
    %2312 = vmatprep.subr.mxu0 0.0
    %2313 = vmatpush1.msra.mxu0 0.0
    %2314 = vmatprep.subr.mxu0 0.0
    %2315 = vmatpush1.msra.mxu0 0.0
    %2316 = vmatprep.subr.mxu0 0.0
    %2317 = vmatpush1.msra.mxu0 0.0
    %2318 = vmatprep.subr.mxu0 0.0
    %2319 = vmatpush1.msra.mxu0 0.0
    %2320 = vmatprep.subr.mxu0 0.0
    %2321 = vmatpush1.msra.mxu0 0.0
    %2322 = vmatprep.subr.mxu0 0.0
    %2323 = vmatpush1.msra.mxu0 0.0
    %2324 = vmatprep.subr.mxu0 0.0
    %2325 = vmatpush1.msra.mxu0 %v2303
    %2326 = vmatprep.subr.mxu0 0.0
    %2327 = vmatpush1.msra.mxu0 %v2301
    %2328 = vmatprep.subr.mxu0 0.0
    %2329 = vmatpush1.msra.mxu0 %v2299
    %2330 = vmatprep.subr.mxu0 0.0
    %2331 = vmatpush1.msra.mxu0 %v2297
    %2332 = vmatprep.subr.mxu0 0.0
    %2333 = vmatpush1.msra.mxu0 %v2295
    %2334 = vmatprep.subr.mxu0 0.0
    %2335 = vmatpush1.msra.mxu0 %v2293
    %2336 = vmatprep.subr.mxu0 0.0
    %2337 = vmatpush1.msra.mxu0 %v2291
    %2338 = vmatprep.subr.mxu0 0.0
    %2339 = vmatpush1.msra.mxu0 %v2289
    %2340 = vmatprep.subr.mxu0 0.0
    %2341 = vmatpush2.msra.mxu0 0.0
    %2342 = vmatprep.subr.mxu0 0.0
    %2343 = vmatpush2.msra.mxu0 0.0
    %2344 = vmatprep.subr.mxu0 0.0
    %2345 = vmatpush2.msra.mxu0 0.0
    %2346 = vmatprep.subr.mxu0 0.0
    %2347 = vmatpush2.msra.mxu0 0.0
    %2348 = vmatprep.subr.mxu0 0.0
    %2349 = vmatpush2.msra.mxu0 0.0
    %2350 = vmatprep.subr.mxu0 0.0
    %2351 = vmatpush2.msra.mxu0 0.0
    %2352 = vmatprep.subr.mxu0 0.0
    %2353 = vmatpush2.msra.mxu0 0.0
    %2354 = vmatprep.subr.mxu0 0.0
    %2355 = vmatpush2.msra.mxu0 0.0
    %2356 = vmatprep.subr.mxu0 0.0
    %2357 = vmatpush2.msra.mxu0 0.0
    %2358 = vmatprep.subr.mxu0 0.0
    %2359 = vmatpush2.msra.mxu0 0.0
    %2360 = vmatprep.subr.mxu0 0.0
    %2361 = vmatpush2.msra.mxu0 0.0
    %2362 = vmatprep.subr.mxu0 0.0
    %2363 = vmatpush2.msra.mxu0 0.0
    %2364 = vmatprep.subr.mxu0 0.0
    %2365 = vmatpush2.msra.mxu0 0.0
    %2366 = vmatprep.subr.mxu0 0.0
    %2367 = vmatpush2.msra.mxu0 0.0
    %2368 = vmatprep.subr.mxu0 0.0
    %2369 = vmatpush2.msra.mxu0 0.0
    %2370 = vmatprep.subr.mxu0 0.0
    %2371 = vmatpush2.msra.mxu0 0.0
    %2372 = vmatprep.mubr.f32.mxu0 0.0
    %2373 = vmatmul.mubr.f32.gmra.mxu0 %v2306
    %v2374 = vpop.f32.mrf.mxu0
    %v2375 = vadd.f32 0.0, %v2374
    %v2376 = vpop.f32.mrf.mxu0
    %2377 = vdwg.mxu0
    %v2378 = vrcp.pop %v2375
    %v2379 = vmul.f32 %v2375, %v2378
    %v2380 = vsub.f32 2.0, %v2379
    %v2381 = vmul.f32 %v2378, %v2380
    %v2382 = vld [vmem:[#allocation3 + $0x118] sm:$0xf]
    %vm2383 = vcmask 31744
    %v2385 = vsel %vm2383, %v2289, 0
    %v2388 = vsel %vm2383, %v2291, 0
    %v2391 = vsel %vm2383, %v2293, 0
    %v2394 = vsel %vm2383, %v2295, 0
    %v2397 = vsel %vm2383, %v2297, 0
    %v2400 = vsel %vm2383, %v2299, 0
    %v2403 = vsel %vm2383, %v2301, 0
    %v2406 = vsel %vm2383, %v2303, 0
    %vm2408 = vcmask 1043456
    %v2410 = vsel %vm2408, %v2382, 0
    %2412 = vmatprep.subr.mxu0 0.0
    %2413 = vmatpush1.msra.mxu0 0.0
    %2414 = vmatprep.subr.mxu0 0.0
    %2415 = vmatpush1.msra.mxu0 0.0
    %2416 = vmatprep.subr.mxu0 0.0
    %2417 = vmatpush1.msra.mxu0 0.0
    %2418 = vmatprep.subr.mxu0 0.0
    %2419 = vmatpush1.msra.mxu0 0.0
    %2420 = vmatprep.subr.mxu0 0.0
    %2421 = vmatpush1.msra.mxu0 0.0
    %2422 = vmatprep.subr.mxu0 0.0
    %2423 = vmatpush1.msra.mxu0 0.0
    %2424 = vmatprep.subr.mxu0 0.0
    %2425 = vmatpush1.msra.mxu0 0.0
    %2426 = vmatprep.subr.mxu0 0.0
    %2427 = vmatpush1.msra.mxu0 0.0
    %2428 = vmatprep.subr.mxu0 0.0
    %2429 = vmatpush1.msra.mxu0 0.0
    %2430 = vmatprep.subr.mxu0 0.0
    %2431 = vmatpush1.msra.mxu0 0.0
    %2432 = vmatprep.subr.mxu0 0.0
    %2433 = vmatpush1.msra.mxu0 0.0
    %2434 = vmatprep.subr.mxu0 0.0
    %2435 = vmatpush1.msra.mxu0 0.0
    %2436 = vmatprep.subr.mxu0 0.0
    %2437 = vmatpush1.msra.mxu0 0.0
    %2438 = vmatprep.subr.mxu0 0.0
    %2439 = vmatpush1.msra.mxu0 0.0
    %2440 = vmatprep.subr.mxu0 0.0
    %2441 = vmatpush1.msra.mxu0 0.0
    %2442 = vmatprep.subr.mxu0 0.0
    %2443 = vmatpush1.msra.mxu0 %v2410
    %2444 = vmatprep.subr.mxu0 0.0
    %2445 = vmatpush2.msra.mxu0 0.0
    %2446 = vmatprep.subr.mxu0 0.0
    %2447 = vmatpush2.msra.mxu0 0.0
    %2448 = vmatprep.subr.mxu0 0.0
    %2449 = vmatpush2.msra.mxu0 0.0
    %2450 = vmatprep.subr.mxu0 0.0
    %2451 = vmatpush2.msra.mxu0 0.0
    %2452 = vmatprep.subr.mxu0 0.0
    %2453 = vmatpush2.msra.mxu0 0.0
    %2454 = vmatprep.subr.mxu0 0.0
    %2455 = vmatpush2.msra.mxu0 0.0
    %2456 = vmatprep.subr.mxu0 0.0
    %2457 = vmatpush2.msra.mxu0 0.0
    %2458 = vmatprep.subr.mxu0 0.0
    %2459 = vmatpush2.msra.mxu0 0.0
    %2460 = vmatprep.subr.mxu0 0.0
    %2461 = vmatpush2.msra.mxu0 0.0
    %2462 = vmatprep.subr.mxu0 0.0
    %2463 = vmatpush2.msra.mxu0 0.0
    %2464 = vmatprep.subr.mxu0 0.0
    %2465 = vmatpush2.msra.mxu0 0.0
    %2466 = vmatprep.subr.mxu0 0.0
    %2467 = vmatpush2.msra.mxu0 0.0
    %2468 = vmatprep.subr.mxu0 0.0
    %2469 = vmatpush2.msra.mxu0 0.0
    %2470 = vmatprep.subr.mxu0 0.0
    %2471 = vmatpush2.msra.mxu0 0.0
    %2472 = vmatprep.subr.mxu0 0.0
    %2473 = vmatpush2.msra.mxu0 0.0
    %2474 = vmatprep.subr.mxu0 0.0
    %2475 = vmatpush2.msra.mxu0 0.0
    %2476 = vmatprep.mubr.f32.mxu0 0.0
    %2477 = vmatmul.mubr.f32.gmra.mxu0 %v2385
    %v2478 = vpop.f32.mrf.mxu0
    %v2479 = vadd.f32 0.0, %v2478
    %v2480 = vpop.f32.mrf.mxu0
    %2481 = vmatprep.mubr.f32.mxu0 0.0
    %2482 = vmatmul.mubr.f32.gmra.mxu0 %v2388
    %v2483 = vpop.f32.mrf.mxu0
    %v2484 = vadd.f32 0.0, %v2483
    %v2485 = vpop.f32.mrf.mxu0
    %2486 = vmatprep.mubr.f32.mxu0 0.0
    %2487 = vmatmul.mubr.f32.gmra.mxu0 %v2391
    %v2488 = vpop.f32.mrf.mxu0
    %v2489 = vadd.f32 0.0, %v2488
    %v2490 = vpop.f32.mrf.mxu0
    %2491 = vmatprep.mubr.f32.mxu0 0.0
    %2492 = vmatmul.mubr.f32.gmra.mxu0 %v2394
    %v2493 = vpop.f32.mrf.mxu0
    %v2494 = vadd.f32 0.0, %v2493
    %v2495 = vpop.f32.mrf.mxu0
    %2496 = vmatprep.mubr.f32.mxu0 0.0
    %2497 = vmatmul.mubr.f32.gmra.mxu0 %v2397
    %v2498 = vpop.f32.mrf.mxu0
    %v2499 = vadd.f32 0.0, %v2498
    %v2500 = vpop.f32.mrf.mxu0
    %2501 = vmatprep.mubr.f32.mxu0 0.0
    %2502 = vmatmul.mubr.f32.gmra.mxu0 %v2400
    %v2503 = vpop.f32.mrf.mxu0
    %v2504 = vadd.f32 0.0, %v2503
    %v2505 = vpop.f32.mrf.mxu0
    %2506 = vmatprep.mubr.f32.mxu0 0.0
    %2507 = vmatmul.mubr.f32.gmra.mxu0 %v2403
    %v2508 = vpop.f32.mrf.mxu0
    %v2509 = vadd.f32 0.0, %v2508
    %v2510 = vpop.f32.mrf.mxu0
    %2511 = vmatprep.mubr.f32.mxu0 0.0
    %2512 = vmatmul.mubr.f32.gmra.mxu0 %v2406
    %v2513 = vpop.f32.mrf.mxu0
    %v2514 = vadd.f32 0.0, %v2513
    %v2515 = vpop.f32.mrf.mxu0
    %2516 = vdwg.mxu0
    %v2517 = vmul.f32 %v2479, %v2089
    %v2518 = vmul.f32 %v2484, %v2094
    %v2519 = vmul.f32 %v2489, %v2099
    %v2520 = vmul.f32 %v2494, %v2104
    %v2521 = vmul.f32 %v2499, %v2109
    %v2522 = vmul.f32 %v2504, %v2114
    %v2523 = vmul.f32 %v2509, %v2119
    %v2524 = vmul.f32 %v2514, %v2124
    %2525 = vmatprep.subr.mxu0 0.0
    %2526 = vmatpush1.msra.mxu0 0.0
    %2527 = vmatprep.subr.mxu0 0.0
    %2528 = vmatpush1.msra.mxu0 0.0
    %2529 = vmatprep.subr.mxu0 0.0
    %2530 = vmatpush1.msra.mxu0 0.0
    %2531 = vmatprep.subr.mxu0 0.0
    %2532 = vmatpush1.msra.mxu0 0.0
    %2533 = vmatprep.subr.mxu0 0.0
    %2534 = vmatpush1.msra.mxu0 0.0
    %2535 = vmatprep.subr.mxu0 0.0
    %2536 = vmatpush1.msra.mxu0 0.0
    %2537 = vmatprep.subr.mxu0 0.0
    %2538 = vmatpush1.msra.mxu0 0.0
    %2539 = vmatprep.subr.mxu0 0.0
    %2540 = vmatpush1.msra.mxu0 0.0
    %2541 = vmatprep.subr.mxu0 0.0
    %2542 = vmatpush1.msra.mxu0 %v2524
    %2543 = vmatprep.subr.mxu0 0.0
    %2544 = vmatpush1.msra.mxu0 %v2523
    %2545 = vmatprep.subr.mxu0 0.0
    %2546 = vmatpush1.msra.mxu0 %v2522
    %2547 = vmatprep.subr.mxu0 0.0
    %2548 = vmatpush1.msra.mxu0 %v2521
    %2549 = vmatprep.subr.mxu0 0.0
    %2550 = vmatpush1.msra.mxu0 %v2520
    %2551 = vmatprep.subr.mxu0 0.0
    %2552 = vmatpush1.msra.mxu0 %v2519
    %2553 = vmatprep.subr.mxu0 0.0
    %2554 = vmatpush1.msra.mxu0 %v2518
    %2555 = vmatprep.subr.mxu0 0.0
    %2556 = vmatpush1.msra.mxu0 %v2517
    %2557 = vmatprep.subr.mxu0 0.0
    %2558 = vmatpush2.msra.mxu0 0.0
    %2559 = vmatprep.subr.mxu0 0.0
    %2560 = vmatpush2.msra.mxu0 0.0
    %2561 = vmatprep.subr.mxu0 0.0
    %2562 = vmatpush2.msra.mxu0 0.0
    %2563 = vmatprep.subr.mxu0 0.0
    %2564 = vmatpush2.msra.mxu0 0.0
    %2565 = vmatprep.subr.mxu0 0.0
    %2566 = vmatpush2.msra.mxu0 0.0
    %2567 = vmatprep.subr.mxu0 0.0
    %2568 = vmatpush2.msra.mxu0 0.0
    %2569 = vmatprep.subr.mxu0 0.0
    %2570 = vmatpush2.msra.mxu0 0.0
    %2571 = vmatprep.subr.mxu0 0.0
    %2572 = vmatpush2.msra.mxu0 0.0
    %2573 = vmatprep.subr.mxu0 0.0
    %2574 = vmatpush2.msra.mxu0 0.0
    %2575 = vmatprep.subr.mxu0 0.0
    %2576 = vmatpush2.msra.mxu0 0.0
    %2577 = vmatprep.subr.mxu0 0.0
    %2578 = vmatpush2.msra.mxu0 0.0
    %2579 = vmatprep.subr.mxu0 0.0
    %2580 = vmatpush2.msra.mxu0 0.0
    %2581 = vmatprep.subr.mxu0 0.0
    %2582 = vmatpush2.msra.mxu0 0.0
    %2583 = vmatprep.subr.mxu0 0.0
    %2584 = vmatpush2.msra.mxu0 0.0
    %2585 = vmatprep.subr.mxu0 0.0
    %2586 = vmatpush2.msra.mxu0 0.0
    %2587 = vmatprep.subr.mxu0 0.0
    %2588 = vmatpush2.msra.mxu0 0.0
    %2589 = vmatprep.mubr.f32.mxu0 0.0
    %2590 = vmatmul.mubr.f32.gmra.mxu0 %v2306
    %v2591 = vpop.f32.mrf.mxu0
    %v2592 = vadd.f32 0.0, %v2591
    %v2593 = vpop.f32.mrf.mxu0
    %2594 = vdwg.mxu0
    %v2596 = vsel %vm2383, %v2381, 0
    %2598 = vmatprep.subr.mxu0 0.0
    %2599 = vmatpush1.msra.mxu0 0.0
    %2600 = vmatprep.subr.mxu0 0.0
    %2601 = vmatpush1.msra.mxu0 0.0
    %2602 = vmatprep.subr.mxu0 0.0
    %2603 = vmatpush1.msra.mxu0 0.0
    %2604 = vmatprep.subr.mxu0 0.0
    %2605 = vmatpush1.msra.mxu0 0.0
    %2606 = vmatprep.subr.mxu0 0.0
    %2607 = vmatpush1.msra.mxu0 0.0
    %2608 = vmatprep.subr.mxu0 0.0
    %2609 = vmatpush1.msra.mxu0 0.0
    %2610 = vmatprep.subr.mxu0 0.0
    %2611 = vmatpush1.msra.mxu0 0.0
    %2612 = vmatprep.subr.mxu0 0.0
    %2613 = vmatpush1.msra.mxu0 0.0
    %2614 = vmatprep.subr.mxu0 0.0
    %2615 = vmatpush1.msra.mxu0 0.0
    %2616 = vmatprep.subr.mxu0 0.0
    %2617 = vmatpush1.msra.mxu0 0.0
    %2618 = vmatprep.subr.mxu0 0.0
    %2619 = vmatpush1.msra.mxu0 0.0
    %2620 = vmatprep.subr.mxu0 0.0
    %2621 = vmatpush1.msra.mxu0 0.0
    %2622 = vmatprep.subr.mxu0 0.0
    %2623 = vmatpush1.msra.mxu0 0.0
    %2624 = vmatprep.subr.mxu0 0.0
    %2625 = vmatpush1.msra.mxu0 0.0
    %2626 = vmatprep.subr.mxu0 0.0
    %2627 = vmatpush1.msra.mxu0 0.0
    %2628 = vmatprep.subr.mxu0 0.0
    %2629 = vmatpush1.msra.mxu0 %v2410
    %2630 = vmatprep.subr.mxu0 0.0
    %2631 = vmatpush2.msra.mxu0 0.0
    %2632 = vmatprep.subr.mxu0 0.0
    %2633 = vmatpush2.msra.mxu0 0.0
    %2634 = vmatprep.subr.mxu0 0.0
    %2635 = vmatpush2.msra.mxu0 0.0
    %2636 = vmatprep.subr.mxu0 0.0
    %2637 = vmatpush2.msra.mxu0 0.0
    %2638 = vmatprep.subr.mxu0 0.0
    %2639 = vmatpush2.msra.mxu0 0.0
    %2640 = vmatprep.subr.mxu0 0.0
    %2641 = vmatpush2.msra.mxu0 0.0
    %2642 = vmatprep.subr.mxu0 0.0
    %2643 = vmatpush2.msra.mxu0 0.0
    %2644 = vmatprep.subr.mxu0 0.0
    %2645 = vmatpush2.msra.mxu0 0.0
    %2646 = vmatprep.subr.mxu0 0.0
    %2647 = vmatpush2.msra.mxu0 0.0
    %2648 = vmatprep.subr.mxu0 0.0
    %2649 = vmatpush2.msra.mxu0 0.0
    %2650 = vmatprep.subr.mxu0 0.0
    %2651 = vmatpush2.msra.mxu0 0.0
    %2652 = vmatprep.subr.mxu0 0.0
    %2653 = vmatpush2.msra.mxu0 0.0
    %2654 = vmatprep.subr.mxu0 0.0
    %2655 = vmatpush2.msra.mxu0 0.0
    %2656 = vmatprep.subr.mxu0 0.0
    %2657 = vmatpush2.msra.mxu0 0.0
    %2658 = vmatprep.subr.mxu0 0.0
    %2659 = vmatpush2.msra.mxu0 0.0
    %2660 = vmatprep.subr.mxu0 0.0
    %2661 = vmatpush2.msra.mxu0 0.0
    %2662 = vmatprep.mubr.f32.mxu0 0.0
    %2663 = vmatmul.mubr.f32.gmra.mxu0 %v2596
    %v2664 = vpop.f32.mrf.mxu0
    %v2665 = vadd.f32 0.0, %v2664
    %v2666 = vpop.f32.mrf.mxu0
    %2667 = vdwg.mxu0
    %v2668 = vmul.f32 %v2592, %v2665
    %v2669 = vld [vmem:[#allocation3 + $0x128] sm:$0xff]
    %v2670 = vld [vmem:[#allocation3 + $0x130] sm:$0xff]
    %v2671 = vld [vmem:[#allocation3 + $0x138] sm:$0xff]
    %v2672 = vld [vmem:[#allocation3 + $0x140] sm:$0xff]
    %v2673 = vld [vmem:[#allocation3 + $0x148] sm:$0xff]
    %v2674 = vld [vmem:[#allocation3 + $0x150] sm:$0xff]
    %v2675 = vld [vmem:[#allocation3 + $0x158] sm:$0xff]
    %v2676 = vld [vmem:[#allocation3 + $0x160] sm:$0xff]
    %v2677 = vld [vmem:[#allocation3 + $0x168] sm:$0x1]
    %v2678 = vlaneseq
    %v2679 = vshrl.u32 %v2678, 7
    %v2680 = vsub.s32 0, %v2679
    %v2681 = vrot.slane %v2677, %v2680
    %v2683 = vsel %vm2143, %v2668, 0
    %2685 = vmatprep.subr.mxu0 0.0
    %2686 = vmatpush1.msra.mxu0 0.0
    %2687 = vmatprep.subr.mxu0 0.0
    %2688 = vmatpush1.msra.mxu0 0.0
    %2689 = vmatprep.subr.mxu0 0.0
    %2690 = vmatpush1.msra.mxu0 0.0
    %2691 = vmatprep.subr.mxu0 0.0
    %2692 = vmatpush1.msra.mxu0 0.0
    %2693 = vmatprep.subr.mxu0 0.0
    %2694 = vmatpush1.msra.mxu0 0.0
    %2695 = vmatprep.subr.mxu0 0.0
    %2696 = vmatpush1.msra.mxu0 0.0
    %2697 = vmatprep.subr.mxu0 0.0
    %2698 = vmatpush1.msra.mxu0 0.0
    %2699 = vmatprep.subr.mxu0 0.0
    %2700 = vmatpush1.msra.mxu0 0.0
    %2701 = vmatprep.subr.mxu0 0.0
    %2702 = vmatpush1.msra.mxu0 %v2676
    %2703 = vmatprep.subr.mxu0 0.0
    %2704 = vmatpush1.msra.mxu0 %v2675
    %2705 = vmatprep.subr.mxu0 0.0
    %2706 = vmatpush1.msra.mxu0 %v2674
    %2707 = vmatprep.subr.mxu0 0.0
    %2708 = vmatpush1.msra.mxu0 %v2673
    %2709 = vmatprep.subr.mxu0 0.0
    %2710 = vmatpush1.msra.mxu0 %v2672
    %2711 = vmatprep.subr.mxu0 0.0
    %2712 = vmatpush1.msra.mxu0 %v2671
    %2713 = vmatprep.subr.mxu0 0.0
    %2714 = vmatpush1.msra.mxu0 %v2670
    %2715 = vmatprep.subr.mxu0 0.0
    %2716 = vmatpush1.msra.mxu0 %v2669
    %2717 = vmatprep.subr.mxu0 0.0
    %2718 = vmatpush2.msra.mxu0 0.0
    %2719 = vmatprep.subr.mxu0 0.0
    %2720 = vmatpush2.msra.mxu0 0.0
    %2721 = vmatprep.subr.mxu0 0.0
    %2722 = vmatpush2.msra.mxu0 0.0
    %2723 = vmatprep.subr.mxu0 0.0
    %2724 = vmatpush2.msra.mxu0 0.0
    %2725 = vmatprep.subr.mxu0 0.0
    %2726 = vmatpush2.msra.mxu0 0.0
    %2727 = vmatprep.subr.mxu0 0.0
    %2728 = vmatpush2.msra.mxu0 0.0
    %2729 = vmatprep.subr.mxu0 0.0
    %2730 = vmatpush2.msra.mxu0 0.0
    %2731 = vmatprep.subr.mxu0 0.0
    %2732 = vmatpush2.msra.mxu0 0.0
    %2733 = vmatprep.subr.mxu0 0.0
    %2734 = vmatpush2.msra.mxu0 0.0
    %2735 = vmatprep.subr.mxu0 0.0
    %2736 = vmatpush2.msra.mxu0 0.0
    %2737 = vmatprep.subr.mxu0 0.0
    %2738 = vmatpush2.msra.mxu0 0.0
    %2739 = vmatprep.subr.mxu0 0.0
    %2740 = vmatpush2.msra.mxu0 0.0
    %2741 = vmatprep.subr.mxu0 0.0
    %2742 = vmatpush2.msra.mxu0 0.0
    %2743 = vmatprep.subr.mxu0 0.0
    %2744 = vmatpush2.msra.mxu0 0.0
    %2745 = vmatprep.subr.mxu0 0.0
    %2746 = vmatpush2.msra.mxu0 0.0
    %2747 = vmatprep.subr.mxu0 0.0
    %2748 = vmatpush2.msra.mxu0 0.0
    %2749 = vmatprep.mubr.f32.mxu0 0.0
    %2750 = vmatmul.mubr.f32.gmra.mxu0 %v2683
    %v2751 = vpop.f32.mrf.mxu0
    %v2752 = vadd.f32 %v2681, %v2751
    %v2753 = vpop.f32.mrf.mxu0
    %2754 = vdwg.mxu0
    %v2755 = vmax.f32 %v2752, 0.0
    %v2756 = vld [vmem:[#allocation3 + $0x390] sm:$0x1]
    %v2757 = vld [vmem:[#allocation3 + $0x170] sm:$0xff]
    %v2758 = vld [vmem:[#allocation3 + $0x178] sm:$0xff]
    %v2759 = vld [vmem:[#allocation3 + $0x180] sm:$0xff]
    %v2760 = vld [vmem:[#allocation3 + $0x188] sm:$0xff]
    %v2761 = vlaneseq
    %v2762 = vshrl.u32 %v2761, 7
    %v2763 = vsub.s32 0, %v2762
    %v2764 = vrot.slane %v2756, %v2763
    %v2766 = vsel %vm176, %v2755, 0
    %2768 = vmatprep.subr.mxu0 0.0
    %2769 = vmatpush1.msra.mxu0 0.0
    %2770 = vmatprep.subr.mxu0 0.0
    %2771 = vmatpush1.msra.mxu0 0.0
    %2772 = vmatprep.subr.mxu0 0.0
    %2773 = vmatpush1.msra.mxu0 0.0
    %2774 = vmatprep.subr.mxu0 0.0
    %2775 = vmatpush1.msra.mxu0 0.0
    %2776 = vmatprep.subr.mxu0 0.0
    %2777 = vmatpush1.msra.mxu0 0.0
    %2778 = vmatprep.subr.mxu0 0.0
    %2779 = vmatpush1.msra.mxu0 0.0
    %2780 = vmatprep.subr.mxu0 0.0
    %2781 = vmatpush1.msra.mxu0 0.0
    %2782 = vmatprep.subr.mxu0 0.0
    %2783 = vmatpush1.msra.mxu0 0.0
    %2784 = vmatprep.subr.mxu0 0.0
    %2785 = vmatpush1.msra.mxu0 0.0
    %2786 = vmatprep.subr.mxu0 0.0
    %2787 = vmatpush1.msra.mxu0 0.0
    %2788 = vmatprep.subr.mxu0 0.0
    %2789 = vmatpush1.msra.mxu0 0.0
    %2790 = vmatprep.subr.mxu0 0.0
    %2791 = vmatpush1.msra.mxu0 0.0
    %2792 = vmatprep.subr.mxu0 0.0
    %2793 = vmatpush1.msra.mxu0 %v2760
    %2794 = vmatprep.subr.mxu0 0.0
    %2795 = vmatpush1.msra.mxu0 %v2759
    %2796 = vmatprep.subr.mxu0 0.0
    %2797 = vmatpush1.msra.mxu0 %v2758
    %2798 = vmatprep.subr.mxu0 0.0
    %2799 = vmatpush1.msra.mxu0 %v2757
    %2800 = vmatprep.subr.mxu0 0.0
    %2801 = vmatpush2.msra.mxu0 0.0
    %2802 = vmatprep.subr.mxu0 0.0
    %2803 = vmatpush2.msra.mxu0 0.0
    %2804 = vmatprep.subr.mxu0 0.0
    %2805 = vmatpush2.msra.mxu0 0.0
    %2806 = vmatprep.subr.mxu0 0.0
    %2807 = vmatpush2.msra.mxu0 0.0
    %2808 = vmatprep.subr.mxu0 0.0
    %2809 = vmatpush2.msra.mxu0 0.0
    %2810 = vmatprep.subr.mxu0 0.0
    %2811 = vmatpush2.msra.mxu0 0.0
    %2812 = vmatprep.subr.mxu0 0.0
    %2813 = vmatpush2.msra.mxu0 0.0
    %2814 = vmatprep.subr.mxu0 0.0
    %2815 = vmatpush2.msra.mxu0 0.0
    %2816 = vmatprep.subr.mxu0 0.0
    %2817 = vmatpush2.msra.mxu0 0.0
    %2818 = vmatprep.subr.mxu0 0.0
    %2819 = vmatpush2.msra.mxu0 0.0
    %2820 = vmatprep.subr.mxu0 0.0
    %2821 = vmatpush2.msra.mxu0 0.0
    %2822 = vmatprep.subr.mxu0 0.0
    %2823 = vmatpush2.msra.mxu0 0.0
    %2824 = vmatprep.subr.mxu0 0.0
    %2825 = vmatpush2.msra.mxu0 0.0
    %2826 = vmatprep.subr.mxu0 0.0
    %2827 = vmatpush2.msra.mxu0 0.0
    %2828 = vmatprep.subr.mxu0 0.0
    %2829 = vmatpush2.msra.mxu0 0.0
    %2830 = vmatprep.subr.mxu0 0.0
    %2831 = vmatpush2.msra.mxu0 0.0
    %2832 = vmatprep.mubr.f32.mxu0 0.0
    %2833 = vmatmul.mubr.f32.gmra.mxu0 %v2766
    %v2834 = vpop.f32.mrf.mxu0
    %v2835 = vadd.f32 %v2764, %v2834
    %v2836 = vpop.f32.mrf.mxu0
    %2837 = vdwg.mxu0
    %v2838 = vmax.f32 %v2835, 0.0
    %v2839 = vld [vmem:[#allocation3 + $0x391] sm:$0x1]
    %v2840 = vld [vmem:[#allocation3 + $0x190] sm:$0xff]
    %v2841 = vld [vmem:[#allocation3 + $0x198] sm:$0xff]
    %v2842 = vld [vmem:[#allocation3 + $0x1a0] sm:$0xff]
    %v2843 = vld [vmem:[#allocation3 + $0x1a8] sm:$0xff]
    %v2844 = vld [vmem:[#allocation3 + $0x1b0] sm:$0xff]
    %v2845 = vld [vmem:[#allocation3 + $0x1b8] sm:$0xff]
    %v2846 = vld [vmem:[#allocation3 + $0x1c0] sm:$0xff]
    %v2847 = vld [vmem:[#allocation3 + $0x1c8] sm:$0xff]
    %v2848 = vld [vmem:[#allocation3 + $0x1d0] sm:$0xff]
    %v2849 = vld [vmem:[#allocation3 + $0x1d8] sm:$0xff]
    %v2850 = vld [vmem:[#allocation3 + $0x1e0] sm:$0xff]
    %v2851 = vld [vmem:[#allocation3 + $0x1e8] sm:$0xff]
    %v2852 = vld [vmem:[#allocation3 + $0x1f0] sm:$0xff]
    %v2853 = vld [vmem:[#allocation3 + $0x1f8] sm:$0xff]
    %v2854 = vld [vmem:[#allocation3 + $0x200] sm:$0xff]
    %v2855 = vld [vmem:[#allocation3 + $0x208] sm:$0xff]
    %v2856 = vlaneseq
    %v2857 = vshrl.u32 %v2856, 7
    %v2858 = vsub.s32 0, %v2857
    %v2859 = vrot.slane %v2839, %v2858
    %2860 = vmatprep.subr.mxu0 0.0
    %2861 = vmatpush1.msra.mxu0 %v2855
    %2862 = vmatprep.subr.mxu0 0.0
    %2863 = vmatpush1.msra.mxu0 %v2854
    %2864 = vmatprep.subr.mxu0 0.0
    %2865 = vmatpush1.msra.mxu0 %v2853
    %2866 = vmatprep.subr.mxu0 0.0
    %2867 = vmatpush1.msra.mxu0 %v2852
    %2868 = vmatprep.subr.mxu0 0.0
    %2869 = vmatpush1.msra.mxu0 %v2851
    %2870 = vmatprep.subr.mxu0 0.0
    %2871 = vmatpush1.msra.mxu0 %v2850
    %2872 = vmatprep.subr.mxu0 0.0
    %2873 = vmatpush1.msra.mxu0 %v2849
    %2874 = vmatprep.subr.mxu0 0.0
    %2875 = vmatpush1.msra.mxu0 %v2848
    %2876 = vmatprep.subr.mxu0 0.0
    %2877 = vmatpush1.msra.mxu0 %v2847
    %2878 = vmatprep.subr.mxu0 0.0
    %2879 = vmatpush1.msra.mxu0 %v2846
    %2880 = vmatprep.subr.mxu0 0.0
    %2881 = vmatpush1.msra.mxu0 %v2845
    %2882 = vmatprep.subr.mxu0 0.0
    %2883 = vmatpush1.msra.mxu0 %v2844
    %2884 = vmatprep.subr.mxu0 0.0
    %2885 = vmatpush1.msra.mxu0 %v2843
    %2886 = vmatprep.subr.mxu0 0.0
    %2887 = vmatpush1.msra.mxu0 %v2842
    %2888 = vmatprep.subr.mxu0 0.0
    %2889 = vmatpush1.msra.mxu0 %v2841
    %2890 = vmatprep.subr.mxu0 0.0
    %2891 = vmatpush1.msra.mxu0 %v2840
    %2892 = vmatprep.subr.mxu0 0.0
    %2893 = vmatpush2.msra.mxu0 0.0
    %2894 = vmatprep.subr.mxu0 0.0
    %2895 = vmatpush2.msra.mxu0 0.0
    %2896 = vmatprep.subr.mxu0 0.0
    %2897 = vmatpush2.msra.mxu0 0.0
    %2898 = vmatprep.subr.mxu0 0.0
    %2899 = vmatpush2.msra.mxu0 0.0
    %2900 = vmatprep.subr.mxu0 0.0
    %2901 = vmatpush2.msra.mxu0 0.0
    %2902 = vmatprep.subr.mxu0 0.0
    %2903 = vmatpush2.msra.mxu0 0.0
    %2904 = vmatprep.subr.mxu0 0.0
    %2905 = vmatpush2.msra.mxu0 0.0
    %2906 = vmatprep.subr.mxu0 0.0
    %2907 = vmatpush2.msra.mxu0 0.0
    %2908 = vmatprep.subr.mxu0 0.0
    %2909 = vmatpush2.msra.mxu0 0.0
    %2910 = vmatprep.subr.mxu0 0.0
    %2911 = vmatpush2.msra.mxu0 0.0
    %2912 = vmatprep.subr.mxu0 0.0
    %2913 = vmatpush2.msra.mxu0 0.0
    %2914 = vmatprep.subr.mxu0 0.0
    %2915 = vmatpush2.msra.mxu0 0.0
    %2916 = vmatprep.subr.mxu0 0.0
    %2917 = vmatpush2.msra.mxu0 0.0
    %2918 = vmatprep.subr.mxu0 0.0
    %2919 = vmatpush2.msra.mxu0 0.0
    %2920 = vmatprep.subr.mxu0 0.0
    %2921 = vmatpush2.msra.mxu0 0.0
    %2922 = vmatprep.subr.mxu0 0.0
    %2923 = vmatpush2.msra.mxu0 0.0
    %2924 = vmatprep.mubr.f32.mxu0 0.0
    %2925 = vmatmul.mubr.f32.gmra.mxu0 %v2838
    %v2926 = vpop.f32.mrf.mxu0
    %v2927 = vadd.f32 %v2859, %v2926
    %v2928 = vpop.f32.mrf.mxu0
    %2929 = vdwg.mxu0
    %v2930 = vmax.f32 %v2927, 0.0
    %v2931 = vld [vmem:[#allocation3 + $0x392] sm:$0x1]
    %v2932 = vld [vmem:[#allocation3 + $0x210] sm:$0xff]
    %v2933 = vld [vmem:[#allocation3 + $0x218] sm:$0xff]
    %v2934 = vld [vmem:[#allocation3 + $0x220] sm:$0xff]
    %v2935 = vld [vmem:[#allocation3 + $0x228] sm:$0xff]
    %v2936 = vld [vmem:[#allocation3 + $0x230] sm:$0xff]
    %v2937 = vld [vmem:[#allocation3 + $0x238] sm:$0xff]
    %v2938 = vld [vmem:[#allocation3 + $0x240] sm:$0xff]
    %v2939 = vld [vmem:[#allocation3 + $0x248] sm:$0xff]
    %v2940 = vld [vmem:[#allocation3 + $0x250] sm:$0xff]
    %v2941 = vld [vmem:[#allocation3 + $0x258] sm:$0xff]
    %v2942 = vld [vmem:[#allocation3 + $0x260] sm:$0xff]
    %v2943 = vld [vmem:[#allocation3 + $0x268] sm:$0xff]
    %v2944 = vld [vmem:[#allocation3 + $0x270] sm:$0xff]
    %v2945 = vld [vmem:[#allocation3 + $0x278] sm:$0xff]
    %v2946 = vld [vmem:[#allocation3 + $0x280] sm:$0xff]
    %v2947 = vld [vmem:[#allocation3 + $0x288] sm:$0xff]
    %v2948 = vlaneseq
    %v2949 = vshrl.u32 %v2948, 7
    %v2950 = vsub.s32 0, %v2949
    %v2951 = vrot.slane %v2931, %v2950
    %2952 = vmatprep.subr.mxu0 0.0
    %2953 = vmatpush1.msra.mxu0 %v2947
    %2954 = vmatprep.subr.mxu0 0.0
    %2955 = vmatpush1.msra.mxu0 %v2946
    %2956 = vmatprep.subr.mxu0 0.0
    %2957 = vmatpush1.msra.mxu0 %v2945
    %2958 = vmatprep.subr.mxu0 0.0
    %2959 = vmatpush1.msra.mxu0 %v2944
    %2960 = vmatprep.subr.mxu0 0.0
    %2961 = vmatpush1.msra.mxu0 %v2943
    %2962 = vmatprep.subr.mxu0 0.0
    %2963 = vmatpush1.msra.mxu0 %v2942
    %2964 = vmatprep.subr.mxu0 0.0
    %2965 = vmatpush1.msra.mxu0 %v2941
    %2966 = vmatprep.subr.mxu0 0.0
    %2967 = vmatpush1.msra.mxu0 %v2940
    %2968 = vmatprep.subr.mxu0 0.0
    %2969 = vmatpush1.msra.mxu0 %v2939
    %2970 = vmatprep.subr.mxu0 0.0
    %2971 = vmatpush1.msra.mxu0 %v2938
    %2972 = vmatprep.subr.mxu0 0.0
    %2973 = vmatpush1.msra.mxu0 %v2937
    %2974 = vmatprep.subr.mxu0 0.0
    %2975 = vmatpush1.msra.mxu0 %v2936
    %2976 = vmatprep.subr.mxu0 0.0
    %2977 = vmatpush1.msra.mxu0 %v2935
    %2978 = vmatprep.subr.mxu0 0.0
    %2979 = vmatpush1.msra.mxu0 %v2934
    %2980 = vmatprep.subr.mxu0 0.0
    %2981 = vmatpush1.msra.mxu0 %v2933
    %2982 = vmatprep.subr.mxu0 0.0
    %2983 = vmatpush1.msra.mxu0 %v2932
    %2984 = vmatprep.subr.mxu0 0.0
    %2985 = vmatpush2.msra.mxu0 0.0
    %2986 = vmatprep.subr.mxu0 0.0
    %2987 = vmatpush2.msra.mxu0 0.0
    %2988 = vmatprep.subr.mxu0 0.0
    %2989 = vmatpush2.msra.mxu0 0.0
    %2990 = vmatprep.subr.mxu0 0.0
    %2991 = vmatpush2.msra.mxu0 0.0
    %2992 = vmatprep.subr.mxu0 0.0
    %2993 = vmatpush2.msra.mxu0 0.0
    %2994 = vmatprep.subr.mxu0 0.0
    %2995 = vmatpush2.msra.mxu0 0.0
    %2996 = vmatprep.subr.mxu0 0.0
    %2997 = vmatpush2.msra.mxu0 0.0
    %2998 = vmatprep.subr.mxu0 0.0
    %2999 = vmatpush2.msra.mxu0 0.0
    %3000 = vmatprep.subr.mxu0 0.0
    %3001 = vmatpush2.msra.mxu0 0.0
    %3002 = vmatprep.subr.mxu0 0.0
    %3003 = vmatpush2.msra.mxu0 0.0
    %3004 = vmatprep.subr.mxu0 0.0
    %3005 = vmatpush2.msra.mxu0 0.0
    %3006 = vmatprep.subr.mxu0 0.0
    %3007 = vmatpush2.msra.mxu0 0.0
    %3008 = vmatprep.subr.mxu0 0.0
    %3009 = vmatpush2.msra.mxu0 0.0
    %3010 = vmatprep.subr.mxu0 0.0
    %3011 = vmatpush2.msra.mxu0 0.0
    %3012 = vmatprep.subr.mxu0 0.0
    %3013 = vmatpush2.msra.mxu0 0.0
    %3014 = vmatprep.subr.mxu0 0.0
    %3015 = vmatpush2.msra.mxu0 0.0
    %3016 = vmatprep.mubr.f32.mxu0 0.0
    %3017 = vmatmul.mubr.f32.gmra.mxu0 %v2930
    %v3018 = vpop.f32.mrf.mxu0
    %v3019 = vadd.f32 %v2951, %v3018
    %v3020 = vpop.f32.mrf.mxu0
    %3021 = vdwg.mxu0
    %v3022 = vmax.f32 %v3019, 0.0
    %v3023 = vld [vmem:[#allocation3 + $0x393] sm:$0x1]
    %v3024 = vld [vmem:[#allocation3 + $0x290] sm:$0xff]
    %v3025 = vld [vmem:[#allocation3 + $0x298] sm:$0xff]
    %v3026 = vld [vmem:[#allocation3 + $0x2a0] sm:$0xff]
    %v3027 = vld [vmem:[#allocation3 + $0x2a8] sm:$0xff]
    %v3028 = vld [vmem:[#allocation3 + $0x2b0] sm:$0xff]
    %v3029 = vld [vmem:[#allocation3 + $0x2b8] sm:$0xff]
    %v3030 = vld [vmem:[#allocation3 + $0x2c0] sm:$0xff]
    %v3031 = vld [vmem:[#allocation3 + $0x2c8] sm:$0xff]
    %v3032 = vld [vmem:[#allocation3 + $0x2d0] sm:$0xff]
    %v3033 = vld [vmem:[#allocation3 + $0x2d8] sm:$0xff]
    %v3034 = vld [vmem:[#allocation3 + $0x2e0] sm:$0xff]
    %v3035 = vld [vmem:[#allocation3 + $0x2e8] sm:$0xff]
    %v3036 = vld [vmem:[#allocation3 + $0x2f0] sm:$0xff]
    %v3037 = vld [vmem:[#allocation3 + $0x2f8] sm:$0xff]
    %v3038 = vld [vmem:[#allocation3 + $0x300] sm:$0xff]
    %v3039 = vld [vmem:[#allocation3 + $0x308] sm:$0xff]
    %v3040 = vlaneseq
    %v3041 = vshrl.u32 %v3040, 7
    %v3042 = vsub.s32 0, %v3041
    %v3043 = vrot.slane %v3023, %v3042
    %3044 = vmatprep.subr.mxu0 0.0
    %3045 = vmatpush1.msra.mxu0 %v3039
    %3046 = vmatprep.subr.mxu0 0.0
    %3047 = vmatpush1.msra.mxu0 %v3038
    %3048 = vmatprep.subr.mxu0 0.0
    %3049 = vmatpush1.msra.mxu0 %v3037
    %3050 = vmatprep.subr.mxu0 0.0
    %3051 = vmatpush1.msra.mxu0 %v3036
    %3052 = vmatprep.subr.mxu0 0.0
    %3053 = vmatpush1.msra.mxu0 %v3035
    %3054 = vmatprep.subr.mxu0 0.0
    %3055 = vmatpush1.msra.mxu0 %v3034
    %3056 = vmatprep.subr.mxu0 0.0
    %3057 = vmatpush1.msra.mxu0 %v3033
    %3058 = vmatprep.subr.mxu0 0.0
    %3059 = vmatpush1.msra.mxu0 %v3032
    %3060 = vmatprep.subr.mxu0 0.0
    %3061 = vmatpush1.msra.mxu0 %v3031
    %3062 = vmatprep.subr.mxu0 0.0
    %3063 = vmatpush1.msra.mxu0 %v3030
    %3064 = vmatprep.subr.mxu0 0.0
    %3065 = vmatpush1.msra.mxu0 %v3029
    %3066 = vmatprep.subr.mxu0 0.0
    %3067 = vmatpush1.msra.mxu0 %v3028
    %3068 = vmatprep.subr.mxu0 0.0
    %3069 = vmatpush1.msra.mxu0 %v3027
    %3070 = vmatprep.subr.mxu0 0.0
    %3071 = vmatpush1.msra.mxu0 %v3026
    %3072 = vmatprep.subr.mxu0 0.0
    %3073 = vmatpush1.msra.mxu0 %v3025
    %3074 = vmatprep.subr.mxu0 0.0
    %3075 = vmatpush1.msra.mxu0 %v3024
    %3076 = vmatprep.subr.mxu0 0.0
    %3077 = vmatpush2.msra.mxu0 0.0
    %3078 = vmatprep.subr.mxu0 0.0
    %3079 = vmatpush2.msra.mxu0 0.0
    %3080 = vmatprep.subr.mxu0 0.0
    %3081 = vmatpush2.msra.mxu0 0.0
    %3082 = vmatprep.subr.mxu0 0.0
    %3083 = vmatpush2.msra.mxu0 0.0
    %3084 = vmatprep.subr.mxu0 0.0
    %3085 = vmatpush2.msra.mxu0 0.0
    %3086 = vmatprep.subr.mxu0 0.0
    %3087 = vmatpush2.msra.mxu0 0.0
    %3088 = vmatprep.subr.mxu0 0.0
    %3089 = vmatpush2.msra.mxu0 0.0
    %3090 = vmatprep.subr.mxu0 0.0
    %3091 = vmatpush2.msra.mxu0 0.0
    %3092 = vmatprep.subr.mxu0 0.0
    %3093 = vmatpush2.msra.mxu0 0.0
    %3094 = vmatprep.subr.mxu0 0.0
    %3095 = vmatpush2.msra.mxu0 0.0
    %3096 = vmatprep.subr.mxu0 0.0
    %3097 = vmatpush2.msra.mxu0 0.0
    %3098 = vmatprep.subr.mxu0 0.0
    %3099 = vmatpush2.msra.mxu0 0.0
    %3100 = vmatprep.subr.mxu0 0.0
    %3101 = vmatpush2.msra.mxu0 0.0
    %3102 = vmatprep.subr.mxu0 0.0
    %3103 = vmatpush2.msra.mxu0 0.0
    %3104 = vmatprep.subr.mxu0 0.0
    %3105 = vmatpush2.msra.mxu0 0.0
    %3106 = vmatprep.subr.mxu0 0.0
    %3107 = vmatpush2.msra.mxu0 0.0
    %3108 = vmatprep.mubr.f32.mxu0 0.0
    %3109 = vmatmul.mubr.f32.gmra.mxu0 %v3022
    %v3110 = vpop.f32.mrf.mxu0
    %v3111 = vadd.f32 %v3043, %v3110
    %v3112 = vpop.f32.mrf.mxu0
    %3113 = vdwg.mxu0
    %v3114 = vmax.f32 %v3111, 0.0
    %v3115 = vld [vmem:[#allocation3 + $0x394] sm:$0x1]
    %v3116 = vld [vmem:[#allocation3 + $0x310] sm:$0xff]
    %v3117 = vld [vmem:[#allocation3 + $0x318] sm:$0xff]
    %v3118 = vld [vmem:[#allocation3 + $0x320] sm:$0xff]
    %v3119 = vld [vmem:[#allocation3 + $0x328] sm:$0xff]
    %v3120 = vld [vmem:[#allocation3 + $0x330] sm:$0xff]
    %v3121 = vld [vmem:[#allocation3 + $0x338] sm:$0xff]
    %v3122 = vld [vmem:[#allocation3 + $0x340] sm:$0xff]
    %v3123 = vld [vmem:[#allocation3 + $0x348] sm:$0xff]
    %v3124 = vld [vmem:[#allocation3 + $0x350] sm:$0xff]
    %v3125 = vld [vmem:[#allocation3 + $0x358] sm:$0xff]
    %v3126 = vld [vmem:[#allocation3 + $0x360] sm:$0xff]
    %v3127 = vld [vmem:[#allocation3 + $0x368] sm:$0xff]
    %v3128 = vld [vmem:[#allocation3 + $0x370] sm:$0xff]
    %v3129 = vld [vmem:[#allocation3 + $0x378] sm:$0xff]
    %v3130 = vld [vmem:[#allocation3 + $0x380] sm:$0xff]
    %v3131 = vld [vmem:[#allocation3 + $0x388] sm:$0xff]
    %v3132 = vlaneseq
    %v3133 = vshrl.u32 %v3132, 7
    %v3134 = vsub.s32 0, %v3133
    %v3135 = vrot.slane %v3115, %v3134
    %3136 = vmatprep.subr.mxu0 0.0
    %3137 = vmatpush1.msra.mxu0 %v3131
    %3138 = vmatprep.subr.mxu0 0.0
    %3139 = vmatpush1.msra.mxu0 %v3130
    %3140 = vmatprep.subr.mxu0 0.0
    %3141 = vmatpush1.msra.mxu0 %v3129
    %3142 = vmatprep.subr.mxu0 0.0
    %3143 = vmatpush1.msra.mxu0 %v3128
    %3144 = vmatprep.subr.mxu0 0.0
    %3145 = vmatpush1.msra.mxu0 %v3127
    %3146 = vmatprep.subr.mxu0 0.0
    %3147 = vmatpush1.msra.mxu0 %v3126
    %3148 = vmatprep.subr.mxu0 0.0
    %3149 = vmatpush1.msra.mxu0 %v3125
    %3150 = vmatprep.subr.mxu0 0.0
    %3151 = vmatpush1.msra.mxu0 %v3124
    %3152 = vmatprep.subr.mxu0 0.0
    %3153 = vmatpush1.msra.mxu0 %v3123
    %3154 = vmatprep.subr.mxu0 0.0
    %3155 = vmatpush1.msra.mxu0 %v3122
    %3156 = vmatprep.subr.mxu0 0.0
    %3157 = vmatpush1.msra.mxu0 %v3121
    %3158 = vmatprep.subr.mxu0 0.0
    %3159 = vmatpush1.msra.mxu0 %v3120
    %3160 = vmatprep.subr.mxu0 0.0
    %3161 = vmatpush1.msra.mxu0 %v3119
    %3162 = vmatprep.subr.mxu0 0.0
    %3163 = vmatpush1.msra.mxu0 %v3118
    %3164 = vmatprep.subr.mxu0 0.0
    %3165 = vmatpush1.msra.mxu0 %v3117
    %3166 = vmatprep.subr.mxu0 0.0
    %3167 = vmatpush1.msra.mxu0 %v3116
    %3168 = vmatprep.subr.mxu0 0.0
    %3169 = vmatpush2.msra.mxu0 0.0
    %3170 = vmatprep.subr.mxu0 0.0
    %3171 = vmatpush2.msra.mxu0 0.0
    %3172 = vmatprep.subr.mxu0 0.0
    %3173 = vmatpush2.msra.mxu0 0.0
    %3174 = vmatprep.subr.mxu0 0.0
    %3175 = vmatpush2.msra.mxu0 0.0
    %3176 = vmatprep.subr.mxu0 0.0
    %3177 = vmatpush2.msra.mxu0 0.0
    %3178 = vmatprep.subr.mxu0 0.0
    %3179 = vmatpush2.msra.mxu0 0.0
    %3180 = vmatprep.subr.mxu0 0.0
    %3181 = vmatpush2.msra.mxu0 0.0
    %3182 = vmatprep.subr.mxu0 0.0
    %3183 = vmatpush2.msra.mxu0 0.0
    %3184 = vmatprep.subr.mxu0 0.0
    %3185 = vmatpush2.msra.mxu0 0.0
    %3186 = vmatprep.subr.mxu0 0.0
    %3187 = vmatpush2.msra.mxu0 0.0
    %3188 = vmatprep.subr.mxu0 0.0
    %3189 = vmatpush2.msra.mxu0 0.0
    %3190 = vmatprep.subr.mxu0 0.0
    %3191 = vmatpush2.msra.mxu0 0.0
    %3192 = vmatprep.subr.mxu0 0.0
    %3193 = vmatpush2.msra.mxu0 0.0
    %3194 = vmatprep.subr.mxu0 0.0
    %3195 = vmatpush2.msra.mxu0 0.0
    %3196 = vmatprep.subr.mxu0 0.0
    %3197 = vmatpush2.msra.mxu0 0.0
    %3198 = vmatprep.subr.mxu0 0.0
    %3199 = vmatpush2.msra.mxu0 0.0
    %3200 = vmatprep.mubr.f32.mxu0 0.0
    %3201 = vmatmul.mubr.f32.gmra.mxu0 %v3114
    %v3202 = vpop.f32.mrf.mxu0
    %v3203 = vadd.f32 %v3135, %v3202
    %v3204 = vpop.f32.mrf.mxu0
    %3205 = vdwg.mxu0
    %3206 = vst [vmem:[#allocation6] sm:$0xff] %v3203
    // Predicated region
    $region14: #{tpu_custom_call.1} parent=1 // pred_check
      _
    $region15: #{tpu_custom_call.1} parent=1 // pred_check_branch
      %3208 = sbr.rel (0) target = $region17
    $region16: #{tpu_custom_call.1} parent=1 // pred_region
      %s3210 = ssub.s32 128, 128
      %3211 = vsyncadd [#allocation5], %s3210
      %s3213 = sshll.u32 [#allocation6], 4
      %s3214 = int_to_ptr.vmem [resolvable:$true] %s3213
      %3216 = dma.vmem_to_hbm [thread:$0]  %s3214, 128, %s2, [#allocation5]
    $region17: #{tpu_custom_call.1} parent=1 // pred_fallthru
      _
    // Predicated region
    $region18: #{tpu_custom_call.1} parent=1 // pred_check
      _
    $region19: #{tpu_custom_call.1} parent=1 // pred_check_branch
      %3218 = sbr.rel (0) target = $region21
    $region20: #{tpu_custom_call.1} parent=1 // pred_region
      %3219 = dma.done [#allocation5], 128
    $region21: #{tpu_custom_call.1} parent=1 // pred_fallthru
      _
    %3220 = vsyncpa [#allocation4], 1
    %3221 = vsyncpa [#allocation5], 1

</llo_original>
